<compile_context>
chip_gen: v7x
topology: tpu7x:2x2x1
jax: 0.10.0
libtpu: 0.0.40
codegen_flags: <defaults>
</compile_context>

<pallas_src>
import functools

import jax
import jax.numpy as jnp
from jax.experimental import pallas as pl
from jax.experimental.pallas import tpu as pltpu


_NCLS_PAD = 128     # lane-dense padded width for the classifier output
_LN_EPS = 1e-5      # torch.nn.LayerNorm default


# --------------------------- in-kernel math helpers --------------------------

def _erf(x):
    # Abramowitz & Stegun 7.1.26 rational approximation (|err| < 1.5e-7), so
    # torch nn.GELU (exact erf form) parity to f32 precision using only
    # exp/abs/where/mul/add (all VPU/EUP supported).
    a1, a2, a3, a4, a5 = 0.254829592, -0.284496736, 1.421413741, -1.453152027, 1.061405429
    p = 0.3275911
    ax = jnp.abs(x)
    t = 1.0 / (1.0 + p * ax)
    poly = ((((a5 * t + a4) * t + a3) * t + a2) * t + a1) * t
    y = 1.0 - poly * jnp.exp(-ax * ax)
    return jnp.where(x >= 0, y, -y)


def _gelu_exact(x):
    return 0.5 * x * (1.0 + _erf(x * 0.7071067811865476))


# ------------------------------- fused kernel --------------------------------

def _vit_fused_kernel(patches_ref, tokbias_ref, wslab_ref, vslab_ref, out_ref, *,
                      depth, heads, dim_head, n_tok, dim, mlp_dim, patch_dim,
                      tb, eps):
    f32, bf16 = jnp.float32, jnp.bfloat16
    inner = heads * dim_head
    M = tb * n_tok                                    # stacked rows per grid step

    def vec(row, length):
        # one packed f32 parameter vector, shape (1, length)
        return vslab_ref[row:row + 1, 0:length].astype(f32)

    def wmat(r0, rows, cols):
        # one packed bf16 matmul weight, shape (rows, cols)
        return wslab_ref[r0:r0 + rows, 0:cols]

    def ln(x, g_row, length):
        g = vec(g_row, length)
        b = vec(g_row + 1, length)
        mu = jnp.mean(x, axis=-1, keepdims=True)
        var = jnp.mean(jnp.square(x - mu), axis=-1, keepdims=True)
        return (x - mu) * jax.lax.rsqrt(var + eps) * g + b

    def mm(a, w):
        # bf16 MXU operands, f32 accumulation
        return jnp.dot(a.astype(bf16), w, preferred_element_type=f32)

    # ---- patch embedding: LN -> Linear -> LN (rows stacked over batch tile) ----
    patches = patches_ref[...].reshape(M, patch_dim).astype(f32)
    h = ln(patches, 0, patch_dim)                     # patch_ln1
    h = mm(h, wmat(0, patch_dim, dim)) + vec(2, dim)  # patch linear
    emb = ln(h, 3, dim)                               # patch_ln2; cls rows are junk

    # ---- cls token + positional embedding (emb_dropout = 0 -> identity) ----
    tokb = tokbias_ref[...].astype(f32)               # (n_tok, dim)
    tokb_full = jnp.broadcast_to(tokb[None], (tb, n_tok, dim)).reshape(M, dim)
    row_in_b = jax.lax.broadcasted_iota(jnp.int32, (tb, n_tok, dim), 1).reshape(M, dim)
    x = tokb_full + jnp.where(row_in_b == 0, 0.0, emb)

    scale = float(dim_head) ** -0.5
    wrow = patch_dim
    vrow = 5
    for _ in range(depth):
        # --- attention (pre-LN, residual); dropout = 0 -> identity ---
        hln = ln(x, vrow, dim)
        qkv = mm(hln, wmat(wrow, dim, 3 * inner))     # single fused QKV matmul (M, 3*inner)
        o_heads = []
        for hh in range(heads):
            q = qkv[:, hh * dim_head:(hh + 1) * dim_head].reshape(tb, n_tok, dim_head)
            k = qkv[:, inner + hh * dim_head: inner + (hh + 1) * dim_head].reshape(tb, n_tok, dim_head)
            v = qkv[:, 2 * inner + hh * dim_head: 2 * inner + (hh + 1) * dim_head].reshape(tb, n_tok, dim_head)
            s = jnp.einsum('bnd,bmd->bnm', q.astype(bf16), k.astype(bf16),
                           preferred_element_type=f32) * scale
            s = s - jnp.max(s, axis=-1, keepdims=True)
            p = jnp.exp(s)
            p = p * pl.reciprocal(jnp.sum(p, axis=-1, keepdims=True), approx=True)
            o = jnp.einsum('bnm,bmd->bnd', p.astype(bf16), v.astype(bf16),
                           preferred_element_type=f32)
            o_heads.append(o.reshape(M, dim_head))
        o_cat = jnp.concatenate(o_heads, axis=-1)     # (M, inner): concat heads on lanes
        x = x + mm(o_cat, wmat(wrow + dim, inner, dim)) + vec(vrow + 2, dim)

        # --- feed-forward (pre-LN, residual) ---
        hln = ln(x, vrow + 3, dim)
        hmid = mm(hln, wmat(wrow + dim + inner, dim, mlp_dim)) + vec(vrow + 5, mlp_dim)
        hmid = _gelu_exact(hmid)
        x = x + mm(hmid, wmat(wrow + dim + inner + dim, mlp_dim, dim)) + vec(vrow + 6, dim)

        wrow += dim + inner + dim + mlp_dim
        vrow += 7

    # ---- forward_features: folded llama_dim_mapper1@mapper2 (LLaMA tail = id),
    #      applied to the cls rows only (pool == 'cls' -> identical result) ----
    cls_x = x.reshape(tb, n_tok, dim)[:, 0, :]        # (tb, dim)
    cls_x = mm(cls_x, wmat(wrow, dim, dim))

    # ---- mlp head: LN -> Linear, lane-dense 128-padded logits ----
    cls_x = ln(cls_x, vrow, dim)
    logits = mm(cls_x, wmat(wrow + dim, dim, _NCLS_PAD)) + vec(vrow + 2, _NCLS_PAD)
    out_ref[0] = logits.astype(out_ref.dtype)         # (tb, _NCLS_PAD)


# ---------------------------- params / packing -------------------------------

CFG = dict(
    image_size=16, image_patch_size=8, frames=8, frame_patch_size=4,
    num_classes=5, dim=32, depth=2, heads=4, mlp_dim=64,
    channels=3, dim_head=8, llama_dim=4096, pool='cls',
)


def init_params(key, cfg):
    dim, heads, dh = cfg['dim'], cfg['heads'], cfg['dim_head']
    inner = heads * dh
    mlp_dim, depth = cfg['mlp_dim'], cfg['depth']
    C, ph, pf = cfg['channels'], cfg['image_patch_size'], cfg['frame_patch_size']
    patch_dim = C * ph * ph * pf
    n_patches = (cfg['image_size'] // ph) ** 2 * (cfg['frames'] // pf)
    ldim, ncls = cfg['llama_dim'], cfg['num_classes']

    keys = iter(jax.random.split(key, 64))
    nrm = lambda shape, s=0.02: (s * jax.random.normal(next(keys), shape)).astype(jnp.float32)

    p = {
        'patch_ln1_g': jnp.ones((patch_dim,), jnp.float32),
        'patch_ln1_b': jnp.zeros((patch_dim,), jnp.float32),
        'patch_w': nrm((patch_dim, dim)),
        'patch_b': jnp.zeros((dim,), jnp.float32),
        'patch_ln2_g': jnp.ones((dim,), jnp.float32),
        'patch_ln2_b': jnp.zeros((dim,), jnp.float32),
        'pos_embedding': nrm((1, n_patches + 1, dim), 1.0),
        'cls_token': nrm((1, 1, dim), 1.0),
        'mapper1_w': nrm((dim, ldim)),     # llama_dim_mapper1 (no bias)
        'mapper2_w': nrm((ldim, dim)),     # llama_dim_mapper2 (no bias)
        'head_ln_g': jnp.ones((dim,), jnp.float32),
        'head_ln_b': jnp.zeros((dim,), jnp.float32),
        'head_w': nrm((dim, ncls)),
        'head_b': jnp.zeros((ncls,), jnp.float32),
        'layers': [],
    }
    for _ in range(depth):
        p['layers'].append({
            'attn_ln_g': jnp.ones((dim,), jnp.float32),
            'attn_ln_b': jnp.zeros((dim,), jnp.float32),
            'w_qkv': nrm((dim, 3 * inner)),        # to_qkv, bias=False
            'w_out': nrm((inner, dim)),
            'b_out': jnp.zeros((dim,), jnp.float32),
            'ff_ln_g': jnp.ones((dim,), jnp.float32),
            'ff_ln_b': jnp.zeros((dim,), jnp.float32),
            'ff_w1': nrm((dim, mlp_dim)),
            'ff_b1': jnp.zeros((mlp_dim,), jnp.float32),
            'ff_w2': nrm((mlp_dim, dim)),
            'ff_b2': jnp.zeros((dim,), jnp.float32),
        })
    return p


def pack_params(p, cfg):
    """One-time (outside jit) fold + packing of all params into 3 slabs."""
    dim, heads, dh = cfg['dim'], cfg['heads'], cfg['dim_head']
    inner = heads * dh
    mlp_dim, depth = cfg['mlp_dim'], cfg['depth']
    C, ph, pf = cfg['channels'], cfg['image_patch_size'], cfg['frame_patch_size']
    patch_dim = C * ph * ph * pf
    n_patches = (cfg['image_size'] // ph) ** 2 * (cfg['frames'] // pf)
    N = n_patches + 1

    # ---- bf16 weight slab: (rows, 128), each weight at [row_off:, :cols] ----
    per_layer_rows = dim + inner + dim + mlp_dim
    total_rows = patch_dim + depth * per_layer_rows + 2 * dim
    total_rows = -(-total_rows // 8) * 8
    wslab = jnp.zeros((total_rows, 128), jnp.float32)

    def put(slab, r, w):
        return slab.at[r:r + w.shape[0], :w.shape[1]].set(w)

    wslab = put(wslab, 0, p['patch_w'])
    off = patch_dim
    for layer in p['layers']:
        wslab = put(wslab, off, layer['w_qkv'])
        wslab = put(wslab, off + dim, layer['w_out'])
        wslab = put(wslab, off + dim + inner, layer['ff_w1'])
        wslab = put(wslab, off + dim + inner + dim, layer['ff_w2'])
        off += per_layer_rows
    # Fold mapper1 @ mapper2 once (LLaMA tail treated as identity; see TODO).
    mapper_eff = jnp.dot(p['mapper1_w'], p['mapper2_w'])
    wslab = put(wslab, off, mapper_eff)
    wslab = put(wslab, off + dim, p['head_w'])        # (dim, ncls) -> cols 0:ncls
    wslab = wslab.astype(jnp.bfloat16)

    # ---- f32 vector slab: LN gammas/betas and biases, one per row ----
    vcols = max(patch_dim, 128)
    nvec = 5 + 7 * depth + 3
    nvec_pad = -(-nvec // 8) * 8
    vslab = jnp.zeros((nvec_pad, vcols), jnp.float32)

    def putv(slab, r, v):
        return slab.at[r, :v.shape[0]].set(v)

    vslab = putv(vslab, 0, p['patch_ln1_g'])
    vslab = putv(vslab, 1, p['patch_ln1_b'])
    vslab = putv(vslab, 2, p['patch_b'])
    vslab = putv(vslab, 3, p['patch_ln2_g'])
    vslab = putv(vslab, 4, p['patch_ln2_b'])
    r = 5
    for layer in p['layers']:
        vslab = putv(vslab, r + 0, layer['attn_ln_g'])
        vslab = putv(vslab, r + 1, layer['attn_ln_b'])
        vslab = putv(vslab, r + 2, layer['b_out'])
        vslab = putv(vslab, r + 3, layer['ff_ln_g'])
        vslab = putv(vslab, r + 4, layer['ff_ln_b'])
        vslab = putv(vslab, r + 5, layer['ff_b1'])
        vslab = putv(vslab, r + 6, layer['ff_b2'])
        r += 7
    vslab = putv(vslab, r + 0, p['head_ln_g'])
    vslab = putv(vslab, r + 1, p['head_ln_b'])
    vslab = putv(vslab, r + 2, p['head_b'])           # lanes 0:ncls, rest zero

    # ---- token bias: row0 = cls_token + pos[0]; rows 1.. = pos[1..] ----
    pos = p['pos_embedding'][0, :N]
    cls_row = p['cls_token'][0] + pos[:1]
    tokbias = jnp.concatenate([cls_row, pos[1:]], axis=0).astype(jnp.float32)

    return {'wslab': wslab, 'vslab': vslab, 'tokbias': tokbias}


# ------------------------------- model wrapper --------------------------------

def _pick_batch_tile(B):
    # Fill MXU rows (TB*9 per dense matmul) while keeping >= 2 grid steps so
    # v7x's two TensorCores both get work.  VMEM stays tiny (<1 MiB) at TB=32.
    return max(1, min(32, -(-B // 2)))


def vit_llama_forward(video, packed, cfg):
    B, C, F, H, W = video.shape
    ph = pw = cfg['image_patch_size']
    pf = cfg['frame_patch_size']
    dim, depth = cfg['dim'], cfg['depth']
    heads, dh = cfg['heads'], cfg['dim_head']
    mlp_dim = cfg['mlp_dim']
    ncls = cfg['num_classes']
    f_, h_, w_ = F // pf, H // ph, W // pw
    n = f_ * h_ * w_
    N = n + 1
    patch_dim = C * ph * pw * pf

    # Rearrange 'b c (f pf) (h p1) (w p2) -> b (f h w) (p1 p2 pf c)'
    # (pure layout shuffle on a tiny tensor; done once in XLA).
    x = video.reshape(B, C, f_, pf, h_, ph, w_, pw)
    patches = x.transpose(0, 2, 4, 6, 5, 7, 3, 1).reshape(B, n, patch_dim)
    # Dummy row 0 = cls slot (masked in the kernel); bf16 halves the HBM read.
    patches_ext = jnp.pad(patches, ((0, 0), (1, 0), (0, 0))).astype(jnp.bfloat16)

    tb = _pick_batch_tile(B)
    nb = -(-B // tb)
    B_pad = nb * tb
    if B_pad != B:
        patches_ext = jnp.pad(patches_ext, ((0, B_pad - B), (0, 0), (0, 0)))

    wslab, vslab, tokbias = packed['wslab'], packed['vslab'], packed['tokbias']

    kernel = functools.partial(
        _vit_fused_kernel, depth=depth, heads=heads, dim_head=dh, n_tok=N,
        dim=dim, mlp_dim=mlp_dim, patch_dim=patch_dim, tb=tb, eps=_LN_EPS)

    out = pl.pallas_call(
        kernel,
        out_shape=jax.ShapeDtypeStruct((nb, tb, _NCLS_PAD), jnp.float32),
        grid_spec=pltpu.PrefetchScalarGridSpec(
            num_scalar_prefetch=0,
            grid=(nb,),
            in_specs=[
                pl.BlockSpec((tb, N, patch_dim), lambda i: (i, 0, 0)),
                pl.BlockSpec(tokbias.shape, lambda i: (0, 0)),   # VMEM-resident
                pl.BlockSpec(wslab.shape, lambda i: (0, 0)),     # VMEM-resident
                pl.BlockSpec(vslab.shape, lambda i: (0, 0)),     # VMEM-resident
            ],
            out_specs=pl.BlockSpec((1, tb, _NCLS_PAD), lambda i: (i, 0, 0)),
        ),
        compiler_params=pltpu.CompilerParams(
            dimension_semantics=("parallel",)),
    )(patches_ext, tokbias, wslab, vslab)

    return out.reshape(B_pad, _NCLS_PAD)[:B, :ncls]               # (B, num_classes)


if __name__ == "__main__":
    cfg = CFG
    key = jax.random.PRNGKey(0)
    kp, kv = jax.random.split(key)
    params = init_params(kp, cfg)
    packed = pack_params(params, cfg)     # one-time fold + packing, outside jit
    video = jax.random.normal(
        kv, (2, cfg['channels'], cfg['frames'], cfg['image_size'], cfg['image_size']),
        dtype=jnp.float32)

    fwd = jax.jit(lambda v, pk: vit_llama_forward(v, pk, cfg))
    out = jax.block_until_ready(fwd(video, packed))
    assert out.shape == (2, cfg['num_classes'])
    assert bool(jnp.all(jnp.isfinite(out)))
    print("KERNEL_OK")
</pallas_src>

<mosaic_0001>
module attributes {stable_mosaic.version = 11 : i64} {
  func.func @_vit_fused_kernel(%arg0: i32, %arg1: memref<1x9x768xbf16, #tpu.memory_space<vmem>>, %arg2: memref<9x32xf32, #tpu.memory_space<vmem>>, %arg3: memref<1152x128xbf16, #tpu.memory_space<vmem>>, %arg4: memref<24x768xf32, #tpu.memory_space<vmem>>, %arg5: memref<1x1x128xf32, #tpu.memory_space<vmem>>) attributes {dimension_semantics = [#tpu.dimension_semantics<parallel>], iteration_bounds = array<i64: 2>, scalar_prefetch = 0 : i64, scratch_operands = 0 : i64, tpu.core_type = #tpu.core_type<tc>, window_params = [{transform_indices = @transform_0, window_bounds = array<i64: 1, 9, 768>}, {pipeline_mode = #tpu.pipeline_mode<synchronous>, transform_indices = @transform_1, window_bounds = array<i64: 9, 32>}, {pipeline_mode = #tpu.pipeline_mode<synchronous>, transform_indices = @transform_2, window_bounds = array<i64: 1152, 128>}, {pipeline_mode = #tpu.pipeline_mode<synchronous>, transform_indices = @transform_3, window_bounds = array<i64: 24, 768>}, {transform_indices = @transform_4, window_bounds = array<i64: 1, 1, 128>}]} {
    %c0 = arith.constant 0 : index
    %c0_0 = arith.constant 0 : index
    %c0_1 = arith.constant 0 : index
    %0 = vector.load %arg1[%c0, %c0_0, %c0_1] : memref<1x9x768xbf16, #tpu.memory_space<vmem>>, vector<1x9x768xbf16>
    %1 = vector.shape_cast %0 : vector<1x9x768xbf16> to vector<9x768xbf16>
    %2 = arith.extf %1 : vector<9x768xbf16> to vector<9x768xf32>
    %c0_2 = arith.constant 0 : index
    %c0_3 = arith.constant 0 : index
    %3 = vector.load %arg4[%c0_2, %c0_3] : memref<24x768xf32, #tpu.memory_space<vmem>>, vector<1x768xf32>
    %c1 = arith.constant 1 : index
    %c0_4 = arith.constant 0 : index
    %4 = vector.load %arg4[%c1, %c0_4] : memref<24x768xf32, #tpu.memory_space<vmem>>, vector<1x768xf32>
    %cst = arith.constant dense<0.000000e+00> : vector<9xf32>
    %5 = vector.multi_reduction <add>, %2, %cst [1] : vector<9x768xf32> to vector<9xf32>
    %6 = vector.shape_cast %5 : vector<9xf32> to vector<9x1xf32>
    %cst_5 = arith.constant 7.680000e+02 : f32
    %7 = vector.broadcast %cst_5 : f32 to vector<9x1xf32>
    %8 = arith.divf %6, %7 : vector<9x1xf32>
    %9 = vector.broadcast %8 : vector<9x1xf32> to vector<9x768xf32>
    %10 = arith.subf %2, %9 : vector<9x768xf32>
    %11 = arith.mulf %10, %10 : vector<9x768xf32>
    %cst_6 = arith.constant dense<0.000000e+00> : vector<9xf32>
    %12 = vector.multi_reduction <add>, %11, %cst_6 [1] : vector<9x768xf32> to vector<9xf32>
    %13 = vector.shape_cast %12 : vector<9xf32> to vector<9x1xf32>
    %cst_7 = arith.constant 7.680000e+02 : f32
    %14 = vector.broadcast %cst_7 : f32 to vector<9x1xf32>
    %15 = arith.divf %13, %14 : vector<9x1xf32>
    %16 = vector.broadcast %8 : vector<9x1xf32> to vector<9x768xf32>
    %17 = arith.subf %2, %16 : vector<9x768xf32>
    %cst_8 = arith.constant 9.99999974E-6 : f32
    %18 = vector.broadcast %cst_8 : f32 to vector<9x1xf32>
    %19 = arith.addf %15, %18 : vector<9x1xf32>
    %20 = math.rsqrt %19 : vector<9x1xf32>
    %21 = vector.broadcast %20 : vector<9x1xf32> to vector<9x768xf32>
    %22 = arith.mulf %17, %21 : vector<9x768xf32>
    %23 = vector.broadcast %3 : vector<1x768xf32> to vector<9x768xf32>
    %24 = arith.mulf %22, %23 : vector<9x768xf32>
    %25 = vector.broadcast %4 : vector<1x768xf32> to vector<9x768xf32>
    %26 = arith.addf %24, %25 : vector<9x768xf32>
    %c0_9 = arith.constant 0 : index
    %c0_10 = arith.constant 0 : index
    %27 = vector.load %arg3[%c0_9, %c0_10] : memref<1152x128xbf16, #tpu.memory_space<vmem>>, vector<768x32xbf16>
    %28 = arith.truncf %26 : vector<9x768xf32> to vector<9x768xbf16>
    %cst_11 = arith.constant dense<0.000000e+00> : vector<9x32xf32>
    %29 = tpu.matmul %28, %27, %cst_11 {dimension_numbers = #tpu.dot_dimension_numbers<[1], [0], [0], [1], [0, 0, 1, 1], [], []>} : vector<9x768xbf16>, vector<768x32xbf16>, vector<9x32xf32> -> vector<9x32xf32>
    %c2 = arith.constant 2 : index
    %c0_12 = arith.constant 0 : index
    %30 = vector.load %arg4[%c2, %c0_12] : memref<24x768xf32, #tpu.memory_space<vmem>>, vector<1x32xf32>
    %31 = vector.broadcast %30 : vector<1x32xf32> to vector<9x32xf32>
    %32 = arith.addf %29, %31 : vector<9x32xf32>
    %c3 = arith.constant 3 : index
    %c0_13 = arith.constant 0 : index
    %33 = vector.load %arg4[%c3, %c0_13] : memref<24x768xf32, #tpu.memory_space<vmem>>, vector<1x32xf32>
    %c4 = arith.constant 4 : index
    %c0_14 = arith.constant 0 : index
    %34 = vector.load %arg4[%c4, %c0_14] : memref<24x768xf32, #tpu.memory_space<vmem>>, vector<1x32xf32>
    %cst_15 = arith.constant dense<0.000000e+00> : vector<9xf32>
    %35 = vector.multi_reduction <add>, %32, %cst_15 [1] : vector<9x32xf32> to vector<9xf32>
    %36 = vector.shape_cast %35 : vector<9xf32> to vector<9x1xf32>
    %cst_16 = arith.constant 3.200000e+01 : f32
    %37 = vector.broadcast %cst_16 : f32 to vector<9x1xf32>
    %38 = arith.divf %36, %37 : vector<9x1xf32>
    %39 = vector.broadcast %38 : vector<9x1xf32> to vector<9x32xf32>
    %40 = arith.subf %32, %39 : vector<9x32xf32>
    %41 = arith.mulf %40, %40 : vector<9x32xf32>
    %cst_17 = arith.constant dense<0.000000e+00> : vector<9xf32>
    %42 = vector.multi_reduction <add>, %41, %cst_17 [1] : vector<9x32xf32> to vector<9xf32>
    %43 = vector.shape_cast %42 : vector<9xf32> to vector<9x1xf32>
    %cst_18 = arith.constant 3.200000e+01 : f32
    %44 = vector.broadcast %cst_18 : f32 to vector<9x1xf32>
    %45 = arith.divf %43, %44 : vector<9x1xf32>
    %46 = vector.broadcast %38 : vector<9x1xf32> to vector<9x32xf32>
    %47 = arith.subf %32, %46 : vector<9x32xf32>
    %cst_19 = arith.constant 9.99999974E-6 : f32
    %48 = vector.broadcast %cst_19 : f32 to vector<9x1xf32>
    %49 = arith.addf %45, %48 : vector<9x1xf32>
    %50 = math.rsqrt %49 : vector<9x1xf32>
    %51 = vector.broadcast %50 : vector<9x1xf32> to vector<9x32xf32>
    %52 = arith.mulf %47, %51 : vector<9x32xf32>
    %53 = vector.broadcast %33 : vector<1x32xf32> to vector<9x32xf32>
    %54 = arith.mulf %52, %53 : vector<9x32xf32>
    %55 = vector.broadcast %34 : vector<1x32xf32> to vector<9x32xf32>
    %56 = arith.addf %54, %55 : vector<9x32xf32>
    %c0_20 = arith.constant 0 : index
    %c0_21 = arith.constant 0 : index
    %57 = vector.load %arg2[%c0_20, %c0_21] : memref<9x32xf32, #tpu.memory_space<vmem>>, vector<9x32xf32>
    %58 = vector.shape_cast %57 : vector<9x32xf32> to vector<1x9x32xf32>
    %59 = vector.shape_cast %58 : vector<1x9x32xf32> to vector<9x32xf32>
    %60 = tpu.iota {dimensions = array<i32: 1>} : vector<1x9x32xi32>
    %61 = vector.shape_cast %60 : vector<1x9x32xi32> to vector<9x32xi32>
    %c0_i32 = arith.constant 0 : i32
    %62 = vector.broadcast %c0_i32 : i32 to vector<9x32xi32>
    %63 = arith.cmpi eq, %61, %62 : vector<9x32xi32>
    %cst_22 = arith.constant 0.000000e+00 : f32
    %64 = vector.broadcast %cst_22 : f32 to vector<9x32xf32>
    %65 = arith.select %63, %64, %56 : vector<9x32xi1>, vector<9x32xf32>
    %66 = arith.addf %59, %65 : vector<9x32xf32>
    %c5 = arith.constant 5 : index
    %c0_23 = arith.constant 0 : index
    %67 = vector.load %arg4[%c5, %c0_23] : memref<24x768xf32, #tpu.memory_space<vmem>>, vector<1x32xf32>
    %c6 = arith.constant 6 : index
    %c0_24 = arith.constant 0 : index
    %68 = vector.load %arg4[%c6, %c0_24] : memref<24x768xf32, #tpu.memory_space<vmem>>, vector<1x32xf32>
    %cst_25 = arith.constant dense<0.000000e+00> : vector<9xf32>
    %69 = vector.multi_reduction <add>, %66, %cst_25 [1] : vector<9x32xf32> to vector<9xf32>
    %70 = vector.shape_cast %69 : vector<9xf32> to vector<9x1xf32>
    %cst_26 = arith.constant 3.200000e+01 : f32
    %71 = vector.broadcast %cst_26 : f32 to vector<9x1xf32>
    %72 = arith.divf %70, %71 : vector<9x1xf32>
    %73 = vector.broadcast %72 : vector<9x1xf32> to vector<9x32xf32>
    %74 = arith.subf %66, %73 : vector<9x32xf32>
    %75 = arith.mulf %74, %74 : vector<9x32xf32>
    %cst_27 = arith.constant dense<0.000000e+00> : vector<9xf32>
    %76 = vector.multi_reduction <add>, %75, %cst_27 [1] : vector<9x32xf32> to vector<9xf32>
    %77 = vector.shape_cast %76 : vector<9xf32> to vector<9x1xf32>
    %cst_28 = arith.constant 3.200000e+01 : f32
    %78 = vector.broadcast %cst_28 : f32 to vector<9x1xf32>
    %79 = arith.divf %77, %78 : vector<9x1xf32>
    %80 = vector.broadcast %72 : vector<9x1xf32> to vector<9x32xf32>
    %81 = arith.subf %66, %80 : vector<9x32xf32>
    %cst_29 = arith.constant 9.99999974E-6 : f32
    %82 = vector.broadcast %cst_29 : f32 to vector<9x1xf32>
    %83 = arith.addf %79, %82 : vector<9x1xf32>
    %84 = math.rsqrt %83 : vector<9x1xf32>
    %85 = vector.broadcast %84 : vector<9x1xf32> to vector<9x32xf32>
    %86 = arith.mulf %81, %85 : vector<9x32xf32>
    %87 = vector.broadcast %67 : vector<1x32xf32> to vector<9x32xf32>
    %88 = arith.mulf %86, %87 : vector<9x32xf32>
    %89 = vector.broadcast %68 : vector<1x32xf32> to vector<9x32xf32>
    %90 = arith.addf %88, %89 : vector<9x32xf32>
    %c768 = arith.constant 768 : index
    %c0_30 = arith.constant 0 : index
    %91 = vector.load %arg3[%c768, %c0_30] : memref<1152x128xbf16, #tpu.memory_space<vmem>>, vector<32x96xbf16>
    %92 = arith.truncf %90 : vector<9x32xf32> to vector<9x32xbf16>
    %cst_31 = arith.constant dense<0.000000e+00> : vector<9x96xf32>
    %93 = tpu.matmul %92, %91, %cst_31 {dimension_numbers = #tpu.dot_dimension_numbers<[1], [0], [0], [1], [0, 0, 1, 1], [], []>} : vector<9x32xbf16>, vector<32x96xbf16>, vector<9x96xf32> -> vector<9x96xf32>
    %94 = vector.extract_strided_slice %93 {offsets = [0, 0], sizes = [9, 8], strides = [1, 1]} : vector<9x96xf32> to vector<9x8xf32>
    %95 = vector.shape_cast %94 : vector<9x8xf32> to vector<1x9x8xf32>
    %96 = vector.extract_strided_slice %93 {offsets = [0, 32], sizes = [9, 8], strides = [1, 1]} : vector<9x96xf32> to vector<9x8xf32>
    %97 = vector.shape_cast %96 : vector<9x8xf32> to vector<1x9x8xf32>
    %98 = vector.extract_strided_slice %93 {offsets = [0, 64], sizes = [9, 8], strides = [1, 1]} : vector<9x96xf32> to vector<9x8xf32>
    %99 = vector.shape_cast %98 : vector<9x8xf32> to vector<1x9x8xf32>
    %100 = arith.truncf %95 : vector<1x9x8xf32> to vector<1x9x8xbf16>
    %101 = arith.truncf %97 : vector<1x9x8xf32> to vector<1x9x8xbf16>
    "tpu.trace_start"() <{level = 10 : i32, message = "bnd,bmd->bnm"}> : () -> ()
    %cst_32 = arith.constant dense<0.000000e+00> : vector<1x9x9xf32>
    %102 = tpu.matmul %100, %101, %cst_32 {dimension_numbers = #tpu.dot_dimension_numbers<[2], [2], [1], [1], [0, 0, 0, 1, 1, 1], [0], [0]>} : vector<1x9x8xbf16>, vector<1x9x8xbf16>, vector<1x9x9xf32> -> vector<1x9x9xf32>
    "tpu.trace_stop"() : () -> ()
    %cst_33 = arith.constant 0.353553385 : f32
    %103 = vector.broadcast %cst_33 : f32 to vector<1x9x9xf32>
    %104 = arith.mulf %102, %103 : vector<1x9x9xf32>
    %cst_34 = arith.constant dense<0xFF800000> : vector<1x9xf32>
    %105 = vector.multi_reduction <maximumf>, %104, %cst_34 [2] : vector<1x9x9xf32> to vector<1x9xf32>
    %106 = vector.shape_cast %105 : vector<1x9xf32> to vector<1x9x1xf32>
    %107 = vector.broadcast %106 : vector<1x9x1xf32> to vector<1x9x9xf32>
    %108 = arith.subf %104, %107 : vector<1x9x9xf32>
    %109 = math.exp %108 : vector<1x9x9xf32>
    %cst_35 = arith.constant dense<0.000000e+00> : vector<1x9xf32>
    %110 = vector.multi_reduction <add>, %109, %cst_35 [2] : vector<1x9x9xf32> to vector<1x9xf32>
    %111 = vector.shape_cast %110 : vector<1x9xf32> to vector<1x9x1xf32>
    %112 = tpu.reciprocal %111 {approx = true} : vector<1x9x1xf32> -> vector<1x9x1xf32>
    %113 = vector.broadcast %112 : vector<1x9x1xf32> to vector<1x9x9xf32>
    %114 = arith.mulf %109, %113 : vector<1x9x9xf32>
    %115 = arith.truncf %114 : vector<1x9x9xf32> to vector<1x9x9xbf16>
    %116 = arith.truncf %99 : vector<1x9x8xf32> to vector<1x9x8xbf16>
    "tpu.trace_start"() <{level = 10 : i32, message = "bnm,bmd->bnd"}> : () -> ()
    %cst_36 = arith.constant dense<0.000000e+00> : vector<1x9x8xf32>
    %117 = tpu.matmul %115, %116, %cst_36 {dimension_numbers = #tpu.dot_dimension_numbers<[2], [1], [1], [2], [0, 0, 0, 1, 1, 2], [0], [0]>} : vector<1x9x9xbf16>, vector<1x9x8xbf16>, vector<1x9x8xf32> -> vector<1x9x8xf32>
    "tpu.trace_stop"() : () -> ()
    %118 = vector.shape_cast %117 : vector<1x9x8xf32> to vector<9x8xf32>
    %119 = vector.extract_strided_slice %93 {offsets = [0, 8], sizes = [9, 8], strides = [1, 1]} : vector<9x96xf32> to vector<9x8xf32>
    %120 = vector.shape_cast %119 : vector<9x8xf32> to vector<1x9x8xf32>
    %121 = vector.extract_strided_slice %93 {offsets = [0, 40], sizes = [9, 8], strides = [1, 1]} : vector<9x96xf32> to vector<9x8xf32>
    %122 = vector.shape_cast %121 : vector<9x8xf32> to vector<1x9x8xf32>
    %123 = vector.extract_strided_slice %93 {offsets = [0, 72], sizes = [9, 8], strides = [1, 1]} : vector<9x96xf32> to vector<9x8xf32>
    %124 = vector.shape_cast %123 : vector<9x8xf32> to vector<1x9x8xf32>
    %125 = arith.truncf %120 : vector<1x9x8xf32> to vector<1x9x8xbf16>
    %126 = arith.truncf %122 : vector<1x9x8xf32> to vector<1x9x8xbf16>
    "tpu.trace_start"() <{level = 10 : i32, message = "bnd,bmd->bnm"}> : () -> ()
    %cst_37 = arith.constant dense<0.000000e+00> : vector<1x9x9xf32>
    %127 = tpu.matmul %125, %126, %cst_37 {dimension_numbers = #tpu.dot_dimension_numbers<[2], [2], [1], [1], [0, 0, 0, 1, 1, 1], [0], [0]>} : vector<1x9x8xbf16>, vector<1x9x8xbf16>, vector<1x9x9xf32> -> vector<1x9x9xf32>
    "tpu.trace_stop"() : () -> ()
    %cst_38 = arith.constant 0.353553385 : f32
    %128 = vector.broadcast %cst_38 : f32 to vector<1x9x9xf32>
    %129 = arith.mulf %127, %128 : vector<1x9x9xf32>
    %cst_39 = arith.constant dense<0xFF800000> : vector<1x9xf32>
    %130 = vector.multi_reduction <maximumf>, %129, %cst_39 [2] : vector<1x9x9xf32> to vector<1x9xf32>
    %131 = vector.shape_cast %130 : vector<1x9xf32> to vector<1x9x1xf32>
    %132 = vector.broadcast %131 : vector<1x9x1xf32> to vector<1x9x9xf32>
    %133 = arith.subf %129, %132 : vector<1x9x9xf32>
    %134 = math.exp %133 : vector<1x9x9xf32>
    %cst_40 = arith.constant dense<0.000000e+00> : vector<1x9xf32>
    %135 = vector.multi_reduction <add>, %134, %cst_40 [2] : vector<1x9x9xf32> to vector<1x9xf32>
    %136 = vector.shape_cast %135 : vector<1x9xf32> to vector<1x9x1xf32>
    %137 = tpu.reciprocal %136 {approx = true} : vector<1x9x1xf32> -> vector<1x9x1xf32>
    %138 = vector.broadcast %137 : vector<1x9x1xf32> to vector<1x9x9xf32>
    %139 = arith.mulf %134, %138 : vector<1x9x9xf32>
    %140 = arith.truncf %139 : vector<1x9x9xf32> to vector<1x9x9xbf16>
    %141 = arith.truncf %124 : vector<1x9x8xf32> to vector<1x9x8xbf16>
    "tpu.trace_start"() <{level = 10 : i32, message = "bnm,bmd->bnd"}> : () -> ()
    %cst_41 = arith.constant dense<0.000000e+00> : vector<1x9x8xf32>
    %142 = tpu.matmul %140, %141, %cst_41 {dimension_numbers = #tpu.dot_dimension_numbers<[2], [1], [1], [2], [0, 0, 0, 1, 1, 2], [0], [0]>} : vector<1x9x9xbf16>, vector<1x9x8xbf16>, vector<1x9x8xf32> -> vector<1x9x8xf32>
    "tpu.trace_stop"() : () -> ()
    %143 = vector.shape_cast %142 : vector<1x9x8xf32> to vector<9x8xf32>
    %144 = vector.extract_strided_slice %93 {offsets = [0, 16], sizes = [9, 8], strides = [1, 1]} : vector<9x96xf32> to vector<9x8xf32>
    %145 = vector.shape_cast %144 : vector<9x8xf32> to vector<1x9x8xf32>
    %146 = vector.extract_strided_slice %93 {offsets = [0, 48], sizes = [9, 8], strides = [1, 1]} : vector<9x96xf32> to vector<9x8xf32>
    %147 = vector.shape_cast %146 : vector<9x8xf32> to vector<1x9x8xf32>
    %148 = vector.extract_strided_slice %93 {offsets = [0, 80], sizes = [9, 8], strides = [1, 1]} : vector<9x96xf32> to vector<9x8xf32>
    %149 = vector.shape_cast %148 : vector<9x8xf32> to vector<1x9x8xf32>
    %150 = arith.truncf %145 : vector<1x9x8xf32> to vector<1x9x8xbf16>
    %151 = arith.truncf %147 : vector<1x9x8xf32> to vector<1x9x8xbf16>
    "tpu.trace_start"() <{level = 10 : i32, message = "bnd,bmd->bnm"}> : () -> ()
    %cst_42 = arith.constant dense<0.000000e+00> : vector<1x9x9xf32>
    %152 = tpu.matmul %150, %151, %cst_42 {dimension_numbers = #tpu.dot_dimension_numbers<[2], [2], [1], [1], [0, 0, 0, 1, 1, 1], [0], [0]>} : vector<1x9x8xbf16>, vector<1x9x8xbf16>, vector<1x9x9xf32> -> vector<1x9x9xf32>
    "tpu.trace_stop"() : () -> ()
    %cst_43 = arith.constant 0.353553385 : f32
    %153 = vector.broadcast %cst_43 : f32 to vector<1x9x9xf32>
    %154 = arith.mulf %152, %153 : vector<1x9x9xf32>
    %cst_44 = arith.constant dense<0xFF800000> : vector<1x9xf32>
    %155 = vector.multi_reduction <maximumf>, %154, %cst_44 [2] : vector<1x9x9xf32> to vector<1x9xf32>
    %156 = vector.shape_cast %155 : vector<1x9xf32> to vector<1x9x1xf32>
    %157 = vector.broadcast %156 : vector<1x9x1xf32> to vector<1x9x9xf32>
    %158 = arith.subf %154, %157 : vector<1x9x9xf32>
    %159 = math.exp %158 : vector<1x9x9xf32>
    %cst_45 = arith.constant dense<0.000000e+00> : vector<1x9xf32>
    %160 = vector.multi_reduction <add>, %159, %cst_45 [2] : vector<1x9x9xf32> to vector<1x9xf32>
    %161 = vector.shape_cast %160 : vector<1x9xf32> to vector<1x9x1xf32>
    %162 = tpu.reciprocal %161 {approx = true} : vector<1x9x1xf32> -> vector<1x9x1xf32>
    %163 = vector.broadcast %162 : vector<1x9x1xf32> to vector<1x9x9xf32>
    %164 = arith.mulf %159, %163 : vector<1x9x9xf32>
    %165 = arith.truncf %164 : vector<1x9x9xf32> to vector<1x9x9xbf16>
    %166 = arith.truncf %149 : vector<1x9x8xf32> to vector<1x9x8xbf16>
    "tpu.trace_start"() <{level = 10 : i32, message = "bnm,bmd->bnd"}> : () -> ()
    %cst_46 = arith.constant dense<0.000000e+00> : vector<1x9x8xf32>
    %167 = tpu.matmul %165, %166, %cst_46 {dimension_numbers = #tpu.dot_dimension_numbers<[2], [1], [1], [2], [0, 0, 0, 1, 1, 2], [0], [0]>} : vector<1x9x9xbf16>, vector<1x9x8xbf16>, vector<1x9x8xf32> -> vector<1x9x8xf32>
    "tpu.trace_stop"() : () -> ()
    %168 = vector.shape_cast %167 : vector<1x9x8xf32> to vector<9x8xf32>
    %169 = vector.extract_strided_slice %93 {offsets = [0, 24], sizes = [9, 8], strides = [1, 1]} : vector<9x96xf32> to vector<9x8xf32>
    %170 = vector.shape_cast %169 : vector<9x8xf32> to vector<1x9x8xf32>
    %171 = vector.extract_strided_slice %93 {offsets = [0, 56], sizes = [9, 8], strides = [1, 1]} : vector<9x96xf32> to vector<9x8xf32>
    %172 = vector.shape_cast %171 : vector<9x8xf32> to vector<1x9x8xf32>
    %173 = vector.extract_strided_slice %93 {offsets = [0, 88], sizes = [9, 8], strides = [1, 1]} : vector<9x96xf32> to vector<9x8xf32>
    %174 = vector.shape_cast %173 : vector<9x8xf32> to vector<1x9x8xf32>
    %175 = arith.truncf %170 : vector<1x9x8xf32> to vector<1x9x8xbf16>
    %176 = arith.truncf %172 : vector<1x9x8xf32> to vector<1x9x8xbf16>
    "tpu.trace_start"() <{level = 10 : i32, message = "bnd,bmd->bnm"}> : () -> ()
    %cst_47 = arith.constant dense<0.000000e+00> : vector<1x9x9xf32>
    %177 = tpu.matmul %175, %176, %cst_47 {dimension_numbers = #tpu.dot_dimension_numbers<[2], [2], [1], [1], [0, 0, 0, 1, 1, 1], [0], [0]>} : vector<1x9x8xbf16>, vector<1x9x8xbf16>, vector<1x9x9xf32> -> vector<1x9x9xf32>
    "tpu.trace_stop"() : () -> ()
    %cst_48 = arith.constant 0.353553385 : f32
    %178 = vector.broadcast %cst_48 : f32 to vector<1x9x9xf32>
    %179 = arith.mulf %177, %178 : vector<1x9x9xf32>
    %cst_49 = arith.constant dense<0xFF800000> : vector<1x9xf32>
    %180 = vector.multi_reduction <maximumf>, %179, %cst_49 [2] : vector<1x9x9xf32> to vector<1x9xf32>
    %181 = vector.shape_cast %180 : vector<1x9xf32> to vector<1x9x1xf32>
    %182 = vector.broadcast %181 : vector<1x9x1xf32> to vector<1x9x9xf32>
    %183 = arith.subf %179, %182 : vector<1x9x9xf32>
    %184 = math.exp %183 : vector<1x9x9xf32>
    %cst_50 = arith.constant dense<0.000000e+00> : vector<1x9xf32>
    %185 = vector.multi_reduction <add>, %184, %cst_50 [2] : vector<1x9x9xf32> to vector<1x9xf32>
    %186 = vector.shape_cast %185 : vector<1x9xf32> to vector<1x9x1xf32>
    %187 = tpu.reciprocal %186 {approx = true} : vector<1x9x1xf32> -> vector<1x9x1xf32>
    %188 = vector.broadcast %187 : vector<1x9x1xf32> to vector<1x9x9xf32>
    %189 = arith.mulf %184, %188 : vector<1x9x9xf32>
    %190 = arith.truncf %189 : vector<1x9x9xf32> to vector<1x9x9xbf16>
    %191 = arith.truncf %174 : vector<1x9x8xf32> to vector<1x9x8xbf16>
    "tpu.trace_start"() <{level = 10 : i32, message = "bnm,bmd->bnd"}> : () -> ()
    %cst_51 = arith.constant dense<0.000000e+00> : vector<1x9x8xf32>
    %192 = tpu.matmul %190, %191, %cst_51 {dimension_numbers = #tpu.dot_dimension_numbers<[2], [1], [1], [2], [0, 0, 0, 1, 1, 2], [0], [0]>} : vector<1x9x9xbf16>, vector<1x9x8xbf16>, vector<1x9x8xf32> -> vector<1x9x8xf32>
    "tpu.trace_stop"() : () -> ()
    %193 = vector.shape_cast %192 : vector<1x9x8xf32> to vector<9x8xf32>
    %194 = tpu.concatenate %118, %143, %168, %193 in 1 : vector<9x8xf32>, vector<9x8xf32>, vector<9x8xf32>, vector<9x8xf32> -> vector<9x32xf32>
    %c800 = arith.constant 800 : index
    %c0_52 = arith.constant 0 : index
    %195 = vector.load %arg3[%c800, %c0_52] : memref<1152x128xbf16, #tpu.memory_space<vmem>>, vector<32x32xbf16>
    %196 = arith.truncf %194 : vector<9x32xf32> to vector<9x32xbf16>
    %cst_53 = arith.constant dense<0.000000e+00> : vector<9x32xf32>
    %197 = tpu.matmul %196, %195, %cst_53 {dimension_numbers = #tpu.dot_dimension_numbers<[1], [0], [0], [1], [0, 0, 1, 1], [], []>} : vector<9x32xbf16>, vector<32x32xbf16>, vector<9x32xf32> -> vector<9x32xf32>
    %198 = arith.addf %66, %197 : vector<9x32xf32>
    %c7 = arith.constant 7 : index
    %c0_54 = arith.constant 0 : index
    %199 = vector.load %arg4[%c7, %c0_54] : memref<24x768xf32, #tpu.memory_space<vmem>>, vector<1x32xf32>
    %200 = vector.broadcast %199 : vector<1x32xf32> to vector<9x32xf32>
    %201 = arith.addf %198, %200 : vector<9x32xf32>
    %c8 = arith.constant 8 : index
    %c0_55 = arith.constant 0 : index
    %202 = vector.load %arg4[%c8, %c0_55] : memref<24x768xf32, #tpu.memory_space<vmem>>, vector<1x32xf32>
    %c9 = arith.constant 9 : index
    %c0_56 = arith.constant 0 : index
    %203 = vector.load %arg4[%c9, %c0_56] : memref<24x768xf32, #tpu.memory_space<vmem>>, vector<1x32xf32>
    %cst_57 = arith.constant dense<0.000000e+00> : vector<9xf32>
    %204 = vector.multi_reduction <add>, %201, %cst_57 [1] : vector<9x32xf32> to vector<9xf32>
    %205 = vector.shape_cast %204 : vector<9xf32> to vector<9x1xf32>
    %cst_58 = arith.constant 3.200000e+01 : f32
    %206 = vector.broadcast %cst_58 : f32 to vector<9x1xf32>
    %207 = arith.divf %205, %206 : vector<9x1xf32>
    %208 = vector.broadcast %207 : vector<9x1xf32> to vector<9x32xf32>
    %209 = arith.subf %201, %208 : vector<9x32xf32>
    %210 = arith.mulf %209, %209 : vector<9x32xf32>
    %cst_59 = arith.constant dense<0.000000e+00> : vector<9xf32>
    %211 = vector.multi_reduction <add>, %210, %cst_59 [1] : vector<9x32xf32> to vector<9xf32>
    %212 = vector.shape_cast %211 : vector<9xf32> to vector<9x1xf32>
    %cst_60 = arith.constant 3.200000e+01 : f32
    %213 = vector.broadcast %cst_60 : f32 to vector<9x1xf32>
    %214 = arith.divf %212, %213 : vector<9x1xf32>
    %215 = vector.broadcast %207 : vector<9x1xf32> to vector<9x32xf32>
    %216 = arith.subf %201, %215 : vector<9x32xf32>
    %cst_61 = arith.constant 9.99999974E-6 : f32
    %217 = vector.broadcast %cst_61 : f32 to vector<9x1xf32>
    %218 = arith.addf %214, %217 : vector<9x1xf32>
    %219 = math.rsqrt %218 : vector<9x1xf32>
    %220 = vector.broadcast %219 : vector<9x1xf32> to vector<9x32xf32>
    %221 = arith.mulf %216, %220 : vector<9x32xf32>
    %222 = vector.broadcast %202 : vector<1x32xf32> to vector<9x32xf32>
    %223 = arith.mulf %221, %222 : vector<9x32xf32>
    %224 = vector.broadcast %203 : vector<1x32xf32> to vector<9x32xf32>
    %225 = arith.addf %223, %224 : vector<9x32xf32>
    %c832 = arith.constant 832 : index
    %c0_62 = arith.constant 0 : index
    %226 = vector.load %arg3[%c832, %c0_62] : memref<1152x128xbf16, #tpu.memory_space<vmem>>, vector<32x64xbf16>
    %227 = arith.truncf %225 : vector<9x32xf32> to vector<9x32xbf16>
    %cst_63 = arith.constant dense<0.000000e+00> : vector<9x64xf32>
    %228 = tpu.matmul %227, %226, %cst_63 {dimension_numbers = #tpu.dot_dimension_numbers<[1], [0], [0], [1], [0, 0, 1, 1], [], []>} : vector<9x32xbf16>, vector<32x64xbf16>, vector<9x64xf32> -> vector<9x64xf32>
    %c10 = arith.constant 10 : index
    %c0_64 = arith.constant 0 : index
    %229 = vector.load %arg4[%c10, %c0_64] : memref<24x768xf32, #tpu.memory_space<vmem>>, vector<1x64xf32>
    %230 = vector.broadcast %229 : vector<1x64xf32> to vector<9x64xf32>
    %231 = arith.addf %228, %230 : vector<9x64xf32>
    %cst_65 = arith.constant 5.000000e-01 : f32
    %232 = vector.broadcast %cst_65 : f32 to vector<9x64xf32>
    %233 = arith.mulf %232, %231 : vector<9x64xf32>
    %cst_66 = arith.constant 0.707106769 : f32
    %234 = vector.broadcast %cst_66 : f32 to vector<9x64xf32>
    %235 = arith.mulf %231, %234 : vector<9x64xf32>
    %236 = math.absf %235 : vector<9x64xf32>
    %cst_67 = arith.constant 0.327591091 : f32
    %237 = vector.broadcast %cst_67 : f32 to vector<9x64xf32>
    %238 = arith.mulf %237, %236 : vector<9x64xf32>
    %cst_68 = arith.constant 1.000000e+00 : f32
    %239 = vector.broadcast %cst_68 : f32 to vector<9x64xf32>
    %240 = arith.addf %239, %238 : vector<9x64xf32>
    %cst_69 = arith.constant 1.000000e+00 : f32
    %241 = vector.broadcast %cst_69 : f32 to vector<9x64xf32>
    %242 = arith.divf %241, %240 : vector<9x64xf32>
    %cst_70 = arith.constant 1.06140542 : f32
    %243 = vector.broadcast %cst_70 : f32 to vector<9x64xf32>
    %244 = arith.mulf %243, %242 : vector<9x64xf32>
    %cst_71 = arith.constant -1.45315206 : f32
    %245 = vector.broadcast %cst_71 : f32 to vector<9x64xf32>
    %246 = arith.addf %244, %245 : vector<9x64xf32>
    %247 = arith.mulf %246, %242 : vector<9x64xf32>
    %cst_72 = arith.constant 1.42141378 : f32
    %248 = vector.broadcast %cst_72 : f32 to vector<9x64xf32>
    %249 = arith.addf %247, %248 : vector<9x64xf32>
    %250 = arith.mulf %249, %242 : vector<9x64xf32>
    %cst_73 = arith.constant -0.284496725 : f32
    %251 = vector.broadcast %cst_73 : f32 to vector<9x64xf32>
    %252 = arith.addf %250, %251 : vector<9x64xf32>
    %253 = arith.mulf %252, %242 : vector<9x64xf32>
    %cst_74 = arith.constant 0.254829586 : f32
    %254 = vector.broadcast %cst_74 : f32 to vector<9x64xf32>
    %255 = arith.addf %253, %254 : vector<9x64xf32>
    %256 = arith.mulf %255, %242 : vector<9x64xf32>
    %cst_75 = arith.constant 0.000000e+00 : f32
    %257 = vector.broadcast %cst_75 : f32 to vector<9x64xf32>
    %258 = arith.subf %257, %236 : vector<9x64xf32>
    %259 = arith.mulf %258, %236 : vector<9x64xf32>
    %260 = math.exp %259 : vector<9x64xf32>
    %261 = arith.mulf %256, %260 : vector<9x64xf32>
    %cst_76 = arith.constant 1.000000e+00 : f32
    %262 = vector.broadcast %cst_76 : f32 to vector<9x64xf32>
    %263 = arith.subf %262, %261 : vector<9x64xf32>
    %cst_77 = arith.constant 0.000000e+00 : f32
    %264 = vector.broadcast %cst_77 : f32 to vector<9x64xf32>
    %265 = arith.cmpf oge, %235, %264 : vector<9x64xf32>
    %cst_78 = arith.constant 0.000000e+00 : f32
    %266 = vector.broadcast %cst_78 : f32 to vector<9x64xf32>
    %267 = arith.subf %266, %263 : vector<9x64xf32>
    %268 = arith.select %265, %263, %267 : vector<9x64xi1>, vector<9x64xf32>
    %cst_79 = arith.constant 1.000000e+00 : f32
    %269 = vector.broadcast %cst_79 : f32 to vector<9x64xf32>
    %270 = arith.addf %269, %268 : vector<9x64xf32>
    %271 = arith.mulf %233, %270 : vector<9x64xf32>
    %c864 = arith.constant 864 : index
    %c0_80 = arith.constant 0 : index
    %272 = vector.load %arg3[%c864, %c0_80] : memref<1152x128xbf16, #tpu.memory_space<vmem>>, vector<64x32xbf16>
    %273 = arith.truncf %271 : vector<9x64xf32> to vector<9x64xbf16>
    %cst_81 = arith.constant dense<0.000000e+00> : vector<9x32xf32>
    %274 = tpu.matmul %273, %272, %cst_81 {dimension_numbers = #tpu.dot_dimension_numbers<[1], [0], [0], [1], [0, 0, 1, 1], [], []>} : vector<9x64xbf16>, vector<64x32xbf16>, vector<9x32xf32> -> vector<9x32xf32>
    %275 = arith.addf %201, %274 : vector<9x32xf32>
    %c11 = arith.constant 11 : index
    %c0_82 = arith.constant 0 : index
    %276 = vector.load %arg4[%c11, %c0_82] : memref<24x768xf32, #tpu.memory_space<vmem>>, vector<1x32xf32>
    %277 = vector.broadcast %276 : vector<1x32xf32> to vector<9x32xf32>
    %278 = arith.addf %275, %277 : vector<9x32xf32>
    %c12 = arith.constant 12 : index
    %c0_83 = arith.constant 0 : index
    %279 = vector.load %arg4[%c12, %c0_83] : memref<24x768xf32, #tpu.memory_space<vmem>>, vector<1x32xf32>
    %c13 = arith.constant 13 : index
    %c0_84 = arith.constant 0 : index
    %280 = vector.load %arg4[%c13, %c0_84] : memref<24x768xf32, #tpu.memory_space<vmem>>, vector<1x32xf32>
    %cst_85 = arith.constant dense<0.000000e+00> : vector<9xf32>
    %281 = vector.multi_reduction <add>, %278, %cst_85 [1] : vector<9x32xf32> to vector<9xf32>
    %282 = vector.shape_cast %281 : vector<9xf32> to vector<9x1xf32>
    %cst_86 = arith.constant 3.200000e+01 : f32
    %283 = vector.broadcast %cst_86 : f32 to vector<9x1xf32>
    %284 = arith.divf %282, %283 : vector<9x1xf32>
    %285 = vector.broadcast %284 : vector<9x1xf32> to vector<9x32xf32>
    %286 = arith.subf %278, %285 : vector<9x32xf32>
    %287 = arith.mulf %286, %286 : vector<9x32xf32>
    %cst_87 = arith.constant dense<0.000000e+00> : vector<9xf32>
    %288 = vector.multi_reduction <add>, %287, %cst_87 [1] : vector<9x32xf32> to vector<9xf32>
    %289 = vector.shape_cast %288 : vector<9xf32> to vector<9x1xf32>
    %cst_88 = arith.constant 3.200000e+01 : f32
    %290 = vector.broadcast %cst_88 : f32 to vector<9x1xf32>
    %291 = arith.divf %289, %290 : vector<9x1xf32>
    %292 = vector.broadcast %284 : vector<9x1xf32> to vector<9x32xf32>
    %293 = arith.subf %278, %292 : vector<9x32xf32>
    %cst_89 = arith.constant 9.99999974E-6 : f32
    %294 = vector.broadcast %cst_89 : f32 to vector<9x1xf32>
    %295 = arith.addf %291, %294 : vector<9x1xf32>
    %296 = math.rsqrt %295 : vector<9x1xf32>
    %297 = vector.broadcast %296 : vector<9x1xf32> to vector<9x32xf32>
    %298 = arith.mulf %293, %297 : vector<9x32xf32>
    %299 = vector.broadcast %279 : vector<1x32xf32> to vector<9x32xf32>
    %300 = arith.mulf %298, %299 : vector<9x32xf32>
    %301 = vector.broadcast %280 : vector<1x32xf32> to vector<9x32xf32>
    %302 = arith.addf %300, %301 : vector<9x32xf32>
    %c928 = arith.constant 928 : index
    %c0_90 = arith.constant 0 : index
    %303 = vector.load %arg3[%c928, %c0_90] : memref<1152x128xbf16, #tpu.memory_space<vmem>>, vector<32x96xbf16>
    %304 = arith.truncf %302 : vector<9x32xf32> to vector<9x32xbf16>
    %cst_91 = arith.constant dense<0.000000e+00> : vector<9x96xf32>
    %305 = tpu.matmul %304, %303, %cst_91 {dimension_numbers = #tpu.dot_dimension_numbers<[1], [0], [0], [1], [0, 0, 1, 1], [], []>} : vector<9x32xbf16>, vector<32x96xbf16>, vector<9x96xf32> -> vector<9x96xf32>
    %306 = vector.extract_strided_slice %305 {offsets = [0, 0], sizes = [9, 8], strides = [1, 1]} : vector<9x96xf32> to vector<9x8xf32>
    %307 = vector.shape_cast %306 : vector<9x8xf32> to vector<1x9x8xf32>
    %308 = vector.extract_strided_slice %305 {offsets = [0, 32], sizes = [9, 8], strides = [1, 1]} : vector<9x96xf32> to vector<9x8xf32>
    %309 = vector.shape_cast %308 : vector<9x8xf32> to vector<1x9x8xf32>
    %310 = vector.extract_strided_slice %305 {offsets = [0, 64], sizes = [9, 8], strides = [1, 1]} : vector<9x96xf32> to vector<9x8xf32>
    %311 = vector.shape_cast %310 : vector<9x8xf32> to vector<1x9x8xf32>
    %312 = arith.truncf %307 : vector<1x9x8xf32> to vector<1x9x8xbf16>
    %313 = arith.truncf %309 : vector<1x9x8xf32> to vector<1x9x8xbf16>
    "tpu.trace_start"() <{level = 10 : i32, message = "bnd,bmd->bnm"}> : () -> ()
    %cst_92 = arith.constant dense<0.000000e+00> : vector<1x9x9xf32>
    %314 = tpu.matmul %312, %313, %cst_92 {dimension_numbers = #tpu.dot_dimension_numbers<[2], [2], [1], [1], [0, 0, 0, 1, 1, 1], [0], [0]>} : vector<1x9x8xbf16>, vector<1x9x8xbf16>, vector<1x9x9xf32> -> vector<1x9x9xf32>
    "tpu.trace_stop"() : () -> ()
    %cst_93 = arith.constant 0.353553385 : f32
    %315 = vector.broadcast %cst_93 : f32 to vector<1x9x9xf32>
    %316 = arith.mulf %314, %315 : vector<1x9x9xf32>
    %cst_94 = arith.constant dense<0xFF800000> : vector<1x9xf32>
    %317 = vector.multi_reduction <maximumf>, %316, %cst_94 [2] : vector<1x9x9xf32> to vector<1x9xf32>
    %318 = vector.shape_cast %317 : vector<1x9xf32> to vector<1x9x1xf32>
    %319 = vector.broadcast %318 : vector<1x9x1xf32> to vector<1x9x9xf32>
    %320 = arith.subf %316, %319 : vector<1x9x9xf32>
    %321 = math.exp %320 : vector<1x9x9xf32>
    %cst_95 = arith.constant dense<0.000000e+00> : vector<1x9xf32>
    %322 = vector.multi_reduction <add>, %321, %cst_95 [2] : vector<1x9x9xf32> to vector<1x9xf32>
    %323 = vector.shape_cast %322 : vector<1x9xf32> to vector<1x9x1xf32>
    %324 = tpu.reciprocal %323 {approx = true} : vector<1x9x1xf32> -> vector<1x9x1xf32>
    %325 = vector.broadcast %324 : vector<1x9x1xf32> to vector<1x9x9xf32>
    %326 = arith.mulf %321, %325 : vector<1x9x9xf32>
    %327 = arith.truncf %326 : vector<1x9x9xf32> to vector<1x9x9xbf16>
    %328 = arith.truncf %311 : vector<1x9x8xf32> to vector<1x9x8xbf16>
    "tpu.trace_start"() <{level = 10 : i32, message = "bnm,bmd->bnd"}> : () -> ()
    %cst_96 = arith.constant dense<0.000000e+00> : vector<1x9x8xf32>
    %329 = tpu.matmul %327, %328, %cst_96 {dimension_numbers = #tpu.dot_dimension_numbers<[2], [1], [1], [2], [0, 0, 0, 1, 1, 2], [0], [0]>} : vector<1x9x9xbf16>, vector<1x9x8xbf16>, vector<1x9x8xf32> -> vector<1x9x8xf32>
    "tpu.trace_stop"() : () -> ()
    %330 = vector.shape_cast %329 : vector<1x9x8xf32> to vector<9x8xf32>
    %331 = vector.extract_strided_slice %305 {offsets = [0, 8], sizes = [9, 8], strides = [1, 1]} : vector<9x96xf32> to vector<9x8xf32>
    %332 = vector.shape_cast %331 : vector<9x8xf32> to vector<1x9x8xf32>
    %333 = vector.extract_strided_slice %305 {offsets = [0, 40], sizes = [9, 8], strides = [1, 1]} : vector<9x96xf32> to vector<9x8xf32>
    %334 = vector.shape_cast %333 : vector<9x8xf32> to vector<1x9x8xf32>
    %335 = vector.extract_strided_slice %305 {offsets = [0, 72], sizes = [9, 8], strides = [1, 1]} : vector<9x96xf32> to vector<9x8xf32>
    %336 = vector.shape_cast %335 : vector<9x8xf32> to vector<1x9x8xf32>
    %337 = arith.truncf %332 : vector<1x9x8xf32> to vector<1x9x8xbf16>
    %338 = arith.truncf %334 : vector<1x9x8xf32> to vector<1x9x8xbf16>
    "tpu.trace_start"() <{level = 10 : i32, message = "bnd,bmd->bnm"}> : () -> ()
    %cst_97 = arith.constant dense<0.000000e+00> : vector<1x9x9xf32>
    %339 = tpu.matmul %337, %338, %cst_97 {dimension_numbers = #tpu.dot_dimension_numbers<[2], [2], [1], [1], [0, 0, 0, 1, 1, 1], [0], [0]>} : vector<1x9x8xbf16>, vector<1x9x8xbf16>, vector<1x9x9xf32> -> vector<1x9x9xf32>
    "tpu.trace_stop"() : () -> ()
    %cst_98 = arith.constant 0.353553385 : f32
    %340 = vector.broadcast %cst_98 : f32 to vector<1x9x9xf32>
    %341 = arith.mulf %339, %340 : vector<1x9x9xf32>
    %cst_99 = arith.constant dense<0xFF800000> : vector<1x9xf32>
    %342 = vector.multi_reduction <maximumf>, %341, %cst_99 [2] : vector<1x9x9xf32> to vector<1x9xf32>
    %343 = vector.shape_cast %342 : vector<1x9xf32> to vector<1x9x1xf32>
    %344 = vector.broadcast %343 : vector<1x9x1xf32> to vector<1x9x9xf32>
    %345 = arith.subf %341, %344 : vector<1x9x9xf32>
    %346 = math.exp %345 : vector<1x9x9xf32>
    %cst_100 = arith.constant dense<0.000000e+00> : vector<1x9xf32>
    %347 = vector.multi_reduction <add>, %346, %cst_100 [2] : vector<1x9x9xf32> to vector<1x9xf32>
    %348 = vector.shape_cast %347 : vector<1x9xf32> to vector<1x9x1xf32>
    %349 = tpu.reciprocal %348 {approx = true} : vector<1x9x1xf32> -> vector<1x9x1xf32>
    %350 = vector.broadcast %349 : vector<1x9x1xf32> to vector<1x9x9xf32>
    %351 = arith.mulf %346, %350 : vector<1x9x9xf32>
    %352 = arith.truncf %351 : vector<1x9x9xf32> to vector<1x9x9xbf16>
    %353 = arith.truncf %336 : vector<1x9x8xf32> to vector<1x9x8xbf16>
    "tpu.trace_start"() <{level = 10 : i32, message = "bnm,bmd->bnd"}> : () -> ()
    %cst_101 = arith.constant dense<0.000000e+00> : vector<1x9x8xf32>
    %354 = tpu.matmul %352, %353, %cst_101 {dimension_numbers = #tpu.dot_dimension_numbers<[2], [1], [1], [2], [0, 0, 0, 1, 1, 2], [0], [0]>} : vector<1x9x9xbf16>, vector<1x9x8xbf16>, vector<1x9x8xf32> -> vector<1x9x8xf32>
    "tpu.trace_stop"() : () -> ()
    %355 = vector.shape_cast %354 : vector<1x9x8xf32> to vector<9x8xf32>
    %356 = vector.extract_strided_slice %305 {offsets = [0, 16], sizes = [9, 8], strides = [1, 1]} : vector<9x96xf32> to vector<9x8xf32>
    %357 = vector.shape_cast %356 : vector<9x8xf32> to vector<1x9x8xf32>
    %358 = vector.extract_strided_slice %305 {offsets = [0, 48], sizes = [9, 8], strides = [1, 1]} : vector<9x96xf32> to vector<9x8xf32>
    %359 = vector.shape_cast %358 : vector<9x8xf32> to vector<1x9x8xf32>
    %360 = vector.extract_strided_slice %305 {offsets = [0, 80], sizes = [9, 8], strides = [1, 1]} : vector<9x96xf32> to vector<9x8xf32>
    %361 = vector.shape_cast %360 : vector<9x8xf32> to vector<1x9x8xf32>
    %362 = arith.truncf %357 : vector<1x9x8xf32> to vector<1x9x8xbf16>
    %363 = arith.truncf %359 : vector<1x9x8xf32> to vector<1x9x8xbf16>
    "tpu.trace_start"() <{level = 10 : i32, message = "bnd,bmd->bnm"}> : () -> ()
    %cst_102 = arith.constant dense<0.000000e+00> : vector<1x9x9xf32>
    %364 = tpu.matmul %362, %363, %cst_102 {dimension_numbers = #tpu.dot_dimension_numbers<[2], [2], [1], [1], [0, 0, 0, 1, 1, 1], [0], [0]>} : vector<1x9x8xbf16>, vector<1x9x8xbf16>, vector<1x9x9xf32> -> vector<1x9x9xf32>
    "tpu.trace_stop"() : () -> ()
    %cst_103 = arith.constant 0.353553385 : f32
    %365 = vector.broadcast %cst_103 : f32 to vector<1x9x9xf32>
    %366 = arith.mulf %364, %365 : vector<1x9x9xf32>
    %cst_104 = arith.constant dense<0xFF800000> : vector<1x9xf32>
    %367 = vector.multi_reduction <maximumf>, %366, %cst_104 [2] : vector<1x9x9xf32> to vector<1x9xf32>
    %368 = vector.shape_cast %367 : vector<1x9xf32> to vector<1x9x1xf32>
    %369 = vector.broadcast %368 : vector<1x9x1xf32> to vector<1x9x9xf32>
    %370 = arith.subf %366, %369 : vector<1x9x9xf32>
    %371 = math.exp %370 : vector<1x9x9xf32>
    %cst_105 = arith.constant dense<0.000000e+00> : vector<1x9xf32>
    %372 = vector.multi_reduction <add>, %371, %cst_105 [2] : vector<1x9x9xf32> to vector<1x9xf32>
    %373 = vector.shape_cast %372 : vector<1x9xf32> to vector<1x9x1xf32>
    %374 = tpu.reciprocal %373 {approx = true} : vector<1x9x1xf32> -> vector<1x9x1xf32>
    %375 = vector.broadcast %374 : vector<1x9x1xf32> to vector<1x9x9xf32>
    %376 = arith.mulf %371, %375 : vector<1x9x9xf32>
    %377 = arith.truncf %376 : vector<1x9x9xf32> to vector<1x9x9xbf16>
    %378 = arith.truncf %361 : vector<1x9x8xf32> to vector<1x9x8xbf16>
    "tpu.trace_start"() <{level = 10 : i32, message = "bnm,bmd->bnd"}> : () -> ()
    %cst_106 = arith.constant dense<0.000000e+00> : vector<1x9x8xf32>
    %379 = tpu.matmul %377, %378, %cst_106 {dimension_numbers = #tpu.dot_dimension_numbers<[2], [1], [1], [2], [0, 0, 0, 1, 1, 2], [0], [0]>} : vector<1x9x9xbf16>, vector<1x9x8xbf16>, vector<1x9x8xf32> -> vector<1x9x8xf32>
    "tpu.trace_stop"() : () -> ()
    %380 = vector.shape_cast %379 : vector<1x9x8xf32> to vector<9x8xf32>
    %381 = vector.extract_strided_slice %305 {offsets = [0, 24], sizes = [9, 8], strides = [1, 1]} : vector<9x96xf32> to vector<9x8xf32>
    %382 = vector.shape_cast %381 : vector<9x8xf32> to vector<1x9x8xf32>
    %383 = vector.extract_strided_slice %305 {offsets = [0, 56], sizes = [9, 8], strides = [1, 1]} : vector<9x96xf32> to vector<9x8xf32>
    %384 = vector.shape_cast %383 : vector<9x8xf32> to vector<1x9x8xf32>
    %385 = vector.extract_strided_slice %305 {offsets = [0, 88], sizes = [9, 8], strides = [1, 1]} : vector<9x96xf32> to vector<9x8xf32>
    %386 = vector.shape_cast %385 : vector<9x8xf32> to vector<1x9x8xf32>
    %387 = arith.truncf %382 : vector<1x9x8xf32> to vector<1x9x8xbf16>
    %388 = arith.truncf %384 : vector<1x9x8xf32> to vector<1x9x8xbf16>
    "tpu.trace_start"() <{level = 10 : i32, message = "bnd,bmd->bnm"}> : () -> ()
    %cst_107 = arith.constant dense<0.000000e+00> : vector<1x9x9xf32>
    %389 = tpu.matmul %387, %388, %cst_107 {dimension_numbers = #tpu.dot_dimension_numbers<[2], [2], [1], [1], [0, 0, 0, 1, 1, 1], [0], [0]>} : vector<1x9x8xbf16>, vector<1x9x8xbf16>, vector<1x9x9xf32> -> vector<1x9x9xf32>
    "tpu.trace_stop"() : () -> ()
    %cst_108 = arith.constant 0.353553385 : f32
    %390 = vector.broadcast %cst_108 : f32 to vector<1x9x9xf32>
    %391 = arith.mulf %389, %390 : vector<1x9x9xf32>
    %cst_109 = arith.constant dense<0xFF800000> : vector<1x9xf32>
    %392 = vector.multi_reduction <maximumf>, %391, %cst_109 [2] : vector<1x9x9xf32> to vector<1x9xf32>
    %393 = vector.shape_cast %392 : vector<1x9xf32> to vector<1x9x1xf32>
    %394 = vector.broadcast %393 : vector<1x9x1xf32> to vector<1x9x9xf32>
    %395 = arith.subf %391, %394 : vector<1x9x9xf32>
    %396 = math.exp %395 : vector<1x9x9xf32>
    %cst_110 = arith.constant dense<0.000000e+00> : vector<1x9xf32>
    %397 = vector.multi_reduction <add>, %396, %cst_110 [2] : vector<1x9x9xf32> to vector<1x9xf32>
    %398 = vector.shape_cast %397 : vector<1x9xf32> to vector<1x9x1xf32>
    %399 = tpu.reciprocal %398 {approx = true} : vector<1x9x1xf32> -> vector<1x9x1xf32>
    %400 = vector.broadcast %399 : vector<1x9x1xf32> to vector<1x9x9xf32>
    %401 = arith.mulf %396, %400 : vector<1x9x9xf32>
    %402 = arith.truncf %401 : vector<1x9x9xf32> to vector<1x9x9xbf16>
    %403 = arith.truncf %386 : vector<1x9x8xf32> to vector<1x9x8xbf16>
    "tpu.trace_start"() <{level = 10 : i32, message = "bnm,bmd->bnd"}> : () -> ()
    %cst_111 = arith.constant dense<0.000000e+00> : vector<1x9x8xf32>
    %404 = tpu.matmul %402, %403, %cst_111 {dimension_numbers = #tpu.dot_dimension_numbers<[2], [1], [1], [2], [0, 0, 0, 1, 1, 2], [0], [0]>} : vector<1x9x9xbf16>, vector<1x9x8xbf16>, vector<1x9x8xf32> -> vector<1x9x8xf32>
    "tpu.trace_stop"() : () -> ()
    %405 = vector.shape_cast %404 : vector<1x9x8xf32> to vector<9x8xf32>
    %406 = tpu.concatenate %330, %355, %380, %405 in 1 : vector<9x8xf32>, vector<9x8xf32>, vector<9x8xf32>, vector<9x8xf32> -> vector<9x32xf32>
    %c960 = arith.constant 960 : index
    %c0_112 = arith.constant 0 : index
    %407 = vector.load %arg3[%c960, %c0_112] : memref<1152x128xbf16, #tpu.memory_space<vmem>>, vector<32x32xbf16>
    %408 = arith.truncf %406 : vector<9x32xf32> to vector<9x32xbf16>
    %cst_113 = arith.constant dense<0.000000e+00> : vector<9x32xf32>
    %409 = tpu.matmul %408, %407, %cst_113 {dimension_numbers = #tpu.dot_dimension_numbers<[1], [0], [0], [1], [0, 0, 1, 1], [], []>} : vector<9x32xbf16>, vector<32x32xbf16>, vector<9x32xf32> -> vector<9x32xf32>
    %410 = arith.addf %278, %409 : vector<9x32xf32>
    %c14 = arith.constant 14 : index
    %c0_114 = arith.constant 0 : index
    %411 = vector.load %arg4[%c14, %c0_114] : memref<24x768xf32, #tpu.memory_space<vmem>>, vector<1x32xf32>
    %412 = vector.broadcast %411 : vector<1x32xf32> to vector<9x32xf32>
    %413 = arith.addf %410, %412 : vector<9x32xf32>
    %c15 = arith.constant 15 : index
    %c0_115 = arith.constant 0 : index
    %414 = vector.load %arg4[%c15, %c0_115] : memref<24x768xf32, #tpu.memory_space<vmem>>, vector<1x32xf32>
    %c16 = arith.constant 16 : index
    %c0_116 = arith.constant 0 : index
    %415 = vector.load %arg4[%c16, %c0_116] : memref<24x768xf32, #tpu.memory_space<vmem>>, vector<1x32xf32>
    %cst_117 = arith.constant dense<0.000000e+00> : vector<9xf32>
    %416 = vector.multi_reduction <add>, %413, %cst_117 [1] : vector<9x32xf32> to vector<9xf32>
    %417 = vector.shape_cast %416 : vector<9xf32> to vector<9x1xf32>
    %cst_118 = arith.constant 3.200000e+01 : f32
    %418 = vector.broadcast %cst_118 : f32 to vector<9x1xf32>
    %419 = arith.divf %417, %418 : vector<9x1xf32>
    %420 = vector.broadcast %419 : vector<9x1xf32> to vector<9x32xf32>
    %421 = arith.subf %413, %420 : vector<9x32xf32>
    %422 = arith.mulf %421, %421 : vector<9x32xf32>
    %cst_119 = arith.constant dense<0.000000e+00> : vector<9xf32>
    %423 = vector.multi_reduction <add>, %422, %cst_119 [1] : vector<9x32xf32> to vector<9xf32>
    %424 = vector.shape_cast %423 : vector<9xf32> to vector<9x1xf32>
    %cst_120 = arith.constant 3.200000e+01 : f32
    %425 = vector.broadcast %cst_120 : f32 to vector<9x1xf32>
    %426 = arith.divf %424, %425 : vector<9x1xf32>
    %427 = vector.broadcast %419 : vector<9x1xf32> to vector<9x32xf32>
    %428 = arith.subf %413, %427 : vector<9x32xf32>
    %cst_121 = arith.constant 9.99999974E-6 : f32
    %429 = vector.broadcast %cst_121 : f32 to vector<9x1xf32>
    %430 = arith.addf %426, %429 : vector<9x1xf32>
    %431 = math.rsqrt %430 : vector<9x1xf32>
    %432 = vector.broadcast %431 : vector<9x1xf32> to vector<9x32xf32>
    %433 = arith.mulf %428, %432 : vector<9x32xf32>
    %434 = vector.broadcast %414 : vector<1x32xf32> to vector<9x32xf32>
    %435 = arith.mulf %433, %434 : vector<9x32xf32>
    %436 = vector.broadcast %415 : vector<1x32xf32> to vector<9x32xf32>
    %437 = arith.addf %435, %436 : vector<9x32xf32>
    %c992 = arith.constant 992 : index
    %c0_122 = arith.constant 0 : index
    %438 = vector.load %arg3[%c992, %c0_122] : memref<1152x128xbf16, #tpu.memory_space<vmem>>, vector<32x64xbf16>
    %439 = arith.truncf %437 : vector<9x32xf32> to vector<9x32xbf16>
    %cst_123 = arith.constant dense<0.000000e+00> : vector<9x64xf32>
    %440 = tpu.matmul %439, %438, %cst_123 {dimension_numbers = #tpu.dot_dimension_numbers<[1], [0], [0], [1], [0, 0, 1, 1], [], []>} : vector<9x32xbf16>, vector<32x64xbf16>, vector<9x64xf32> -> vector<9x64xf32>
    %c17 = arith.constant 17 : index
    %c0_124 = arith.constant 0 : index
    %441 = vector.load %arg4[%c17, %c0_124] : memref<24x768xf32, #tpu.memory_space<vmem>>, vector<1x64xf32>
    %442 = vector.broadcast %441 : vector<1x64xf32> to vector<9x64xf32>
    %443 = arith.addf %440, %442 : vector<9x64xf32>
    %cst_125 = arith.constant 5.000000e-01 : f32
    %444 = vector.broadcast %cst_125 : f32 to vector<9x64xf32>
    %445 = arith.mulf %444, %443 : vector<9x64xf32>
    %cst_126 = arith.constant 0.707106769 : f32
    %446 = vector.broadcast %cst_126 : f32 to vector<9x64xf32>
    %447 = arith.mulf %443, %446 : vector<9x64xf32>
    %448 = math.absf %447 : vector<9x64xf32>
    %cst_127 = arith.constant 0.327591091 : f32
    %449 = vector.broadcast %cst_127 : f32 to vector<9x64xf32>
    %450 = arith.mulf %449, %448 : vector<9x64xf32>
    %cst_128 = arith.constant 1.000000e+00 : f32
    %451 = vector.broadcast %cst_128 : f32 to vector<9x64xf32>
    %452 = arith.addf %451, %450 : vector<9x64xf32>
    %cst_129 = arith.constant 1.000000e+00 : f32
    %453 = vector.broadcast %cst_129 : f32 to vector<9x64xf32>
    %454 = arith.divf %453, %452 : vector<9x64xf32>
    %cst_130 = arith.constant 1.06140542 : f32
    %455 = vector.broadcast %cst_130 : f32 to vector<9x64xf32>
    %456 = arith.mulf %455, %454 : vector<9x64xf32>
    %cst_131 = arith.constant -1.45315206 : f32
    %457 = vector.broadcast %cst_131 : f32 to vector<9x64xf32>
    %458 = arith.addf %456, %457 : vector<9x64xf32>
    %459 = arith.mulf %458, %454 : vector<9x64xf32>
    %cst_132 = arith.constant 1.42141378 : f32
    %460 = vector.broadcast %cst_132 : f32 to vector<9x64xf32>
    %461 = arith.addf %459, %460 : vector<9x64xf32>
    %462 = arith.mulf %461, %454 : vector<9x64xf32>
    %cst_133 = arith.constant -0.284496725 : f32
    %463 = vector.broadcast %cst_133 : f32 to vector<9x64xf32>
    %464 = arith.addf %462, %463 : vector<9x64xf32>
    %465 = arith.mulf %464, %454 : vector<9x64xf32>
    %cst_134 = arith.constant 0.254829586 : f32
    %466 = vector.broadcast %cst_134 : f32 to vector<9x64xf32>
    %467 = arith.addf %465, %466 : vector<9x64xf32>
    %468 = arith.mulf %467, %454 : vector<9x64xf32>
    %cst_135 = arith.constant 0.000000e+00 : f32
    %469 = vector.broadcast %cst_135 : f32 to vector<9x64xf32>
    %470 = arith.subf %469, %448 : vector<9x64xf32>
    %471 = arith.mulf %470, %448 : vector<9x64xf32>
    %472 = math.exp %471 : vector<9x64xf32>
    %473 = arith.mulf %468, %472 : vector<9x64xf32>
    %cst_136 = arith.constant 1.000000e+00 : f32
    %474 = vector.broadcast %cst_136 : f32 to vector<9x64xf32>
    %475 = arith.subf %474, %473 : vector<9x64xf32>
    %cst_137 = arith.constant 0.000000e+00 : f32
    %476 = vector.broadcast %cst_137 : f32 to vector<9x64xf32>
    %477 = arith.cmpf oge, %447, %476 : vector<9x64xf32>
    %cst_138 = arith.constant 0.000000e+00 : f32
    %478 = vector.broadcast %cst_138 : f32 to vector<9x64xf32>
    %479 = arith.subf %478, %475 : vector<9x64xf32>
    %480 = arith.select %477, %475, %479 : vector<9x64xi1>, vector<9x64xf32>
    %cst_139 = arith.constant 1.000000e+00 : f32
    %481 = vector.broadcast %cst_139 : f32 to vector<9x64xf32>
    %482 = arith.addf %481, %480 : vector<9x64xf32>
    %483 = arith.mulf %445, %482 : vector<9x64xf32>
    %c1024 = arith.constant 1024 : index
    %c0_140 = arith.constant 0 : index
    %484 = vector.load %arg3[%c1024, %c0_140] : memref<1152x128xbf16, #tpu.memory_space<vmem>>, vector<64x32xbf16>
    %485 = arith.truncf %483 : vector<9x64xf32> to vector<9x64xbf16>
    %cst_141 = arith.constant dense<0.000000e+00> : vector<9x32xf32>
    %486 = tpu.matmul %485, %484, %cst_141 {dimension_numbers = #tpu.dot_dimension_numbers<[1], [0], [0], [1], [0, 0, 1, 1], [], []>} : vector<9x64xbf16>, vector<64x32xbf16>, vector<9x32xf32> -> vector<9x32xf32>
    %487 = arith.addf %413, %486 : vector<9x32xf32>
    %c18 = arith.constant 18 : index
    %c0_142 = arith.constant 0 : index
    %488 = vector.load %arg4[%c18, %c0_142] : memref<24x768xf32, #tpu.memory_space<vmem>>, vector<1x32xf32>
    %489 = vector.broadcast %488 : vector<1x32xf32> to vector<9x32xf32>
    %490 = arith.addf %487, %489 : vector<9x32xf32>
    %491 = vector.shape_cast %490 : vector<9x32xf32> to vector<1x9x32xf32>
    %492 = vector.extract_strided_slice %491 {offsets = [0, 0, 0], sizes = [1, 1, 32], strides = [1, 1, 1]} : vector<1x9x32xf32> to vector<1x1x32xf32>
    %493 = vector.shape_cast %492 : vector<1x1x32xf32> to vector<1x32xf32>
    %c1088 = arith.constant 1088 : index
    %c0_143 = arith.constant 0 : index
    %494 = vector.load %arg3[%c1088, %c0_143] : memref<1152x128xbf16, #tpu.memory_space<vmem>>, vector<32x32xbf16>
    %495 = arith.truncf %493 : vector<1x32xf32> to vector<1x32xbf16>
    %cst_144 = arith.constant dense<0.000000e+00> : vector<1x32xf32>
    %496 = tpu.matmul %495, %494, %cst_144 {dimension_numbers = #tpu.dot_dimension_numbers<[1], [0], [0], [1], [0, 0, 1, 1], [], []>} : vector<1x32xbf16>, vector<32x32xbf16>, vector<1x32xf32> -> vector<1x32xf32>
    %c19 = arith.constant 19 : index
    %c0_145 = arith.constant 0 : index
    %497 = vector.load %arg4[%c19, %c0_145] : memref<24x768xf32, #tpu.memory_space<vmem>>, vector<1x32xf32>
    %c20 = arith.constant 20 : index
    %c0_146 = arith.constant 0 : index
    %498 = vector.load %arg4[%c20, %c0_146] : memref<24x768xf32, #tpu.memory_space<vmem>>, vector<1x32xf32>
    %cst_147 = arith.constant dense<0.000000e+00> : vector<1xf32>
    %499 = vector.multi_reduction <add>, %496, %cst_147 [1] : vector<1x32xf32> to vector<1xf32>
    %500 = vector.shape_cast %499 : vector<1xf32> to vector<1x1xf32>
    %cst_148 = arith.constant 3.200000e+01 : f32
    %501 = vector.broadcast %cst_148 : f32 to vector<1x1xf32>
    %502 = arith.divf %500, %501 : vector<1x1xf32>
    %503 = vector.broadcast %502 : vector<1x1xf32> to vector<1x32xf32>
    %504 = arith.subf %496, %503 : vector<1x32xf32>
    %505 = arith.mulf %504, %504 : vector<1x32xf32>
    %cst_149 = arith.constant dense<0.000000e+00> : vector<1xf32>
    %506 = vector.multi_reduction <add>, %505, %cst_149 [1] : vector<1x32xf32> to vector<1xf32>
    %507 = vector.shape_cast %506 : vector<1xf32> to vector<1x1xf32>
    %cst_150 = arith.constant 3.200000e+01 : f32
    %508 = vector.broadcast %cst_150 : f32 to vector<1x1xf32>
    %509 = arith.divf %507, %508 : vector<1x1xf32>
    %510 = vector.broadcast %502 : vector<1x1xf32> to vector<1x32xf32>
    %511 = arith.subf %496, %510 : vector<1x32xf32>
    %cst_151 = arith.constant 9.99999974E-6 : f32
    %512 = vector.broadcast %cst_151 : f32 to vector<1x1xf32>
    %513 = arith.addf %509, %512 : vector<1x1xf32>
    %514 = math.rsqrt %513 : vector<1x1xf32>
    %515 = vector.broadcast %514 : vector<1x1xf32> to vector<1x32xf32>
    %516 = arith.mulf %511, %515 : vector<1x32xf32>
    %517 = arith.mulf %516, %497 : vector<1x32xf32>
    %518 = arith.addf %517, %498 : vector<1x32xf32>
    %c1120 = arith.constant 1120 : index
    %c0_152 = arith.constant 0 : index
    %519 = vector.load %arg3[%c1120, %c0_152] : memref<1152x128xbf16, #tpu.memory_space<vmem>>, vector<32x128xbf16>
    %520 = arith.truncf %518 : vector<1x32xf32> to vector<1x32xbf16>
    %cst_153 = arith.constant dense<0.000000e+00> : vector<1x128xf32>
    %521 = tpu.matmul %520, %519, %cst_153 {dimension_numbers = #tpu.dot_dimension_numbers<[1], [0], [0], [1], [0, 0, 1, 1], [], []>} : vector<1x32xbf16>, vector<32x128xbf16>, vector<1x128xf32> -> vector<1x128xf32>
    %c21 = arith.constant 21 : index
    %c0_154 = arith.constant 0 : index
    %522 = vector.load %arg4[%c21, %c0_154] : memref<24x768xf32, #tpu.memory_space<vmem>>, vector<1x128xf32>
    %523 = arith.addf %521, %522 : vector<1x128xf32>
    %c0_155 = arith.constant 0 : index
    %c0_156 = arith.constant 0 : index
    %c0_157 = arith.constant 0 : index
    %524 = vector.load %arg5[%c0_155, %c0_156, %c0_157] : memref<1x1x128xf32, #tpu.memory_space<vmem>>, vector<1x1x128xf32>
    %525 = vector.shape_cast %524 : vector<1x1x128xf32> to vector<1x128xf32>
    %526 = vector.shape_cast %523 : vector<1x128xf32> to vector<1x1x128xf32>
    tpu.vector_store %arg5[%c0_155, %c0_156, %c0_157], %526 {strides = array<i32>} : memref<1x1x128xf32, #tpu.memory_space<vmem>>, vector<1x1x128xf32>,
    return
  }
  func.func @transform_0(%arg0: i32) -> (i32, i32, i32) {
    %c0_i32 = arith.constant 0 : i32
    %c0_i32_0 = arith.constant 0 : i32
    %c0_i32_1 = arith.constant 0 : i32
    return %arg0, %c0_i32, %c0_i32_0 : i32, i32, i32
  }
  func.func @transform_1(%arg0: i32) -> (i32, i32) {
    %c0_i32 = arith.constant 0 : i32
    %c0_i32_0 = arith.constant 0 : i32
    %c0_i32_1 = arith.constant 0 : i32
    return %c0_i32, %c0_i32_0 : i32, i32
  }
  func.func @transform_2(%arg0: i32) -> (i32, i32) {
    %c0_i32 = arith.constant 0 : i32
    %c0_i32_0 = arith.constant 0 : i32
    %c0_i32_1 = arith.constant 0 : i32
    return %c0_i32, %c0_i32_0 : i32, i32
  }
  func.func @transform_3(%arg0: i32) -> (i32, i32) {
    %c0_i32 = arith.constant 0 : i32
    %c0_i32_0 = arith.constant 0 : i32
    %c0_i32_1 = arith.constant 0 : i32
    return %c0_i32, %c0_i32_0 : i32, i32
  }
  func.func @transform_4(%arg0: i32) -> (i32, i32, i32) {
    %c0_i32 = arith.constant 0 : i32
    %c0_i32_0 = arith.constant 0 : i32
    %c0_i32_1 = arith.constant 0 : i32
    return %arg0, %c0_i32, %c0_i32_0 : i32, i32, i32
  }
}

</mosaic_0001>

<llo_original>
// kernel: _lambda_.1
$region0: #{_lambda_.1}
  #allocation0 [shape = 'u32[]', space=smem, size = 0x4, offset = 0x4, fixed_abs, tag = 'smem constant byte address 0x4 - core index']
  #allocation1 [shape = 'u32[144,128]{1,0:T(1,128)}', space=vmem, size = 0x12000, scoped, tag = 'internal scratch']
  %s0 = inlined_call_operand.vmem [shape: bf16[2,9,768], index: 0, kind: input, shape index: {}]
  %s1 = inlined_call_operand.vmem [shape: f32[9,32], index: 1, kind: input, shape index: {}]
  %s2 = inlined_call_operand.vmem [shape: bf16[1152,128], index: 2, kind: input, shape index: {}]
  %s3 = inlined_call_operand.vmem [shape: f32[24,768], index: 3, kind: input, shape index: {}]
  %s4 = inlined_call_operand.hbm [shape: f32[2,1,128], index: 4, kind: output, shape index: {}]
  %s5 = sld [smem:[#allocation0]]
  $region49: #{_lambda_.1} parent=0
    _
  %s7 = ssub.s32 1, %s5
  %s8 = scalar_select 0, %s7, %s5
  $region1: #{_lambda_.1} parent=0
    #allocation2 [shape = 'u8[1024]{0}', space=vmem, size = 0x400, scoped, tag = 'output window, operand 0']
    #allocation3 [shape = 's32[2]{0}', space=sflag, size = 0x8, scoped, tag = 'scoped memory for _lambda_.1']
    %9 = vsyncpa [#allocation3], 0
    %s10 = scalar_lea.sflag [#allocation3], 1
    %11 = vsyncpa %s10, 0
    loop: start=0, step=1, limit=4
    $region2: #{_lambda_.1} parent=1 // loop_pre_header
      _
    $region3: #{_lambda_.1} parent=1 // loop_header
      %s13 = sphi 0, %s17
      %p14 = scmp.ge.s32.totalorder %s13, 4
      %s23 = sphi 0, %s25
      %s26 = sphi 0, %s23
      %s27 = sphi 0, %s26
      %s43 = sphi 0, %s27
      %s47 = sphi 0, %s47
      %s49 = sphi 0, %s47
      %s50 = sphi 0, %s49
      %s64 = sphi 0, %s50
      %s68 = sphi 0, %s68
      %s70 = sphi 0, %s68
      %s71 = sphi 0, %s70
      %s85 = sphi 0, %s71
      %s89 = sphi 0, %s89
      %s91 = sphi 0, %s89
      %s92 = sphi 0, %s91
      %s106 = sphi 0, %s92
      %s112 = sphi 0, %s114
      %s115 = sphi 0, %s112
      %s116 = sphi 0, %s115
      %s132 = sphi 0, %s116
    $region4: #{_lambda_.1} parent=1 // loop_header_branch
      %16 = sbr.rel (%p14) target = $region8
    $region5: #{_lambda_.1} parent=1 // loop_body
      %s18 = ssub.s32 %s13, 1
      %s19 = ssub.s32 %s13, 2
      %s20 = sadd.s32 %s13, 1
      %s21 = ssub.s32 %s13, %s20
      %p22 = scmp.eq.s32.totalorder %s21, 0
      %s24 = sadd.s32 %s23, 1
      %s25 = scalar_select %p22, %s23, %s24
      %p28 = pneg %p22
      %p29 = scmp.eq.s32.totalorder %s13, 1
      %p30 = por %p28, %p29
      %p31 = scmp.ne.s32.totalorder %s23, %s26
      %p32 = scmp.eq.s32.totalorder %s13, 0
      %p33 = por %p31, %p32
      %p34 = scmp.ne.s32.totalorder %s23, %s26
      %p35 = scmp.eq.s32.totalorder %s18, 1
      %p36 = por %p34, %p35
      %p37 = scmp.ne.s32.totalorder %s26, %s27
      %p38 = scmp.eq.s32.totalorder %s18, 0
      %p39 = por %p37, %p38
      %p40 = scmp.ne.s32.totalorder %s26, %s27
      %p41 = scmp.eq.s32.totalorder %s19, 1
      %p42 = por %p40, %p41
      %p44 = scmp.ne.s32.totalorder %s27, %s43
      %p45 = scmp.eq.s32.totalorder %s19, 0
      %p46 = por %p44, %p45
      %s48 = sadd.s32 %s47, 1
      %p51 = scmp.eq.s32.totalorder %s13, 1
      %p52 = scmp.ne.s32.totalorder %s47, %s49
      %p53 = scmp.eq.s32.totalorder %s13, 0
      %p54 = por %p52, %p53
      %p55 = scmp.ne.s32.totalorder %s47, %s49
      %p56 = scmp.eq.s32.totalorder %s18, 1
      %p57 = por %p55, %p56
      %p58 = scmp.ne.s32.totalorder %s49, %s50
      %p59 = scmp.eq.s32.totalorder %s18, 0
      %p60 = por %p58, %p59
      %p61 = scmp.ne.s32.totalorder %s49, %s50
      %p62 = scmp.eq.s32.totalorder %s19, 1
      %p63 = por %p61, %p62
      %p65 = scmp.ne.s32.totalorder %s50, %s64
      %p66 = scmp.eq.s32.totalorder %s19, 0
      %p67 = por %p65, %p66
      %s69 = sadd.s32 %s68, 1
      %p72 = scmp.eq.s32.totalorder %s13, 1
      %p73 = scmp.ne.s32.totalorder %s68, %s70
      %p74 = scmp.eq.s32.totalorder %s13, 0
      %p75 = por %p73, %p74
      %p76 = scmp.ne.s32.totalorder %s68, %s70
      %p77 = scmp.eq.s32.totalorder %s18, 1
      %p78 = por %p76, %p77
      %p79 = scmp.ne.s32.totalorder %s70, %s71
      %p80 = scmp.eq.s32.totalorder %s18, 0
      %p81 = por %p79, %p80
      %p82 = scmp.ne.s32.totalorder %s70, %s71
      %p83 = scmp.eq.s32.totalorder %s19, 1
      %p84 = por %p82, %p83
      %p86 = scmp.ne.s32.totalorder %s71, %s85
      %p87 = scmp.eq.s32.totalorder %s19, 0
      %p88 = por %p86, %p87
      %s90 = sadd.s32 %s89, 1
      %p93 = scmp.eq.s32.totalorder %s13, 1
      %p94 = scmp.ne.s32.totalorder %s89, %s91
      %p95 = scmp.eq.s32.totalorder %s13, 0
      %p96 = por %p94, %p95
      %p97 = scmp.ne.s32.totalorder %s89, %s91
      %p98 = scmp.eq.s32.totalorder %s18, 1
      %p99 = por %p97, %p98
      %p100 = scmp.ne.s32.totalorder %s91, %s92
      %p101 = scmp.eq.s32.totalorder %s18, 0
      %p102 = por %p100, %p101
      %p103 = scmp.ne.s32.totalorder %s91, %s92
      %p104 = scmp.eq.s32.totalorder %s19, 1
      %p105 = por %p103, %p104
      %p107 = scmp.ne.s32.totalorder %s92, %s106
      %p108 = scmp.eq.s32.totalorder %s19, 0
      %p109 = por %p107, %p108
      %s110 = ssub.s32 %s13, %s20
      %p111 = scmp.eq.s32.totalorder %s110, 0
      %s113 = sadd.s32 %s112, 1
      %s114 = scalar_select %p111, %s112, %s113
      %p117 = pneg %p111
      %p118 = scmp.eq.s32.totalorder %s13, 1
      %p119 = por %p117, %p118
      %p120 = scmp.ne.s32.totalorder %s112, %s115
      %p121 = scmp.eq.s32.totalorder %s13, 0
      %p122 = por %p120, %p121
      %p123 = scmp.ne.s32.totalorder %s112, %s115
      %p124 = scmp.eq.s32.totalorder %s18, 1
      %p125 = por %p123, %p124
      %p126 = scmp.ne.s32.totalorder %s115, %s116
      %p127 = scmp.eq.s32.totalorder %s18, 0
      %p128 = por %p126, %p127
      %p129 = scmp.ne.s32.totalorder %s115, %s116
      %p130 = scmp.eq.s32.totalorder %s19, 1
      %p131 = por %p129, %p130
      %p133 = scmp.ne.s32.totalorder %s116, %s132
      %p134 = scmp.eq.s32.totalorder %s19, 0
      %p135 = por %p133, %p134
      %p136 = scmp.le.s32.totalorder 1, %s13
      %p137 = scmp.lt.s32.totalorder %s13, 3
      %p138 = pnand %p136, %p137
      %p139 = pneg %p138
      // Predicated region
      $region9: #{_lambda_.1} parent=5 // pred_check
        _
      $region10: #{_lambda_.1} parent=5 // pred_check_branch
        %141 = sbr.rel (%p138) target = $region12
      $region11: #{_lambda_.1} parent=5 // pred_region
        %s142 = ssub.s32 %s13, 1
        // Predicated region
        $region13: #{_lambda_.1} parent=11 // pred_check
          %p143 = pneg %p60
        $region14: #{_lambda_.1} parent=11 // pred_check_branch
          %145 = sbr.rel (%p143) target = $region16
        $region15: #{_lambda_.1} parent=11 // pred_region
          _
        $region16: #{_lambda_.1} parent=11 // pred_fallthru
          _
        // Predicated region
        $region17: #{_lambda_.1} parent=11 // pred_check
          %p146 = pneg %p81
        $region18: #{_lambda_.1} parent=11 // pred_check_branch
          %148 = sbr.rel (%p146) target = $region20
        $region19: #{_lambda_.1} parent=11 // pred_region
          _
        $region20: #{_lambda_.1} parent=11 // pred_fallthru
          _
        // Predicated region
        $region21: #{_lambda_.1} parent=11 // pred_check
          %p149 = pneg %p102
        $region22: #{_lambda_.1} parent=11 // pred_check_branch
          %151 = sbr.rel (%p149) target = $region24
        $region23: #{_lambda_.1} parent=11 // pred_region
          _
        $region24: #{_lambda_.1} parent=11 // pred_fallthru
          _
      $region12: #{_lambda_.1} parent=5 // pred_fallthru
        _
      %p152 = scmp.lt.s32.totalorder %s13, 2
      // Predicated region
      $region25: #{_lambda_.1} parent=5 // pred_check
        %p153 = pneg %p152
      $region26: #{_lambda_.1} parent=5 // pred_check_branch
        %155 = sbr.rel (%p153) target = $region28
      $region27: #{_lambda_.1} parent=5 // pred_region
        // Predicated region
        $region29: #{_lambda_.1} parent=27 // pred_check
          %p156 = pneg %p33
        $region30: #{_lambda_.1} parent=27 // pred_check_branch
          %158 = sbr.rel (%p156) target = $region32
        $region31: #{_lambda_.1} parent=27 // pred_region
          %p159 = scmp.lt.s32.totalorder %s13, 1
          %s160 = scalar_select %p159, %s13, 1
          %s161 = smul.addr %s160, 12
          %s162 = smul.addr %s161, 4
          %s163 = scalar_lea.vmem %s0, %s162
        $region32: #{_lambda_.1} parent=27 // pred_fallthru
          _
      $region28: #{_lambda_.1} parent=5 // pred_fallthru
        _
      %p164 = scmp.le.s32.totalorder 1, %s13
      %p165 = scmp.lt.s32.totalorder %s13, 3
      %p166 = pnand %p164, %p165
      %p167 = pneg %p166
      // Predicated region
      $region33: #{_lambda_.1} parent=5 // pred_check
        _
      $region34: #{_lambda_.1} parent=5 // pred_check_branch
        %169 = sbr.rel (%p166) target = $region36
      $region35: #{_lambda_.1} parent=5 // pred_region
        %s170 = ssub.s32 %s13, 1
        %p171 = scmp.lt.s32.totalorder %s18, 1
        %s172 = scalar_select %p171, %s18, 1
        %s173 = smul.addr %s172, 12
        %s174 = smul.addr %s173, 4
        %s175 = scalar_lea.vmem %s0, %s174
        %p176 = pneg %p39
        %p177 = pneg %p36
        %p178 = pneg %p60
        %p179 = pneg %p57
        %p180 = pneg %p81
        %p181 = pneg %p78
        %p182 = pneg %p102
        %p183 = pneg %p99
        %p184 = pneg %p128
        %p185 = pneg %p125
        %s186 = sand.u32 %s115, 1
        %s187 = scalar_lea.sflag [#allocation3], %s186
        %s188 = sand.u32 %s115, 1
        %s189 = scalar_lea.vmem [#allocation2], %s188
        %p190 = scmp.lt.s32.totalorder %s18, 1
        %s191 = scalar_select %p190, %s18, 1
        %s192 = smul.addr %s191, 12
        %s193 = smul.addr %s192, 4
        %s194 = scalar_lea.vmem %s0, %s193
        %v196 = vld [vmem:[%s194] sm:$0xff]
        %v197 = vld [vmem:[%s194 + $0x8] sm:$0xff]
        %v198 = vld [vmem:[%s194 + $0x10] sm:$0xff]
        %v199 = vld [vmem:[%s194 + $0x18] sm:$0x11]
        %v200 = vld [vmem:[%s194 + $0x20] sm:$0x11]
        %v201 = vld [vmem:[%s194 + $0x28] sm:$0x11]
        %v202 = vunpack.c.l.bf16 %v196
        %v203 = vunpack.c.h.bf16 %v196
        %v204 = vunpack.c.l.bf16 %v197
        %v205 = vunpack.c.h.bf16 %v197
        %v206 = vunpack.c.l.bf16 %v198
        %v207 = vunpack.c.h.bf16 %v198
        %v208 = vunpack.c.l.bf16 %v199
        %v209 = vunpack.c.h.bf16 %v199
        %v210 = vunpack.c.l.bf16 %v200
        %v211 = vunpack.c.h.bf16 %v200
        %v212 = vunpack.c.l.bf16 %v201
        %v213 = vunpack.c.h.bf16 %v201
        %v214 = vld [vmem:[%s3] ss:$8 sm:$0xf]
        %v215 = vld [vmem:[%s3] ss:$8 sm:$0x30]
        %v216 = vor.u32 %v214, %v215
        %s217 = scalar_lea.vmem %s3, 1
        %v218 = vld [vmem:[%s217] ss:$8 sm:$0xf]
        %v219 = vld [vmem:[%s217] ss:$8 sm:$0x30]
        %v220 = vor.u32 %v218, %v219
        %v221 = vadd.f32 %v202, %v203
        %v222 = vadd.f32 %v221, %v204
        %v223 = vadd.f32 %v222, %v205
        %v224 = vadd.f32 %v223, %v206
        %v225 = vadd.f32 %v224, %v207
        %226 = vadd.xlane.f32.xlu0 %v225
        %v227 = vpop.xlane.xlu0 %226
        %vm228 = vcmask 1040384
        %v229 = vsel %vm228, %v208, 0.0
        %v230 = vsel %vm228, %v209, 0.0
        %v231 = vadd.f32 %v229, %v230
        %v232 = vsel %vm228, %v210, 0.0
        %v233 = vadd.f32 %v231, %v232
        %v234 = vsel %vm228, %v211, 0.0
        %v235 = vadd.f32 %v233, %v234
        %v236 = vsel %vm228, %v212, 0.0
        %v237 = vadd.f32 %v235, %v236
        %v238 = vsel %vm228, %v213, 0.0
        %v239 = vadd.f32 %v237, %v238
        %240 = vadd.xlane.f32.xlu0 %v239
        %v241 = vpop.xlane.xlu0 %240
        %v242 = vrcp.pop 768.0
        %v243 = vmul.f32 %v227, %v242
        %v244 = vmul.f32 %v241, %v242
        %v245 = vsub.f32 %v202, %v243
        %v246 = vsub.f32 %v203, %v243
        %v247 = vsub.f32 %v204, %v243
        %v248 = vsub.f32 %v205, %v243
        %v249 = vsub.f32 %v206, %v243
        %v250 = vsub.f32 %v207, %v243
        %v251 = vsub.f32 %v208, %v244
        %v252 = vsub.f32 %v209, %v244
        %v253 = vsub.f32 %v210, %v244
        %v254 = vsub.f32 %v211, %v244
        %v255 = vsub.f32 %v212, %v244
        %v256 = vsub.f32 %v213, %v244
        %v257 = vmul.f32 %v245, %v245
        %v258 = vmul.f32 %v246, %v246
        %v259 = vmul.f32 %v247, %v247
        %v260 = vmul.f32 %v248, %v248
        %v261 = vmul.f32 %v249, %v249
        %v262 = vmul.f32 %v250, %v250
        %v263 = vmul.f32 %v251, %v251
        %v264 = vmul.f32 %v252, %v252
        %v265 = vmul.f32 %v253, %v253
        %v266 = vmul.f32 %v254, %v254
        %v267 = vmul.f32 %v255, %v255
        %v268 = vmul.f32 %v256, %v256
        %v269 = vadd.f32 %v257, %v258
        %v270 = vadd.f32 %v269, %v259
        %v271 = vadd.f32 %v270, %v260
        %v272 = vadd.f32 %v271, %v261
        %v273 = vadd.f32 %v272, %v262
        %274 = vadd.xlane.f32.xlu0 %v273
        %v275 = vpop.xlane.xlu0 %274
        %v276 = vsel %vm228, %v263, 0.0
        %v277 = vsel %vm228, %v264, 0.0
        %v278 = vadd.f32 %v276, %v277
        %v279 = vsel %vm228, %v265, 0.0
        %v280 = vadd.f32 %v278, %v279
        %v281 = vsel %vm228, %v266, 0.0
        %v282 = vadd.f32 %v280, %v281
        %v283 = vsel %vm228, %v267, 0.0
        %v284 = vadd.f32 %v282, %v283
        %v285 = vsel %vm228, %v268, 0.0
        %v286 = vadd.f32 %v284, %v285
        %287 = vadd.xlane.f32.xlu0 %v286
        %v288 = vpop.xlane.xlu0 %287
        %v289 = vmul.f32 %v275, %v242
        %v290 = vmul.f32 %v288, %v242
        %v291 = vadd.f32 %v289, 1e-05
        %v292 = vadd.f32 %v290, 1e-05
        %v293 = vrsqrt.pop %v291
        %v294 = vrsqrt.pop %v292
        %v295 = vmul.f32 %v245, %v293
        %v296 = vmul.f32 %v246, %v293
        %v297 = vmul.f32 %v247, %v293
        %v298 = vmul.f32 %v248, %v293
        %v299 = vmul.f32 %v249, %v293
        %v300 = vmul.f32 %v250, %v293
        %v301 = vmul.f32 %v251, %v294
        %v302 = vmul.f32 %v252, %v294
        %v303 = vmul.f32 %v253, %v294
        %v304 = vmul.f32 %v254, %v294
        %v305 = vmul.f32 %v255, %v294
        %v306 = vmul.f32 %v256, %v294
        %v308 = vlaneseq
        %v309 = vshrl.u32 %v308, 7
        %v310 = vsub.s32 0, %v309
        %v311 = vrot.slane %v216, %v310
        %v312 = vlaneseq
        %v313 = vshrl.u32 %v312, 7
        %v314 = vsub.s32 1, %v313
        %v315 = vrot.slane %v216, %v314
        %v316 = vlaneseq
        %v317 = vshrl.u32 %v316, 7
        %v318 = vsub.s32 2, %v317
        %v319 = vrot.slane %v216, %v318
        %v320 = vlaneseq
        %v321 = vshrl.u32 %v320, 7
        %v322 = vsub.s32 3, %v321
        %v323 = vrot.slane %v216, %v322
        %v324 = vlaneseq
        %v325 = vshrl.u32 %v324, 7
        %v326 = vsub.s32 4, %v325
        %v327 = vrot.slane %v216, %v326
        %v328 = vlaneseq
        %v329 = vshrl.u32 %v328, 7
        %v330 = vsub.s32 5, %v329
        %v331 = vrot.slane %v216, %v330
        %v338 = vmul.f32 %v295, %v311
        %v339 = vmul.f32 %v296, %v315
        %v340 = vmul.f32 %v297, %v319
        %v341 = vmul.f32 %v298, %v323
        %v342 = vmul.f32 %v299, %v327
        %v343 = vmul.f32 %v300, %v331
        %v344 = vmul.f32 %v301, %v311
        %v345 = vmul.f32 %v302, %v315
        %v346 = vmul.f32 %v303, %v319
        %v347 = vmul.f32 %v304, %v323
        %v348 = vmul.f32 %v305, %v327
        %v349 = vmul.f32 %v306, %v331
        %v351 = vlaneseq
        %v352 = vshrl.u32 %v351, 7
        %v353 = vsub.s32 0, %v352
        %v354 = vrot.slane %v220, %v353
        %v355 = vlaneseq
        %v356 = vshrl.u32 %v355, 7
        %v357 = vsub.s32 1, %v356
        %v358 = vrot.slane %v220, %v357
        %v359 = vlaneseq
        %v360 = vshrl.u32 %v359, 7
        %v361 = vsub.s32 2, %v360
        %v362 = vrot.slane %v220, %v361
        %v363 = vlaneseq
        %v364 = vshrl.u32 %v363, 7
        %v365 = vsub.s32 3, %v364
        %v366 = vrot.slane %v220, %v365
        %v367 = vlaneseq
        %v368 = vshrl.u32 %v367, 7
        %v369 = vsub.s32 4, %v368
        %v370 = vrot.slane %v220, %v369
        %v371 = vlaneseq
        %v372 = vshrl.u32 %v371, 7
        %v373 = vsub.s32 5, %v372
        %v374 = vrot.slane %v220, %v373
        %v381 = vadd.f32 %v338, %v354
        %v382 = vadd.f32 %v339, %v358
        %v383 = vadd.f32 %v340, %v362
        %v384 = vadd.f32 %v341, %v366
        %v385 = vadd.f32 %v342, %v370
        %v386 = vadd.f32 %v343, %v374
        %v387 = vadd.f32 %v344, %v354
        %v388 = vadd.f32 %v345, %v358
        %v389 = vadd.f32 %v346, %v362
        %v390 = vadd.f32 %v347, %v366
        %v391 = vadd.f32 %v348, %v370
        %v392 = vadd.f32 %v349, %v374
        %v393 = vld [vmem:[%s2] sm:$0xf]
        %v394 = vld [vmem:[%s2 + $0x4] sm:$0xf]
        %v395 = vld [vmem:[%s2 + $0x8] sm:$0xf]
        %v396 = vld [vmem:[%s2 + $0xc] sm:$0xf]
        %v397 = vld [vmem:[%s2 + $0x10] sm:$0xf]
        %v398 = vld [vmem:[%s2 + $0x14] sm:$0xf]
        %v399 = vld [vmem:[%s2 + $0x18] sm:$0xf]
        %v400 = vld [vmem:[%s2 + $0x1c] sm:$0xf]
        %v401 = vld [vmem:[%s2 + $0x20] sm:$0xf]
        %v402 = vld [vmem:[%s2 + $0x24] sm:$0xf]
        %v403 = vld [vmem:[%s2 + $0x28] sm:$0xf]
        %v404 = vld [vmem:[%s2 + $0x2c] sm:$0xf]
        %v405 = vld [vmem:[%s2 + $0x30] sm:$0xf]
        %v406 = vld [vmem:[%s2 + $0x34] sm:$0xf]
        %v407 = vld [vmem:[%s2 + $0x38] sm:$0xf]
        %v408 = vld [vmem:[%s2 + $0x3c] sm:$0xf]
        %v409 = vld [vmem:[%s2 + $0x40] sm:$0xf]
        %v410 = vld [vmem:[%s2 + $0x44] sm:$0xf]
        %v411 = vld [vmem:[%s2 + $0x48] sm:$0xf]
        %v412 = vld [vmem:[%s2 + $0x4c] sm:$0xf]
        %v413 = vld [vmem:[%s2 + $0x50] sm:$0xf]
        %v414 = vld [vmem:[%s2 + $0x54] sm:$0xf]
        %v415 = vld [vmem:[%s2 + $0x58] sm:$0xf]
        %v416 = vld [vmem:[%s2 + $0x5c] sm:$0xf]
        %v417 = vld [vmem:[%s2 + $0x60] sm:$0xf]
        %v418 = vld [vmem:[%s2 + $0x64] sm:$0xf]
        %v419 = vld [vmem:[%s2 + $0x68] sm:$0xf]
        %v420 = vld [vmem:[%s2 + $0x6c] sm:$0xf]
        %v421 = vld [vmem:[%s2 + $0x70] sm:$0xf]
        %v422 = vld [vmem:[%s2 + $0x74] sm:$0xf]
        %v423 = vld [vmem:[%s2 + $0x78] sm:$0xf]
        %v424 = vld [vmem:[%s2 + $0x7c] sm:$0xf]
        %v425 = vld [vmem:[%s2 + $0x80] sm:$0xf]
        %v426 = vld [vmem:[%s2 + $0x84] sm:$0xf]
        %v427 = vld [vmem:[%s2 + $0x88] sm:$0xf]
        %v428 = vld [vmem:[%s2 + $0x8c] sm:$0xf]
        %v429 = vld [vmem:[%s2 + $0x90] sm:$0xf]
        %v430 = vld [vmem:[%s2 + $0x94] sm:$0xf]
        %v431 = vld [vmem:[%s2 + $0x98] sm:$0xf]
        %v432 = vld [vmem:[%s2 + $0x9c] sm:$0xf]
        %v433 = vld [vmem:[%s2 + $0xa0] sm:$0xf]
        %v434 = vld [vmem:[%s2 + $0xa4] sm:$0xf]
        %v435 = vld [vmem:[%s2 + $0xa8] sm:$0xf]
        %v436 = vld [vmem:[%s2 + $0xac] sm:$0xf]
        %v437 = vld [vmem:[%s2 + $0xb0] sm:$0xf]
        %v438 = vld [vmem:[%s2 + $0xb4] sm:$0xf]
        %v439 = vld [vmem:[%s2 + $0xb8] sm:$0xf]
        %v440 = vld [vmem:[%s2 + $0xbc] sm:$0xf]
        %v441 = vld [vmem:[%s2 + $0xc0] sm:$0xf]
        %v442 = vld [vmem:[%s2 + $0xc4] sm:$0xf]
        %v443 = vld [vmem:[%s2 + $0xc8] sm:$0xf]
        %v444 = vld [vmem:[%s2 + $0xcc] sm:$0xf]
        %v445 = vld [vmem:[%s2 + $0xd0] sm:$0xf]
        %v446 = vld [vmem:[%s2 + $0xd4] sm:$0xf]
        %v447 = vld [vmem:[%s2 + $0xd8] sm:$0xf]
        %v448 = vld [vmem:[%s2 + $0xdc] sm:$0xf]
        %v449 = vld [vmem:[%s2 + $0xe0] sm:$0xf]
        %v450 = vld [vmem:[%s2 + $0xe4] sm:$0xf]
        %v451 = vld [vmem:[%s2 + $0xe8] sm:$0xf]
        %v452 = vld [vmem:[%s2 + $0xec] sm:$0xf]
        %v453 = vld [vmem:[%s2 + $0xf0] sm:$0xf]
        %v454 = vld [vmem:[%s2 + $0xf4] sm:$0xf]
        %v455 = vld [vmem:[%s2 + $0xf8] sm:$0xf]
        %v456 = vld [vmem:[%s2 + $0xfc] sm:$0xf]
        %v457 = vld [vmem:[%s2 + $0x100] sm:$0xf]
        %v458 = vld [vmem:[%s2 + $0x104] sm:$0xf]
        %v459 = vld [vmem:[%s2 + $0x108] sm:$0xf]
        %v460 = vld [vmem:[%s2 + $0x10c] sm:$0xf]
        %v461 = vld [vmem:[%s2 + $0x110] sm:$0xf]
        %v462 = vld [vmem:[%s2 + $0x114] sm:$0xf]
        %v463 = vld [vmem:[%s2 + $0x118] sm:$0xf]
        %v464 = vld [vmem:[%s2 + $0x11c] sm:$0xf]
        %v465 = vld [vmem:[%s2 + $0x120] sm:$0xf]
        %v466 = vld [vmem:[%s2 + $0x124] sm:$0xf]
        %v467 = vld [vmem:[%s2 + $0x128] sm:$0xf]
        %v468 = vld [vmem:[%s2 + $0x12c] sm:$0xf]
        %v469 = vld [vmem:[%s2 + $0x130] sm:$0xf]
        %v470 = vld [vmem:[%s2 + $0x134] sm:$0xf]
        %v471 = vld [vmem:[%s2 + $0x138] sm:$0xf]
        %v472 = vld [vmem:[%s2 + $0x13c] sm:$0xf]
        %v473 = vld [vmem:[%s2 + $0x140] sm:$0xf]
        %v474 = vld [vmem:[%s2 + $0x144] sm:$0xf]
        %v475 = vld [vmem:[%s2 + $0x148] sm:$0xf]
        %v476 = vld [vmem:[%s2 + $0x14c] sm:$0xf]
        %v477 = vld [vmem:[%s2 + $0x150] sm:$0xf]
        %v478 = vld [vmem:[%s2 + $0x154] sm:$0xf]
        %v479 = vld [vmem:[%s2 + $0x158] sm:$0xf]
        %v480 = vld [vmem:[%s2 + $0x15c] sm:$0xf]
        %v481 = vld [vmem:[%s2 + $0x160] sm:$0xf]
        %v482 = vld [vmem:[%s2 + $0x164] sm:$0xf]
        %v483 = vld [vmem:[%s2 + $0x168] sm:$0xf]
        %v484 = vld [vmem:[%s2 + $0x16c] sm:$0xf]
        %v485 = vld [vmem:[%s2 + $0x170] sm:$0xf]
        %v486 = vld [vmem:[%s2 + $0x174] sm:$0xf]
        %v487 = vld [vmem:[%s2 + $0x178] sm:$0xf]
        %v488 = vld [vmem:[%s2 + $0x17c] sm:$0xf]
        %v489 = vpack.c.bf16 %v387, %v381
        %v490 = vpack.c.bf16 %v388, %v382
        %v491 = vpack.c.bf16 %v389, %v383
        %v492 = vpack.c.bf16 %v390, %v384
        %v493 = vpack.c.bf16 %v391, %v385
        %v494 = vpack.c.bf16 %v392, %v386
        %v495 = vld [vmem:[%s3 + $0x2] ss:$0 sm:$0xff]
        %v592 = vunpack.c.l.b16 %v393
        %v593 = vunpack.c.l.b16 %v394
        %v594 = vunpack.c.l.b16 %v395
        %v595 = vunpack.c.l.b16 %v396
        %v596 = vunpack.c.l.b16 %v397
        %v597 = vunpack.c.l.b16 %v398
        %v598 = vunpack.c.l.b16 %v399
        %v599 = vunpack.c.l.b16 %v400
        %v600 = vunpack.c.l.b16 %v401
        %v601 = vunpack.c.l.b16 %v402
        %v602 = vunpack.c.l.b16 %v403
        %v603 = vunpack.c.l.b16 %v404
        %v604 = vunpack.c.l.b16 %v405
        %v605 = vunpack.c.l.b16 %v406
        %v606 = vunpack.c.l.b16 %v407
        %v607 = vunpack.c.l.b16 %v408
        %v608 = vunpack.c.l.b16 %v409
        %v609 = vunpack.c.l.b16 %v410
        %v610 = vunpack.c.l.b16 %v411
        %v611 = vunpack.c.l.b16 %v412
        %v612 = vunpack.c.l.b16 %v413
        %v613 = vunpack.c.l.b16 %v414
        %v614 = vunpack.c.l.b16 %v415
        %v615 = vunpack.c.l.b16 %v416
        %v616 = vunpack.c.l.b16 %v417
        %v617 = vunpack.c.l.b16 %v418
        %v618 = vunpack.c.l.b16 %v419
        %v619 = vunpack.c.l.b16 %v420
        %v620 = vunpack.c.l.b16 %v421
        %v621 = vunpack.c.l.b16 %v422
        %v622 = vunpack.c.l.b16 %v423
        %v623 = vunpack.c.l.b16 %v424
        %v624 = vunpack.c.l.b16 %v425
        %v625 = vunpack.c.l.b16 %v426
        %v626 = vunpack.c.l.b16 %v427
        %v627 = vunpack.c.l.b16 %v428
        %v628 = vunpack.c.l.b16 %v429
        %v629 = vunpack.c.l.b16 %v430
        %v630 = vunpack.c.l.b16 %v431
        %v631 = vunpack.c.l.b16 %v432
        %v632 = vunpack.c.l.b16 %v433
        %v633 = vunpack.c.l.b16 %v434
        %v634 = vunpack.c.l.b16 %v435
        %v635 = vunpack.c.l.b16 %v436
        %v636 = vunpack.c.l.b16 %v437
        %v637 = vunpack.c.l.b16 %v438
        %v638 = vunpack.c.l.b16 %v439
        %v639 = vunpack.c.l.b16 %v440
        %v640 = vunpack.c.l.b16 %v441
        %v641 = vunpack.c.l.b16 %v442
        %v642 = vunpack.c.l.b16 %v443
        %v643 = vunpack.c.l.b16 %v444
        %v644 = vunpack.c.l.b16 %v445
        %v645 = vunpack.c.l.b16 %v446
        %v646 = vunpack.c.l.b16 %v447
        %v647 = vunpack.c.l.b16 %v448
        %v648 = vunpack.c.l.b16 %v449
        %v649 = vunpack.c.l.b16 %v450
        %v650 = vunpack.c.l.b16 %v451
        %v651 = vunpack.c.l.b16 %v452
        %v652 = vunpack.c.l.b16 %v453
        %v653 = vunpack.c.l.b16 %v454
        %v654 = vunpack.c.l.b16 %v455
        %v655 = vunpack.c.l.b16 %v456
        %v656 = vunpack.c.l.b16 %v457
        %v657 = vunpack.c.l.b16 %v458
        %v658 = vunpack.c.l.b16 %v459
        %v659 = vunpack.c.l.b16 %v460
        %v660 = vunpack.c.l.b16 %v461
        %v661 = vunpack.c.l.b16 %v462
        %v662 = vunpack.c.l.b16 %v463
        %v663 = vunpack.c.l.b16 %v464
        %v664 = vunpack.c.l.b16 %v465
        %v665 = vunpack.c.l.b16 %v466
        %v666 = vunpack.c.l.b16 %v467
        %v667 = vunpack.c.l.b16 %v468
        %v668 = vunpack.c.l.b16 %v469
        %v669 = vunpack.c.l.b16 %v470
        %v670 = vunpack.c.l.b16 %v471
        %v671 = vunpack.c.l.b16 %v472
        %v672 = vunpack.c.l.b16 %v473
        %v673 = vunpack.c.l.b16 %v474
        %v674 = vunpack.c.l.b16 %v475
        %v675 = vunpack.c.l.b16 %v476
        %v676 = vunpack.c.l.b16 %v477
        %v677 = vunpack.c.l.b16 %v478
        %v678 = vunpack.c.l.b16 %v479
        %v679 = vunpack.c.l.b16 %v480
        %v680 = vunpack.c.l.b16 %v481
        %v681 = vunpack.c.l.b16 %v482
        %v682 = vunpack.c.l.b16 %v483
        %v683 = vunpack.c.l.b16 %v484
        %v684 = vunpack.c.l.b16 %v485
        %v685 = vunpack.c.l.b16 %v486
        %v686 = vunpack.c.l.b16 %v487
        %v687 = vunpack.c.l.b16 %v488
        %v688 = vpack.c.b16 %v593, %v592
        %v689 = vpack.c.b16 %v595, %v594
        %v690 = vpack.c.b16 %v597, %v596
        %v691 = vpack.c.b16 %v599, %v598
        %v692 = vpack.c.b16 %v601, %v600
        %v693 = vpack.c.b16 %v603, %v602
        %v694 = vpack.c.b16 %v605, %v604
        %v695 = vpack.c.b16 %v607, %v606
        %v696 = vpack.c.b16 %v609, %v608
        %v697 = vpack.c.b16 %v611, %v610
        %v698 = vpack.c.b16 %v613, %v612
        %v699 = vpack.c.b16 %v615, %v614
        %v700 = vpack.c.b16 %v617, %v616
        %v701 = vpack.c.b16 %v619, %v618
        %v702 = vpack.c.b16 %v621, %v620
        %v703 = vpack.c.b16 %v623, %v622
        %v704 = vpack.c.b16 %v625, %v624
        %v705 = vpack.c.b16 %v627, %v626
        %v706 = vpack.c.b16 %v629, %v628
        %v707 = vpack.c.b16 %v631, %v630
        %v708 = vpack.c.b16 %v633, %v632
        %v709 = vpack.c.b16 %v635, %v634
        %v710 = vpack.c.b16 %v637, %v636
        %v711 = vpack.c.b16 %v639, %v638
        %v712 = vpack.c.b16 %v641, %v640
        %v713 = vpack.c.b16 %v643, %v642
        %v714 = vpack.c.b16 %v645, %v644
        %v715 = vpack.c.b16 %v647, %v646
        %v716 = vpack.c.b16 %v649, %v648
        %v717 = vpack.c.b16 %v651, %v650
        %v718 = vpack.c.b16 %v653, %v652
        %v719 = vpack.c.b16 %v655, %v654
        %v720 = vpack.c.b16 %v657, %v656
        %v721 = vpack.c.b16 %v659, %v658
        %v722 = vpack.c.b16 %v661, %v660
        %v723 = vpack.c.b16 %v663, %v662
        %v724 = vpack.c.b16 %v665, %v664
        %v725 = vpack.c.b16 %v667, %v666
        %v726 = vpack.c.b16 %v669, %v668
        %v727 = vpack.c.b16 %v671, %v670
        %v728 = vpack.c.b16 %v673, %v672
        %v729 = vpack.c.b16 %v675, %v674
        %v730 = vpack.c.b16 %v677, %v676
        %v731 = vpack.c.b16 %v679, %v678
        %v732 = vpack.c.b16 %v681, %v680
        %v733 = vpack.c.b16 %v683, %v682
        %v734 = vpack.c.b16 %v685, %v684
        %v735 = vpack.c.b16 %v687, %v686
        %784 = vmatprep.subr.bf16.mxu0 0
        %785 = vmatpush1.bf16.msra.mxu0 %v688
        %786 = vmatprep.subr.bf16.mxu0 0
        %787 = vmatpush1.bf16.msra.mxu0 %v689
        %788 = vmatprep.subr.bf16.mxu0 0
        %789 = vmatpush1.bf16.msra.mxu0 %v690
        %790 = vmatprep.subr.bf16.mxu0 0
        %791 = vmatpush1.bf16.msra.mxu0 %v691
        %792 = vmatprep.subr.bf16.mxu0 0
        %793 = vmatpush1.bf16.msra.mxu0 %v692
        %794 = vmatprep.subr.bf16.mxu0 0
        %795 = vmatpush1.bf16.msra.mxu0 %v693
        %796 = vmatprep.subr.bf16.mxu0 0
        %797 = vmatpush1.bf16.msra.mxu0 %v694
        %798 = vmatprep.subr.bf16.mxu0 0
        %799 = vmatpush1.bf16.msra.mxu0 %v695
        %800 = vmatprep.subr.bf16.mxu0 0
        %801 = vmatpush1.bf16.msra.mxu0 %v696
        %802 = vmatprep.subr.bf16.mxu0 0
        %803 = vmatpush1.bf16.msra.mxu0 %v697
        %804 = vmatprep.subr.bf16.mxu0 0
        %805 = vmatpush1.bf16.msra.mxu0 %v698
        %806 = vmatprep.subr.bf16.mxu0 0
        %807 = vmatpush1.bf16.msra.mxu0 %v699
        %808 = vmatprep.subr.bf16.mxu0 0
        %809 = vmatpush1.bf16.msra.mxu0 %v700
        %810 = vmatprep.subr.bf16.mxu0 0
        %811 = vmatpush1.bf16.msra.mxu0 %v701
        %812 = vmatprep.subr.bf16.mxu0 0
        %813 = vmatpush1.bf16.msra.mxu0 %v702
        %814 = vmatprep.subr.bf16.mxu0 0
        %815 = vmatpush1.bf16.msra.mxu0 %v703
        %816 = vmatprep.mubr.bf16.mxu0 %v490
        %817 = vmatmul.mubr.bf16.gmra.mrb[0].mxu0 %v489
        %v818 = vpop.f32.mrb[0].mxu0
        %v819 = vadd.f32 %v495, %v818
        %v820 = vpop.f32.mrb[0].mxu0
        %v821 = vpop.f32.mrb[0].mxu0
        %v822 = vadd.f32 %v495, %v821
        %v823 = vpop.f32.mrb[0].mxu0
        %824 = vdwg.mxu0
        %825 = vmatprep.subr.bf16.mxu0 0
        %826 = vmatpush1.bf16.msra.mxu0 %v704
        %827 = vmatprep.subr.bf16.mxu0 0
        %828 = vmatpush1.bf16.msra.mxu0 %v705
        %829 = vmatprep.subr.bf16.mxu0 0
        %830 = vmatpush1.bf16.msra.mxu0 %v706
        %831 = vmatprep.subr.bf16.mxu0 0
        %832 = vmatpush1.bf16.msra.mxu0 %v707
        %833 = vmatprep.subr.bf16.mxu0 0
        %834 = vmatpush1.bf16.msra.mxu0 %v708
        %835 = vmatprep.subr.bf16.mxu0 0
        %836 = vmatpush1.bf16.msra.mxu0 %v709
        %837 = vmatprep.subr.bf16.mxu0 0
        %838 = vmatpush1.bf16.msra.mxu0 %v710
        %839 = vmatprep.subr.bf16.mxu0 0
        %840 = vmatpush1.bf16.msra.mxu0 %v711
        %841 = vmatprep.subr.bf16.mxu0 0
        %842 = vmatpush1.bf16.msra.mxu0 %v712
        %843 = vmatprep.subr.bf16.mxu0 0
        %844 = vmatpush1.bf16.msra.mxu0 %v713
        %845 = vmatprep.subr.bf16.mxu0 0
        %846 = vmatpush1.bf16.msra.mxu0 %v714
        %847 = vmatprep.subr.bf16.mxu0 0
        %848 = vmatpush1.bf16.msra.mxu0 %v715
        %849 = vmatprep.subr.bf16.mxu0 0
        %850 = vmatpush1.bf16.msra.mxu0 %v716
        %851 = vmatprep.subr.bf16.mxu0 0
        %852 = vmatpush1.bf16.msra.mxu0 %v717
        %853 = vmatprep.subr.bf16.mxu0 0
        %854 = vmatpush1.bf16.msra.mxu0 %v718
        %855 = vmatprep.subr.bf16.mxu0 0
        %856 = vmatpush1.bf16.msra.mxu0 %v719
        %857 = vmatprep.mubr.bf16.mxu0 %v492
        %858 = vmatmul.mubr.bf16.gmra.mrb[0].mxu0 %v491
        %v859 = vpop.f32.mrb[0].mxu0
        %v860 = vadd.f32 %v819, %v859
        %v861 = vpop.f32.mrb[0].mxu0
        %v862 = vpop.f32.mrb[0].mxu0
        %v863 = vadd.f32 %v822, %v862
        %v864 = vpop.f32.mrb[0].mxu0
        %865 = vdwg.mxu0
        %866 = vmatprep.subr.bf16.mxu0 0
        %867 = vmatpush1.bf16.msra.mxu0 %v720
        %868 = vmatprep.subr.bf16.mxu0 0
        %869 = vmatpush1.bf16.msra.mxu0 %v721
        %870 = vmatprep.subr.bf16.mxu0 0
        %871 = vmatpush1.bf16.msra.mxu0 %v722
        %872 = vmatprep.subr.bf16.mxu0 0
        %873 = vmatpush1.bf16.msra.mxu0 %v723
        %874 = vmatprep.subr.bf16.mxu0 0
        %875 = vmatpush1.bf16.msra.mxu0 %v724
        %876 = vmatprep.subr.bf16.mxu0 0
        %877 = vmatpush1.bf16.msra.mxu0 %v725
        %878 = vmatprep.subr.bf16.mxu0 0
        %879 = vmatpush1.bf16.msra.mxu0 %v726
        %880 = vmatprep.subr.bf16.mxu0 0
        %881 = vmatpush1.bf16.msra.mxu0 %v727
        %882 = vmatprep.subr.bf16.mxu0 0
        %883 = vmatpush1.bf16.msra.mxu0 %v728
        %884 = vmatprep.subr.bf16.mxu0 0
        %885 = vmatpush1.bf16.msra.mxu0 %v729
        %886 = vmatprep.subr.bf16.mxu0 0
        %887 = vmatpush1.bf16.msra.mxu0 %v730
        %888 = vmatprep.subr.bf16.mxu0 0
        %889 = vmatpush1.bf16.msra.mxu0 %v731
        %890 = vmatprep.subr.bf16.mxu0 0
        %891 = vmatpush1.bf16.msra.mxu0 %v732
        %892 = vmatprep.subr.bf16.mxu0 0
        %893 = vmatpush1.bf16.msra.mxu0 %v733
        %894 = vmatprep.subr.bf16.mxu0 0
        %895 = vmatpush1.bf16.msra.mxu0 %v734
        %896 = vmatprep.subr.bf16.mxu0 0
        %897 = vmatpush1.bf16.msra.mxu0 %v735
        %898 = vmatprep.mubr.bf16.mxu0 %v494
        %899 = vmatmul.mubr.bf16.gmra.mrb[0].mxu0 %v493
        %v900 = vpop.f32.mrb[0].mxu0
        %v901 = vadd.f32 %v860, %v900
        %v902 = vpop.f32.mrb[0].mxu0
        %v903 = vpop.f32.mrb[0].mxu0
        %v904 = vadd.f32 %v863, %v903
        %v905 = vpop.f32.mrb[0].mxu0
        %906 = vdwg.mxu0
        %v907 = vld [vmem:[%s3 + $0x3] ss:$0 sm:$0xff]
        %v908 = vld [vmem:[%s3 + $0x4] ss:$0 sm:$0xff]
        %vm909 = vcmask 261120
        %v910 = vsel %vm909, %v901, 0.0
        %911 = vadd.xlane.f32.xlu0 %v910
        %v912 = vpop.xlane.xlu0 %911
        %vm913 = vcmask 253952
        %v914 = vsel %vm913, %v904, 0.0
        %915 = vadd.xlane.f32.xlu0 %v914
        %v916 = vpop.xlane.xlu0 %915
        %v917 = vrcp.pop 32.0
        %v918 = vmul.f32 %v912, %v917
        %v919 = vmul.f32 %v916, %v917
        %v920 = vsub.f32 %v901, %v918
        %v921 = vsub.f32 %v904, %v919
        %v922 = vmul.f32 %v920, %v920
        %v923 = vmul.f32 %v921, %v921
        %v924 = vsel %vm909, %v922, 0.0
        %925 = vadd.xlane.f32.xlu0 %v924
        %v926 = vpop.xlane.xlu0 %925
        %v927 = vsel %vm913, %v923, 0.0
        %928 = vadd.xlane.f32.xlu0 %v927
        %v929 = vpop.xlane.xlu0 %928
        %v930 = vmul.f32 %v926, %v917
        %v931 = vmul.f32 %v929, %v917
        %v932 = vadd.f32 %v930, 1e-05
        %v933 = vadd.f32 %v931, 1e-05
        %v934 = vrsqrt.pop %v932
        %v935 = vrsqrt.pop %v933
        %v936 = vmul.f32 %v920, %v934
        %v937 = vmul.f32 %v921, %v935
        %v938 = vmul.f32 %v936, %v907
        %v939 = vmul.f32 %v937, %v907
        %v940 = vadd.f32 %v938, %v908
        %v941 = vadd.f32 %v939, %v908
        %v942 = vld [vmem:[%s1] sm:$0xff]
        %v943 = vld [vmem:[%s1 + $0x8] sm:$0x1]
        %v944 = vlaneseq
        %v945 = vshrl.u32 %v944, 7
        %v946 = vadd.s32 %v945, 8
        %vm947 = vcmp.eq.s32.totalorder %v945, 0
        %vm948 = vcmp.eq.s32.totalorder %v946, 0
        %v949 = vsel %vm947, 0.0, %v940
        %v950 = vsel %vm948, 0.0, %v941
        %v951 = vadd.f32 %v942, %v949
        %v952 = vadd.f32 %v943, %v950
        %v953 = vld [vmem:[%s3 + $0x5] ss:$0 sm:$0xff]
        %v954 = vld [vmem:[%s3 + $0x6] ss:$0 sm:$0xff]
        %v955 = vsel %vm909, %v951, 0.0
        %956 = vadd.xlane.f32.xlu0 %v955
        %v957 = vpop.xlane.xlu0 %956
        %v958 = vsel %vm913, %v952, 0.0
        %959 = vadd.xlane.f32.xlu0 %v958
        %v960 = vpop.xlane.xlu0 %959
        %v961 = vmul.f32 %v957, %v917
        %v962 = vmul.f32 %v960, %v917
        %v963 = vsub.f32 %v951, %v961
        %v964 = vsub.f32 %v952, %v962
        %v965 = vmul.f32 %v963, %v963
        %v966 = vmul.f32 %v964, %v964
        %v967 = vsel %vm909, %v965, 0.0
        %968 = vadd.xlane.f32.xlu0 %v967
        %v969 = vpop.xlane.xlu0 %968
        %v970 = vsel %vm913, %v966, 0.0
        %971 = vadd.xlane.f32.xlu0 %v970
        %v972 = vpop.xlane.xlu0 %971
        %v973 = vmul.f32 %v969, %v917
        %v974 = vmul.f32 %v972, %v917
        %v975 = vadd.f32 %v973, 1e-05
        %v976 = vadd.f32 %v974, 1e-05
        %v977 = vrsqrt.pop %v975
        %v978 = vrsqrt.pop %v976
        %v979 = vmul.f32 %v963, %v977
        %v980 = vmul.f32 %v964, %v978
        %v981 = vmul.f32 %v979, %v953
        %v982 = vmul.f32 %v980, %v953
        %v983 = vadd.f32 %v981, %v954
        %v984 = vadd.f32 %v982, %v954
        %v985 = vld [vmem:[%s2 + $0x180] sm:$0xf]
        %v986 = vld [vmem:[%s2 + $0x184] sm:$0xf]
        %v987 = vld [vmem:[%s2 + $0x188] sm:$0xf]
        %v988 = vld [vmem:[%s2 + $0x18c] sm:$0xf]
        %v989 = vpack.c.bf16 %v984, %v983
        %v994 = vunpack.c.l.b16 %v985
        %v995 = vunpack.c.l.b16 %v986
        %v996 = vunpack.c.l.b16 %v987
        %v997 = vunpack.c.l.b16 %v988
        %v998 = vpack.c.b16 %v995, %v994
        %v999 = vpack.c.b16 %v997, %v996
        %v1003 = vsel %vm909, %v989, 0
        %1005 = vmatprep.subr.bf16.mxu0 0
        %1006 = vmatpush1.bf16.msra.mxu0 %v998
        %1007 = vmatprep.subr.bf16.mxu0 0
        %1008 = vmatpush1.bf16.msra.mxu0 %v999
        %1009 = vmatprep.subr.bf16.mxu0 0
        %1010 = vmatpush1.bf16.msra.mxu0 0
        %1011 = vmatprep.subr.bf16.mxu0 0
        %1012 = vmatpush1.bf16.msra.mxu0 0
        %1013 = vmatprep.subr.bf16.mxu0 0
        %1014 = vmatpush1.bf16.msra.mxu0 0
        %1015 = vmatprep.subr.bf16.mxu0 0
        %1016 = vmatpush1.bf16.msra.mxu0 0
        %1017 = vmatprep.subr.bf16.mxu0 0
        %1018 = vmatpush1.bf16.msra.mxu0 0
        %1019 = vmatprep.subr.bf16.mxu0 0
        %1020 = vmatpush1.bf16.msra.mxu0 0
        %1021 = vmatprep.subr.bf16.mxu0 0
        %1022 = vmatpush1.bf16.msra.mxu0 0
        %1023 = vmatprep.subr.bf16.mxu0 0
        %1024 = vmatpush1.bf16.msra.mxu0 0
        %1025 = vmatprep.subr.bf16.mxu0 0
        %1026 = vmatpush1.bf16.msra.mxu0 0
        %1027 = vmatprep.subr.bf16.mxu0 0
        %1028 = vmatpush1.bf16.msra.mxu0 0
        %1029 = vmatprep.subr.bf16.mxu0 0
        %1030 = vmatpush1.bf16.msra.mxu0 0
        %1031 = vmatprep.subr.bf16.mxu0 0
        %1032 = vmatpush1.bf16.msra.mxu0 0
        %1033 = vmatprep.subr.bf16.mxu0 0
        %1034 = vmatpush1.bf16.msra.mxu0 0
        %1035 = vmatprep.subr.bf16.mxu0 0
        %1036 = vmatpush1.bf16.msra.mxu0 0
        %1037 = vmatprep.mubr.bf16.mxu0 0
        %1038 = vmatmul.mubr.bf16.gmra.mrb[0].mxu0 %v1003
        %v1039 = vpop.f32.mrb[0].mxu0
        %v1040 = vadd.f32 0.0, %v1039
        %v1041 = vpop.f32.mrb[0].mxu0
        %v1042 = vpop.f32.mrb[0].mxu0
        %v1043 = vadd.f32 0.0, %v1042
        %v1044 = vpop.f32.mrb[0].mxu0
        %1045 = vdwg.mxu0
        %v1046 = vpack.c.bf16 %v1043, %v1040
        %1048 = vrot.lane.b32.xlu0 %v1046, 96
        %v1049 = vpop.permute.xlu0 %1048
        %vm1050 = vcmask 64512
        %v1052 = vsel %vm1050, %v1046, 0
        %v1055 = vsel %vm1050, %v1049, 0
        %1057 = vmatprep.subr.bf16.mxu0 0
        %1058 = vmatpush1.bf16.xpose.msra.mxu0 %v1055
        %1059 = vmatprep.subr.bf16.mxu0 0
        %1060 = vmatpush1.bf16.xpose.msra.mxu0 0
        %1061 = vmatprep.subr.bf16.mxu0 0
        %1062 = vmatpush1.bf16.xpose.msra.mxu0 0
        %1063 = vmatprep.subr.bf16.mxu0 0
        %1064 = vmatpush1.bf16.xpose.msra.mxu0 0
        %1065 = vmatprep.subr.bf16.mxu0 0
        %1066 = vmatpush1.bf16.xpose.msra.mxu0 0
        %1067 = vmatprep.subr.bf16.mxu0 0
        %1068 = vmatpush1.bf16.xpose.msra.mxu0 0
        %1069 = vmatprep.subr.bf16.mxu0 0
        %1070 = vmatpush1.bf16.xpose.msra.mxu0 0
        %1071 = vmatprep.subr.bf16.mxu0 0
        %1072 = vmatpush1.bf16.xpose.msra.mxu0 0
        %1073 = vmatprep.subr.bf16.mxu0 0
        %1074 = vmatpush1.bf16.xpose.msra.mxu0 0
        %1075 = vmatprep.subr.bf16.mxu0 0
        %1076 = vmatpush1.bf16.xpose.msra.mxu0 0
        %1077 = vmatprep.subr.bf16.mxu0 0
        %1078 = vmatpush1.bf16.xpose.msra.mxu0 0
        %1079 = vmatprep.subr.bf16.mxu0 0
        %1080 = vmatpush1.bf16.xpose.msra.mxu0 0
        %1081 = vmatprep.subr.bf16.mxu0 0
        %1082 = vmatpush1.bf16.xpose.msra.mxu0 0
        %1083 = vmatprep.subr.bf16.mxu0 0
        %1084 = vmatpush1.bf16.xpose.msra.mxu0 0
        %1085 = vmatprep.subr.bf16.mxu0 0
        %1086 = vmatpush1.bf16.xpose.msra.mxu0 0
        %1087 = vmatprep.subr.bf16.mxu0 0
        %1088 = vmatpush1.bf16.xpose.msra.mxu0 0
        %1089 = vmatprep.mubr.bf16.mxu0 0
        %1090 = vmatmul.mubr.bf16.gmra.mrb[0].mxu0 %v1052
        %v1091 = vpop.f32.mrb[0].mxu0
        %v1092 = vadd.f32 0.0, %v1091
        %v1093 = vpop.f32.mrb[0].mxu0
        %v1094 = vpop.f32.mrb[0].mxu0
        %v1095 = vadd.f32 0.0, %v1094
        %v1096 = vpop.f32.mrb[0].mxu0
        %1097 = vdwg.mxu0
        %v1098 = vmul.f32 %v1092, 0.35355338
        %v1099 = vmul.f32 %v1095, 0.35355338
        %vm1100 = vcmask 72704
        %v1101 = vsel %vm1100, %v1098, -inf
        %1102 = vmax.xlane.f32.xlu0 %v1101
        %v1103 = vpop.xlane.xlu0 %1102
        %vm1104 = vcmask 65536
        %v1105 = vsel %vm1104, %v1099, -inf
        %1106 = vmax.xlane.f32.xlu0 %v1105
        %v1107 = vpop.xlane.xlu0 %1106
        %v1108 = vsub.f32 %v1098, %v1103
        %v1109 = vsub.f32 %v1099, %v1107
        %v1110 = vmul.f32 %v1108, 1.442695
        %v1111 = vpow.pop %v1110
        %v1112 = vmul.f32 %v1109, 1.442695
        %v1113 = vpow.pop %v1112
        %v1114 = vsel %vm1100, %v1111, 0.0
        %1115 = vadd.xlane.f32.xlu0 %v1114
        %v1116 = vpop.xlane.xlu0 %1115
        %v1117 = vsel %vm1104, %v1113, 0.0
        %1118 = vadd.xlane.f32.xlu0 %v1117
        %v1119 = vpop.xlane.xlu0 %1118
        %v1120 = vrcp.pop %v1116
        %v1121 = vrcp.pop %v1119
        %v1122 = vmul.f32 %v1111, %v1120
        %v1123 = vmul.f32 %v1113, %v1121
        %v1124 = vpack.c.bf16 %v1123, %v1122
        %1125 = vrot.lane.b32.xlu0 %v1046, 64
        %v1126 = vpop.permute.xlu0 %1125
        %v1128 = vsel %vm1100, %v1124, 0
        %vm1130 = vcmask 1043456
        %vm1131 = vcmask 1044480
        %v1132 = vsel %vm1130, 4294967295, 65535
        %v1133 = vsel %vm1131, %v1132, 0
        %v1135 = vand.u32 %v1126, %v1133
        %1137 = vmatprep.subr.bf16.mxu0 0
        %1138 = vmatpush1.bf16.msra.mxu0 %v1135
        %1139 = vmatprep.subr.bf16.mxu0 0
        %1140 = vmatpush1.bf16.msra.mxu0 0
        %1141 = vmatprep.subr.bf16.mxu0 0
        %1142 = vmatpush1.bf16.msra.mxu0 0
        %1143 = vmatprep.subr.bf16.mxu0 0
        %1144 = vmatpush1.bf16.msra.mxu0 0
        %1145 = vmatprep.subr.bf16.mxu0 0
        %1146 = vmatpush1.bf16.msra.mxu0 0
        %1147 = vmatprep.subr.bf16.mxu0 0
        %1148 = vmatpush1.bf16.msra.mxu0 0
        %1149 = vmatprep.subr.bf16.mxu0 0
        %1150 = vmatpush1.bf16.msra.mxu0 0
        %1151 = vmatprep.subr.bf16.mxu0 0
        %1152 = vmatpush1.bf16.msra.mxu0 0
        %1153 = vmatprep.subr.bf16.mxu0 0
        %1154 = vmatpush1.bf16.msra.mxu0 0
        %1155 = vmatprep.subr.bf16.mxu0 0
        %1156 = vmatpush1.bf16.msra.mxu0 0
        %1157 = vmatprep.subr.bf16.mxu0 0
        %1158 = vmatpush1.bf16.msra.mxu0 0
        %1159 = vmatprep.subr.bf16.mxu0 0
        %1160 = vmatpush1.bf16.msra.mxu0 0
        %1161 = vmatprep.subr.bf16.mxu0 0
        %1162 = vmatpush1.bf16.msra.mxu0 0
        %1163 = vmatprep.subr.bf16.mxu0 0
        %1164 = vmatpush1.bf16.msra.mxu0 0
        %1165 = vmatprep.subr.bf16.mxu0 0
        %1166 = vmatpush1.bf16.msra.mxu0 0
        %1167 = vmatprep.subr.bf16.mxu0 0
        %1168 = vmatpush1.bf16.msra.mxu0 0
        %1169 = vmatprep.mubr.bf16.mxu0 0
        %1170 = vmatmul.mubr.bf16.gmra.mrb[0].mxu0 %v1128
        %v1171 = vpop.f32.mrb[0].mxu0
        %v1172 = vadd.f32 0.0, %v1171
        %v1173 = vpop.f32.mrb[0].mxu0
        %v1174 = vpop.f32.mrb[0].mxu0
        %v1175 = vadd.f32 0.0, %v1174
        %v1176 = vpop.f32.mrb[0].mxu0
        %1177 = vdwg.mxu0
        %1178 = vrot.lane.b32.xlu0 %v1046, 120
        %v1179 = vpop.permute.xlu0 %1178
        %1180 = vrot.lane.b32.xlu0 %v1046, 88
        %v1181 = vpop.permute.xlu0 %1180
        %v1183 = vsel %vm1050, %v1179, 0
        %v1186 = vsel %vm1050, %v1181, 0
        %1188 = vmatprep.subr.bf16.mxu0 0
        %1189 = vmatpush1.bf16.xpose.msra.mxu0 %v1186
        %1190 = vmatprep.subr.bf16.mxu0 0
        %1191 = vmatpush1.bf16.xpose.msra.mxu0 0
        %1192 = vmatprep.subr.bf16.mxu0 0
        %1193 = vmatpush1.bf16.xpose.msra.mxu0 0
        %1194 = vmatprep.subr.bf16.mxu0 0
        %1195 = vmatpush1.bf16.xpose.msra.mxu0 0
        %1196 = vmatprep.subr.bf16.mxu0 0
        %1197 = vmatpush1.bf16.xpose.msra.mxu0 0
        %1198 = vmatprep.subr.bf16.mxu0 0
        %1199 = vmatpush1.bf16.xpose.msra.mxu0 0
        %1200 = vmatprep.subr.bf16.mxu0 0
        %1201 = vmatpush1.bf16.xpose.msra.mxu0 0
        %1202 = vmatprep.subr.bf16.mxu0 0
        %1203 = vmatpush1.bf16.xpose.msra.mxu0 0
        %1204 = vmatprep.subr.bf16.mxu0 0
        %1205 = vmatpush1.bf16.xpose.msra.mxu0 0
        %1206 = vmatprep.subr.bf16.mxu0 0
        %1207 = vmatpush1.bf16.xpose.msra.mxu0 0
        %1208 = vmatprep.subr.bf16.mxu0 0
        %1209 = vmatpush1.bf16.xpose.msra.mxu0 0
        %1210 = vmatprep.subr.bf16.mxu0 0
        %1211 = vmatpush1.bf16.xpose.msra.mxu0 0
        %1212 = vmatprep.subr.bf16.mxu0 0
        %1213 = vmatpush1.bf16.xpose.msra.mxu0 0
        %1214 = vmatprep.subr.bf16.mxu0 0
        %1215 = vmatpush1.bf16.xpose.msra.mxu0 0
        %1216 = vmatprep.subr.bf16.mxu0 0
        %1217 = vmatpush1.bf16.xpose.msra.mxu0 0
        %1218 = vmatprep.subr.bf16.mxu0 0
        %1219 = vmatpush1.bf16.xpose.msra.mxu0 0
        %1220 = vmatprep.mubr.bf16.mxu0 0
        %1221 = vmatmul.mubr.bf16.gmra.mrb[0].mxu0 %v1183
        %v1222 = vpop.f32.mrb[0].mxu0
        %v1223 = vadd.f32 0.0, %v1222
        %v1224 = vpop.f32.mrb[0].mxu0
        %v1225 = vpop.f32.mrb[0].mxu0
        %v1226 = vadd.f32 0.0, %v1225
        %v1227 = vpop.f32.mrb[0].mxu0
        %1228 = vdwg.mxu0
        %v1229 = vmul.f32 %v1223, 0.35355338
        %v1230 = vmul.f32 %v1226, 0.35355338
        %v1231 = vsel %vm1100, %v1229, -inf
        %1232 = vmax.xlane.f32.xlu0 %v1231
        %v1233 = vpop.xlane.xlu0 %1232
        %v1234 = vsel %vm1104, %v1230, -inf
        %1235 = vmax.xlane.f32.xlu0 %v1234
        %v1236 = vpop.xlane.xlu0 %1235
        %v1237 = vsub.f32 %v1229, %v1233
        %v1238 = vsub.f32 %v1230, %v1236
        %v1239 = vmul.f32 %v1237, 1.442695
        %v1240 = vpow.pop %v1239
        %v1241 = vmul.f32 %v1238, 1.442695
        %v1242 = vpow.pop %v1241
        %v1243 = vsel %vm1100, %v1240, 0.0
        %1244 = vadd.xlane.f32.xlu0 %v1243
        %v1245 = vpop.xlane.xlu0 %1244
        %v1246 = vsel %vm1104, %v1242, 0.0
        %1247 = vadd.xlane.f32.xlu0 %v1246
        %v1248 = vpop.xlane.xlu0 %1247
        %v1249 = vrcp.pop %v1245
        %v1250 = vrcp.pop %v1248
        %v1251 = vmul.f32 %v1240, %v1249
        %v1252 = vmul.f32 %v1242, %v1250
        %v1253 = vpack.c.bf16 %v1252, %v1251
        %1254 = vrot.lane.b32.xlu0 %v1046, 56
        %v1255 = vpop.permute.xlu0 %1254
        %v1257 = vsel %vm1100, %v1253, 0
        %v1260 = vand.u32 %v1255, %v1133
        %1262 = vmatprep.subr.bf16.mxu0 0
        %1263 = vmatpush1.bf16.msra.mxu0 %v1260
        %1264 = vmatprep.subr.bf16.mxu0 0
        %1265 = vmatpush1.bf16.msra.mxu0 0
        %1266 = vmatprep.subr.bf16.mxu0 0
        %1267 = vmatpush1.bf16.msra.mxu0 0
        %1268 = vmatprep.subr.bf16.mxu0 0
        %1269 = vmatpush1.bf16.msra.mxu0 0
        %1270 = vmatprep.subr.bf16.mxu0 0
        %1271 = vmatpush1.bf16.msra.mxu0 0
        %1272 = vmatprep.subr.bf16.mxu0 0
        %1273 = vmatpush1.bf16.msra.mxu0 0
        %1274 = vmatprep.subr.bf16.mxu0 0
        %1275 = vmatpush1.bf16.msra.mxu0 0
        %1276 = vmatprep.subr.bf16.mxu0 0
        %1277 = vmatpush1.bf16.msra.mxu0 0
        %1278 = vmatprep.subr.bf16.mxu0 0
        %1279 = vmatpush1.bf16.msra.mxu0 0
        %1280 = vmatprep.subr.bf16.mxu0 0
        %1281 = vmatpush1.bf16.msra.mxu0 0
        %1282 = vmatprep.subr.bf16.mxu0 0
        %1283 = vmatpush1.bf16.msra.mxu0 0
        %1284 = vmatprep.subr.bf16.mxu0 0
        %1285 = vmatpush1.bf16.msra.mxu0 0
        %1286 = vmatprep.subr.bf16.mxu0 0
        %1287 = vmatpush1.bf16.msra.mxu0 0
        %1288 = vmatprep.subr.bf16.mxu0 0
        %1289 = vmatpush1.bf16.msra.mxu0 0
        %1290 = vmatprep.subr.bf16.mxu0 0
        %1291 = vmatpush1.bf16.msra.mxu0 0
        %1292 = vmatprep.subr.bf16.mxu0 0
        %1293 = vmatpush1.bf16.msra.mxu0 0
        %1294 = vmatprep.mubr.bf16.mxu0 0
        %1295 = vmatmul.mubr.bf16.gmra.mrb[0].mxu0 %v1257
        %v1296 = vpop.f32.mrb[0].mxu0
        %v1297 = vadd.f32 0.0, %v1296
        %v1298 = vpop.f32.mrb[0].mxu0
        %v1299 = vpop.f32.mrb[0].mxu0
        %v1300 = vadd.f32 0.0, %v1299
        %v1301 = vpop.f32.mrb[0].mxu0
        %1302 = vdwg.mxu0
        %1303 = vrot.lane.b32.xlu0 %v1046, 112
        %v1304 = vpop.permute.xlu0 %1303
        %1305 = vrot.lane.b32.xlu0 %v1046, 80
        %v1306 = vpop.permute.xlu0 %1305
        %v1308 = vsel %vm1050, %v1304, 0
        %v1311 = vsel %vm1050, %v1306, 0
        %1313 = vmatprep.subr.bf16.mxu0 0
        %1314 = vmatpush1.bf16.xpose.msra.mxu0 %v1311
        %1315 = vmatprep.subr.bf16.mxu0 0
        %1316 = vmatpush1.bf16.xpose.msra.mxu0 0
        %1317 = vmatprep.subr.bf16.mxu0 0
        %1318 = vmatpush1.bf16.xpose.msra.mxu0 0
        %1319 = vmatprep.subr.bf16.mxu0 0
        %1320 = vmatpush1.bf16.xpose.msra.mxu0 0
        %1321 = vmatprep.subr.bf16.mxu0 0
        %1322 = vmatpush1.bf16.xpose.msra.mxu0 0
        %1323 = vmatprep.subr.bf16.mxu0 0
        %1324 = vmatpush1.bf16.xpose.msra.mxu0 0
        %1325 = vmatprep.subr.bf16.mxu0 0
        %1326 = vmatpush1.bf16.xpose.msra.mxu0 0
        %1327 = vmatprep.subr.bf16.mxu0 0
        %1328 = vmatpush1.bf16.xpose.msra.mxu0 0
        %1329 = vmatprep.subr.bf16.mxu0 0
        %1330 = vmatpush1.bf16.xpose.msra.mxu0 0
        %1331 = vmatprep.subr.bf16.mxu0 0
        %1332 = vmatpush1.bf16.xpose.msra.mxu0 0
        %1333 = vmatprep.subr.bf16.mxu0 0
        %1334 = vmatpush1.bf16.xpose.msra.mxu0 0
        %1335 = vmatprep.subr.bf16.mxu0 0
        %1336 = vmatpush1.bf16.xpose.msra.mxu0 0
        %1337 = vmatprep.subr.bf16.mxu0 0
        %1338 = vmatpush1.bf16.xpose.msra.mxu0 0
        %1339 = vmatprep.subr.bf16.mxu0 0
        %1340 = vmatpush1.bf16.xpose.msra.mxu0 0
        %1341 = vmatprep.subr.bf16.mxu0 0
        %1342 = vmatpush1.bf16.xpose.msra.mxu0 0
        %1343 = vmatprep.subr.bf16.mxu0 0
        %1344 = vmatpush1.bf16.xpose.msra.mxu0 0
        %1345 = vmatprep.mubr.bf16.mxu0 0
        %1346 = vmatmul.mubr.bf16.gmra.mrb[0].mxu0 %v1308
        %v1347 = vpop.f32.mrb[0].mxu0
        %v1348 = vadd.f32 0.0, %v1347
        %v1349 = vpop.f32.mrb[0].mxu0
        %v1350 = vpop.f32.mrb[0].mxu0
        %v1351 = vadd.f32 0.0, %v1350
        %v1352 = vpop.f32.mrb[0].mxu0
        %1353 = vdwg.mxu0
        %v1354 = vmul.f32 %v1348, 0.35355338
        %v1355 = vmul.f32 %v1351, 0.35355338
        %v1356 = vsel %vm1100, %v1354, -inf
        %1357 = vmax.xlane.f32.xlu0 %v1356
        %v1358 = vpop.xlane.xlu0 %1357
        %v1359 = vsel %vm1104, %v1355, -inf
        %1360 = vmax.xlane.f32.xlu0 %v1359
        %v1361 = vpop.xlane.xlu0 %1360
        %v1362 = vsub.f32 %v1354, %v1358
        %v1363 = vsub.f32 %v1355, %v1361
        %v1364 = vmul.f32 %v1362, 1.442695
        %v1365 = vpow.pop %v1364
        %v1366 = vmul.f32 %v1363, 1.442695
        %v1367 = vpow.pop %v1366
        %v1368 = vsel %vm1100, %v1365, 0.0
        %1369 = vadd.xlane.f32.xlu0 %v1368
        %v1370 = vpop.xlane.xlu0 %1369
        %v1371 = vsel %vm1104, %v1367, 0.0
        %1372 = vadd.xlane.f32.xlu0 %v1371
        %v1373 = vpop.xlane.xlu0 %1372
        %v1374 = vrcp.pop %v1370
        %v1375 = vrcp.pop %v1373
        %v1376 = vmul.f32 %v1365, %v1374
        %v1377 = vmul.f32 %v1367, %v1375
        %v1378 = vpack.c.bf16 %v1377, %v1376
        %1379 = vrot.lane.b32.xlu0 %v1046, 48
        %v1380 = vpop.permute.xlu0 %1379
        %v1382 = vsel %vm1100, %v1378, 0
        %v1385 = vand.u32 %v1380, %v1133
        %1387 = vmatprep.subr.bf16.mxu0 0
        %1388 = vmatpush1.bf16.msra.mxu0 %v1385
        %1389 = vmatprep.subr.bf16.mxu0 0
        %1390 = vmatpush1.bf16.msra.mxu0 0
        %1391 = vmatprep.subr.bf16.mxu0 0
        %1392 = vmatpush1.bf16.msra.mxu0 0
        %1393 = vmatprep.subr.bf16.mxu0 0
        %1394 = vmatpush1.bf16.msra.mxu0 0
        %1395 = vmatprep.subr.bf16.mxu0 0
        %1396 = vmatpush1.bf16.msra.mxu0 0
        %1397 = vmatprep.subr.bf16.mxu0 0
        %1398 = vmatpush1.bf16.msra.mxu0 0
        %1399 = vmatprep.subr.bf16.mxu0 0
        %1400 = vmatpush1.bf16.msra.mxu0 0
        %1401 = vmatprep.subr.bf16.mxu0 0
        %1402 = vmatpush1.bf16.msra.mxu0 0
        %1403 = vmatprep.subr.bf16.mxu0 0
        %1404 = vmatpush1.bf16.msra.mxu0 0
        %1405 = vmatprep.subr.bf16.mxu0 0
        %1406 = vmatpush1.bf16.msra.mxu0 0
        %1407 = vmatprep.subr.bf16.mxu0 0
        %1408 = vmatpush1.bf16.msra.mxu0 0
        %1409 = vmatprep.subr.bf16.mxu0 0
        %1410 = vmatpush1.bf16.msra.mxu0 0
        %1411 = vmatprep.subr.bf16.mxu0 0
        %1412 = vmatpush1.bf16.msra.mxu0 0
        %1413 = vmatprep.subr.bf16.mxu0 0
        %1414 = vmatpush1.bf16.msra.mxu0 0
        %1415 = vmatprep.subr.bf16.mxu0 0
        %1416 = vmatpush1.bf16.msra.mxu0 0
        %1417 = vmatprep.subr.bf16.mxu0 0
        %1418 = vmatpush1.bf16.msra.mxu0 0
        %1419 = vmatprep.mubr.bf16.mxu0 0
        %1420 = vmatmul.mubr.bf16.gmra.mrb[0].mxu0 %v1382
        %v1421 = vpop.f32.mrb[0].mxu0
        %v1422 = vadd.f32 0.0, %v1421
        %v1423 = vpop.f32.mrb[0].mxu0
        %v1424 = vpop.f32.mrb[0].mxu0
        %v1425 = vadd.f32 0.0, %v1424
        %v1426 = vpop.f32.mrb[0].mxu0
        %1427 = vdwg.mxu0
        %1428 = vrot.lane.b32.xlu0 %v1046, 104
        %v1429 = vpop.permute.xlu0 %1428
        %1430 = vrot.lane.b32.xlu0 %v1046, 72
        %v1431 = vpop.permute.xlu0 %1430
        %v1433 = vsel %vm1050, %v1429, 0
        %v1436 = vsel %vm1050, %v1431, 0
        %1438 = vmatprep.subr.bf16.mxu0 0
        %1439 = vmatpush1.bf16.xpose.msra.mxu0 %v1436
        %1440 = vmatprep.subr.bf16.mxu0 0
        %1441 = vmatpush1.bf16.xpose.msra.mxu0 0
        %1442 = vmatprep.subr.bf16.mxu0 0
        %1443 = vmatpush1.bf16.xpose.msra.mxu0 0
        %1444 = vmatprep.subr.bf16.mxu0 0
        %1445 = vmatpush1.bf16.xpose.msra.mxu0 0
        %1446 = vmatprep.subr.bf16.mxu0 0
        %1447 = vmatpush1.bf16.xpose.msra.mxu0 0
        %1448 = vmatprep.subr.bf16.mxu0 0
        %1449 = vmatpush1.bf16.xpose.msra.mxu0 0
        %1450 = vmatprep.subr.bf16.mxu0 0
        %1451 = vmatpush1.bf16.xpose.msra.mxu0 0
        %1452 = vmatprep.subr.bf16.mxu0 0
        %1453 = vmatpush1.bf16.xpose.msra.mxu0 0
        %1454 = vmatprep.subr.bf16.mxu0 0
        %1455 = vmatpush1.bf16.xpose.msra.mxu0 0
        %1456 = vmatprep.subr.bf16.mxu0 0
        %1457 = vmatpush1.bf16.xpose.msra.mxu0 0
        %1458 = vmatprep.subr.bf16.mxu0 0
        %1459 = vmatpush1.bf16.xpose.msra.mxu0 0
        %1460 = vmatprep.subr.bf16.mxu0 0
        %1461 = vmatpush1.bf16.xpose.msra.mxu0 0
        %1462 = vmatprep.subr.bf16.mxu0 0
        %1463 = vmatpush1.bf16.xpose.msra.mxu0 0
        %1464 = vmatprep.subr.bf16.mxu0 0
        %1465 = vmatpush1.bf16.xpose.msra.mxu0 0
        %1466 = vmatprep.subr.bf16.mxu0 0
        %1467 = vmatpush1.bf16.xpose.msra.mxu0 0
        %1468 = vmatprep.subr.bf16.mxu0 0
        %1469 = vmatpush1.bf16.xpose.msra.mxu0 0
        %1470 = vmatprep.mubr.bf16.mxu0 0
        %1471 = vmatmul.mubr.bf16.gmra.mrb[0].mxu0 %v1433
        %v1472 = vpop.f32.mrb[0].mxu0
        %v1473 = vadd.f32 0.0, %v1472
        %v1474 = vpop.f32.mrb[0].mxu0
        %v1475 = vpop.f32.mrb[0].mxu0
        %v1476 = vadd.f32 0.0, %v1475
        %v1477 = vpop.f32.mrb[0].mxu0
        %1478 = vdwg.mxu0
        %v1479 = vmul.f32 %v1473, 0.35355338
        %v1480 = vmul.f32 %v1476, 0.35355338
        %v1481 = vsel %vm1100, %v1479, -inf
        %1482 = vmax.xlane.f32.xlu0 %v1481
        %v1483 = vpop.xlane.xlu0 %1482
        %v1484 = vsel %vm1104, %v1480, -inf
        %1485 = vmax.xlane.f32.xlu0 %v1484
        %v1486 = vpop.xlane.xlu0 %1485
        %v1487 = vsub.f32 %v1479, %v1483
        %v1488 = vsub.f32 %v1480, %v1486
        %v1489 = vmul.f32 %v1487, 1.442695
        %v1490 = vpow.pop %v1489
        %v1491 = vmul.f32 %v1488, 1.442695
        %v1492 = vpow.pop %v1491
        %v1493 = vsel %vm1100, %v1490, 0.0
        %1494 = vadd.xlane.f32.xlu0 %v1493
        %v1495 = vpop.xlane.xlu0 %1494
        %v1496 = vsel %vm1104, %v1492, 0.0
        %1497 = vadd.xlane.f32.xlu0 %v1496
        %v1498 = vpop.xlane.xlu0 %1497
        %v1499 = vrcp.pop %v1495
        %v1500 = vrcp.pop %v1498
        %v1501 = vmul.f32 %v1490, %v1499
        %v1502 = vmul.f32 %v1492, %v1500
        %v1503 = vpack.c.bf16 %v1502, %v1501
        %1504 = vrot.lane.b32.xlu0 %v1046, 40
        %v1505 = vpop.permute.xlu0 %1504
        %v1507 = vsel %vm1100, %v1503, 0
        %v1510 = vand.u32 %v1505, %v1133
        %1512 = vmatprep.subr.bf16.mxu0 0
        %1513 = vmatpush1.bf16.msra.mxu0 %v1510
        %1514 = vmatprep.subr.bf16.mxu0 0
        %1515 = vmatpush1.bf16.msra.mxu0 0
        %1516 = vmatprep.subr.bf16.mxu0 0
        %1517 = vmatpush1.bf16.msra.mxu0 0
        %1518 = vmatprep.subr.bf16.mxu0 0
        %1519 = vmatpush1.bf16.msra.mxu0 0
        %1520 = vmatprep.subr.bf16.mxu0 0
        %1521 = vmatpush1.bf16.msra.mxu0 0
        %1522 = vmatprep.subr.bf16.mxu0 0
        %1523 = vmatpush1.bf16.msra.mxu0 0
        %1524 = vmatprep.subr.bf16.mxu0 0
        %1525 = vmatpush1.bf16.msra.mxu0 0
        %1526 = vmatprep.subr.bf16.mxu0 0
        %1527 = vmatpush1.bf16.msra.mxu0 0
        %1528 = vmatprep.subr.bf16.mxu0 0
        %1529 = vmatpush1.bf16.msra.mxu0 0
        %1530 = vmatprep.subr.bf16.mxu0 0
        %1531 = vmatpush1.bf16.msra.mxu0 0
        %1532 = vmatprep.subr.bf16.mxu0 0
        %1533 = vmatpush1.bf16.msra.mxu0 0
        %1534 = vmatprep.subr.bf16.mxu0 0
        %1535 = vmatpush1.bf16.msra.mxu0 0
        %1536 = vmatprep.subr.bf16.mxu0 0
        %1537 = vmatpush1.bf16.msra.mxu0 0
        %1538 = vmatprep.subr.bf16.mxu0 0
        %1539 = vmatpush1.bf16.msra.mxu0 0
        %1540 = vmatprep.subr.bf16.mxu0 0
        %1541 = vmatpush1.bf16.msra.mxu0 0
        %1542 = vmatprep.subr.bf16.mxu0 0
        %1543 = vmatpush1.bf16.msra.mxu0 0
        %1544 = vmatprep.mubr.bf16.mxu0 0
        %1545 = vmatmul.mubr.bf16.gmra.mrb[0].mxu0 %v1507
        %v1546 = vpop.f32.mrb[0].mxu0
        %v1547 = vadd.f32 0.0, %v1546
        %v1548 = vpop.f32.mrb[0].mxu0
        %v1549 = vpop.f32.mrb[0].mxu0
        %v1550 = vadd.f32 0.0, %v1549
        %v1551 = vpop.f32.mrb[0].mxu0
        %1552 = vdwg.mxu0
        %1555 = vrot.lane.b32.xlu0 %v1297, 8
        %v1556 = vpop.permute.xlu0 %1555
        %1557 = vrot.lane.b32.xlu0 %v1300, 8
        %v1558 = vpop.permute.xlu0 %1557
        %1563 = vrot.lane.b32.xlu0 %v1422, 16
        %v1564 = vpop.permute.xlu0 %1563
        %1565 = vrot.lane.b32.xlu0 %v1425, 16
        %v1566 = vpop.permute.xlu0 %1565
        %1571 = vrot.lane.b32.xlu0 %v1547, 24
        %v1572 = vpop.permute.xlu0 %1571
        %1573 = vrot.lane.b32.xlu0 %v1550, 24
        %v1574 = vpop.permute.xlu0 %1573
        %v1577 = vsel %vm1050, %v1172, %v1556
        %v1578 = vsel %vm1050, %v1175, %v1558
        %vm1579 = vcmask 130048
        %v1580 = vsel %vm1579, %v1577, %v1564
        %v1581 = vsel %vm1579, %v1578, %v1566
        %vm1582 = vcmask 195584
        %v1583 = vsel %vm1582, %v1580, %v1572
        %v1584 = vsel %vm1582, %v1581, %v1574
        %v1585 = vld [vmem:[%s2 + $0x190] sm:$0xf]
        %v1586 = vld [vmem:[%s2 + $0x194] sm:$0xf]
        %v1587 = vld [vmem:[%s2 + $0x198] sm:$0xf]
        %v1588 = vld [vmem:[%s2 + $0x19c] sm:$0xf]
        %v1589 = vpack.c.bf16 %v1584, %v1583
        %v1594 = vunpack.c.l.b16 %v1585
        %v1595 = vunpack.c.l.b16 %v1586
        %v1596 = vunpack.c.l.b16 %v1587
        %v1597 = vunpack.c.l.b16 %v1588
        %v1598 = vpack.c.b16 %v1595, %v1594
        %v1599 = vpack.c.b16 %v1597, %v1596
        %v1603 = vsel %vm909, %v1589, 0
        %1605 = vmatprep.subr.bf16.mxu0 0
        %1606 = vmatpush1.bf16.msra.mxu0 %v1598
        %1607 = vmatprep.subr.bf16.mxu0 0
        %1608 = vmatpush1.bf16.msra.mxu0 %v1599
        %1609 = vmatprep.subr.bf16.mxu0 0
        %1610 = vmatpush1.bf16.msra.mxu0 0
        %1611 = vmatprep.subr.bf16.mxu0 0
        %1612 = vmatpush1.bf16.msra.mxu0 0
        %1613 = vmatprep.subr.bf16.mxu0 0
        %1614 = vmatpush1.bf16.msra.mxu0 0
        %1615 = vmatprep.subr.bf16.mxu0 0
        %1616 = vmatpush1.bf16.msra.mxu0 0
        %1617 = vmatprep.subr.bf16.mxu0 0
        %1618 = vmatpush1.bf16.msra.mxu0 0
        %1619 = vmatprep.subr.bf16.mxu0 0
        %1620 = vmatpush1.bf16.msra.mxu0 0
        %1621 = vmatprep.subr.bf16.mxu0 0
        %1622 = vmatpush1.bf16.msra.mxu0 0
        %1623 = vmatprep.subr.bf16.mxu0 0
        %1624 = vmatpush1.bf16.msra.mxu0 0
        %1625 = vmatprep.subr.bf16.mxu0 0
        %1626 = vmatpush1.bf16.msra.mxu0 0
        %1627 = vmatprep.subr.bf16.mxu0 0
        %1628 = vmatpush1.bf16.msra.mxu0 0
        %1629 = vmatprep.subr.bf16.mxu0 0
        %1630 = vmatpush1.bf16.msra.mxu0 0
        %1631 = vmatprep.subr.bf16.mxu0 0
        %1632 = vmatpush1.bf16.msra.mxu0 0
        %1633 = vmatprep.subr.bf16.mxu0 0
        %1634 = vmatpush1.bf16.msra.mxu0 0
        %1635 = vmatprep.subr.bf16.mxu0 0
        %1636 = vmatpush1.bf16.msra.mxu0 0
        %1637 = vmatprep.mubr.bf16.mxu0 0
        %1638 = vmatmul.mubr.bf16.gmra.mrb[0].mxu0 %v1603
        %v1639 = vpop.f32.mrb[0].mxu0
        %v1640 = vadd.f32 0.0, %v1639
        %v1641 = vpop.f32.mrb[0].mxu0
        %v1642 = vpop.f32.mrb[0].mxu0
        %v1643 = vadd.f32 0.0, %v1642
        %v1644 = vpop.f32.mrb[0].mxu0
        %1645 = vdwg.mxu0
        %v1646 = vadd.f32 %v951, %v1640
        %v1647 = vadd.f32 %v952, %v1643
        %v1648 = vld [vmem:[%s3 + $0x7] ss:$0 sm:$0xff]
        %v1649 = vadd.f32 %v1646, %v1648
        %v1650 = vadd.f32 %v1647, %v1648
        %v1651 = vld [vmem:[%s3 + $0x30] ss:$0 sm:$0xff]
        %v1652 = vld [vmem:[%s3 + $0x31] ss:$0 sm:$0xff]
        %v1653 = vsel %vm909, %v1649, 0.0
        %1654 = vadd.xlane.f32.xlu0 %v1653
        %v1655 = vpop.xlane.xlu0 %1654
        %v1656 = vsel %vm913, %v1650, 0.0
        %1657 = vadd.xlane.f32.xlu0 %v1656
        %v1658 = vpop.xlane.xlu0 %1657
        %v1659 = vmul.f32 %v1655, %v917
        %v1660 = vmul.f32 %v1658, %v917
        %v1661 = vsub.f32 %v1649, %v1659
        %v1662 = vsub.f32 %v1650, %v1660
        %v1663 = vmul.f32 %v1661, %v1661
        %v1664 = vmul.f32 %v1662, %v1662
        %v1665 = vsel %vm909, %v1663, 0.0
        %1666 = vadd.xlane.f32.xlu0 %v1665
        %v1667 = vpop.xlane.xlu0 %1666
        %v1668 = vsel %vm913, %v1664, 0.0
        %1669 = vadd.xlane.f32.xlu0 %v1668
        %v1670 = vpop.xlane.xlu0 %1669
        %v1671 = vmul.f32 %v1667, %v917
        %v1672 = vmul.f32 %v1670, %v917
        %v1673 = vadd.f32 %v1671, 1e-05
        %v1674 = vadd.f32 %v1672, 1e-05
        %v1675 = vrsqrt.pop %v1673
        %v1676 = vrsqrt.pop %v1674
        %v1677 = vmul.f32 %v1661, %v1675
        %v1678 = vmul.f32 %v1662, %v1676
        %v1679 = vmul.f32 %v1677, %v1651
        %v1680 = vmul.f32 %v1678, %v1651
        %v1681 = vadd.f32 %v1679, %v1652
        %v1682 = vadd.f32 %v1680, %v1652
        %v1683 = vld [vmem:[%s2 + $0x1a0] sm:$0xf]
        %v1684 = vld [vmem:[%s2 + $0x1a4] sm:$0xf]
        %v1685 = vld [vmem:[%s2 + $0x1a8] sm:$0xf]
        %v1686 = vld [vmem:[%s2 + $0x1ac] sm:$0xf]
        %v1687 = vpack.c.bf16 %v1682, %v1681
        %v1688 = vld [vmem:[%s3 + $0x32] ss:$0 sm:$0xff]
        %v1693 = vunpack.c.l.b16 %v1683
        %v1694 = vunpack.c.l.b16 %v1684
        %v1695 = vunpack.c.l.b16 %v1685
        %v1696 = vunpack.c.l.b16 %v1686
        %v1697 = vpack.c.b16 %v1694, %v1693
        %v1698 = vpack.c.b16 %v1696, %v1695
        %v1702 = vsel %vm909, %v1687, 0
        %1704 = vmatprep.subr.bf16.mxu0 0
        %1705 = vmatpush1.bf16.msra.mxu0 %v1697
        %1706 = vmatprep.subr.bf16.mxu0 0
        %1707 = vmatpush1.bf16.msra.mxu0 %v1698
        %1708 = vmatprep.subr.bf16.mxu0 0
        %1709 = vmatpush1.bf16.msra.mxu0 0
        %1710 = vmatprep.subr.bf16.mxu0 0
        %1711 = vmatpush1.bf16.msra.mxu0 0
        %1712 = vmatprep.subr.bf16.mxu0 0
        %1713 = vmatpush1.bf16.msra.mxu0 0
        %1714 = vmatprep.subr.bf16.mxu0 0
        %1715 = vmatpush1.bf16.msra.mxu0 0
        %1716 = vmatprep.subr.bf16.mxu0 0
        %1717 = vmatpush1.bf16.msra.mxu0 0
        %1718 = vmatprep.subr.bf16.mxu0 0
        %1719 = vmatpush1.bf16.msra.mxu0 0
        %1720 = vmatprep.subr.bf16.mxu0 0
        %1721 = vmatpush1.bf16.msra.mxu0 0
        %1722 = vmatprep.subr.bf16.mxu0 0
        %1723 = vmatpush1.bf16.msra.mxu0 0
        %1724 = vmatprep.subr.bf16.mxu0 0
        %1725 = vmatpush1.bf16.msra.mxu0 0
        %1726 = vmatprep.subr.bf16.mxu0 0
        %1727 = vmatpush1.bf16.msra.mxu0 0
        %1728 = vmatprep.subr.bf16.mxu0 0
        %1729 = vmatpush1.bf16.msra.mxu0 0
        %1730 = vmatprep.subr.bf16.mxu0 0
        %1731 = vmatpush1.bf16.msra.mxu0 0
        %1732 = vmatprep.subr.bf16.mxu0 0
        %1733 = vmatpush1.bf16.msra.mxu0 0
        %1734 = vmatprep.subr.bf16.mxu0 0
        %1735 = vmatpush1.bf16.msra.mxu0 0
        %1736 = vmatprep.mubr.bf16.mxu0 0
        %1737 = vmatmul.mubr.bf16.gmra.mrb[0].mxu0 %v1702
        %v1738 = vpop.f32.mrb[0].mxu0
        %v1739 = vadd.f32 %v1688, %v1738
        %v1740 = vpop.f32.mrb[0].mxu0
        %v1741 = vpop.f32.mrb[0].mxu0
        %v1742 = vadd.f32 %v1688, %v1741
        %v1743 = vpop.f32.mrb[0].mxu0
        %1744 = vdwg.mxu0
        %v1745 = vmul.f32 %v1739, 0.5
        %v1746 = vmul.f32 %v1742, 0.5
        %v1747 = vmul.f32 %v1739, 0.70710677
        %v1748 = vmul.f32 %v1742, 0.70710677
        %v1749 = vand.u32 2147483647, %v1747
        %v1750 = vand.u32 2147483647, %v1748
        %v1751 = vmul.f32 %v1749, 0.3275911
        %v1752 = vmul.f32 %v1750, 0.3275911
        %v1753 = vadd.f32 %v1751, 1.0
        %v1754 = vadd.f32 %v1752, 1.0
        %v1755 = vrcp.pop %v1753
        %v1756 = vmul.f32 1.0, %v1755
        %v1757 = vrcp.pop %v1754
        %v1758 = vmul.f32 1.0, %v1757
        %v1759 = vmul.f32 %v1756, 1.0614054
        %v1760 = vmul.f32 %v1758, 1.0614054
        %v1761 = vadd.f32 %v1759, -1.4531521
        %v1762 = vadd.f32 %v1760, -1.4531521
        %v1763 = vmul.f32 %v1761, %v1756
        %v1764 = vmul.f32 %v1762, %v1758
        %v1765 = vadd.f32 %v1763, 1.4214138
        %v1766 = vadd.f32 %v1764, 1.4214138
        %v1767 = vmul.f32 %v1765, %v1756
        %v1768 = vmul.f32 %v1766, %v1758
        %v1769 = vadd.f32 %v1767, -0.28449672
        %v1770 = vadd.f32 %v1768, -0.28449672
        %v1771 = vmul.f32 %v1769, %v1756
        %v1772 = vmul.f32 %v1770, %v1758
        %v1773 = vadd.f32 %v1771, 0.2548296
        %v1774 = vadd.f32 %v1772, 0.2548296
        %v1775 = vmul.f32 %v1773, %v1756
        %v1776 = vmul.f32 %v1774, %v1758
        %v1777 = vsub.f32 0.0, %v1749
        %v1778 = vsub.f32 0.0, %v1750
        %v1779 = vmul.f32 %v1777, %v1749
        %v1780 = vmul.f32 %v1778, %v1750
        %v1781 = vmul.f32 %v1779, 1.442695
        %v1782 = vpow.pop %v1781
        %v1783 = vmul.f32 %v1780, 1.442695
        %v1784 = vpow.pop %v1783
        %v1785 = vmul.f32 %v1775, %v1782
        %v1786 = vmul.f32 %v1776, %v1784
        %v1787 = vsub.f32 1.0, %v1785
        %v1788 = vsub.f32 1.0, %v1786
        %vm1789 = vcmp.ge.f32.partialorder %v1747, 0.0
        %vm1790 = vcmp.ge.f32.partialorder %v1748, 0.0
        %v1791 = vsub.f32 0.0, %v1787
        %v1792 = vsub.f32 0.0, %v1788
        %v1793 = vsel %vm1789, %v1787, %v1791
        %v1794 = vsel %vm1790, %v1788, %v1792
        %v1795 = vadd.f32 %v1793, 1.0
        %v1796 = vadd.f32 %v1794, 1.0
        %v1797 = vmul.f32 %v1745, %v1795
        %v1798 = vmul.f32 %v1746, %v1796
        %v1799 = vld [vmem:[%s2 + $0x1b0] sm:$0xf]
        %v1800 = vld [vmem:[%s2 + $0x1b4] sm:$0xf]
        %v1801 = vld [vmem:[%s2 + $0x1b8] sm:$0xf]
        %v1802 = vld [vmem:[%s2 + $0x1bc] sm:$0xf]
        %v1803 = vld [vmem:[%s2 + $0x1c0] sm:$0xf]
        %v1804 = vld [vmem:[%s2 + $0x1c4] sm:$0xf]
        %v1805 = vld [vmem:[%s2 + $0x1c8] sm:$0xf]
        %v1806 = vld [vmem:[%s2 + $0x1cc] sm:$0xf]
        %v1807 = vpack.c.bf16 %v1798, %v1797
        %v1816 = vunpack.c.l.b16 %v1799
        %v1817 = vunpack.c.l.b16 %v1800
        %v1818 = vunpack.c.l.b16 %v1801
        %v1819 = vunpack.c.l.b16 %v1802
        %v1820 = vunpack.c.l.b16 %v1803
        %v1821 = vunpack.c.l.b16 %v1804
        %v1822 = vunpack.c.l.b16 %v1805
        %v1823 = vunpack.c.l.b16 %v1806
        %v1824 = vpack.c.b16 %v1817, %v1816
        %v1825 = vpack.c.b16 %v1819, %v1818
        %v1826 = vpack.c.b16 %v1821, %v1820
        %v1827 = vpack.c.b16 %v1823, %v1822
        %vm1832 = vcmask 523264
        %v1834 = vsel %vm1832, %v1807, 0
        %1836 = vmatprep.subr.bf16.mxu0 0
        %1837 = vmatpush1.bf16.msra.mxu0 %v1824
        %1838 = vmatprep.subr.bf16.mxu0 0
        %1839 = vmatpush1.bf16.msra.mxu0 %v1825
        %1840 = vmatprep.subr.bf16.mxu0 0
        %1841 = vmatpush1.bf16.msra.mxu0 %v1826
        %1842 = vmatprep.subr.bf16.mxu0 0
        %1843 = vmatpush1.bf16.msra.mxu0 %v1827
        %1844 = vmatprep.subr.bf16.mxu0 0
        %1845 = vmatpush1.bf16.msra.mxu0 0
        %1846 = vmatprep.subr.bf16.mxu0 0
        %1847 = vmatpush1.bf16.msra.mxu0 0
        %1848 = vmatprep.subr.bf16.mxu0 0
        %1849 = vmatpush1.bf16.msra.mxu0 0
        %1850 = vmatprep.subr.bf16.mxu0 0
        %1851 = vmatpush1.bf16.msra.mxu0 0
        %1852 = vmatprep.subr.bf16.mxu0 0
        %1853 = vmatpush1.bf16.msra.mxu0 0
        %1854 = vmatprep.subr.bf16.mxu0 0
        %1855 = vmatpush1.bf16.msra.mxu0 0
        %1856 = vmatprep.subr.bf16.mxu0 0
        %1857 = vmatpush1.bf16.msra.mxu0 0
        %1858 = vmatprep.subr.bf16.mxu0 0
        %1859 = vmatpush1.bf16.msra.mxu0 0
        %1860 = vmatprep.subr.bf16.mxu0 0
        %1861 = vmatpush1.bf16.msra.mxu0 0
        %1862 = vmatprep.subr.bf16.mxu0 0
        %1863 = vmatpush1.bf16.msra.mxu0 0
        %1864 = vmatprep.subr.bf16.mxu0 0
        %1865 = vmatpush1.bf16.msra.mxu0 0
        %1866 = vmatprep.subr.bf16.mxu0 0
        %1867 = vmatpush1.bf16.msra.mxu0 0
        %1868 = vmatprep.mubr.bf16.mxu0 0
        %1869 = vmatmul.mubr.bf16.gmra.mrb[0].mxu0 %v1834
        %v1870 = vpop.f32.mrb[0].mxu0
        %v1871 = vadd.f32 0.0, %v1870
        %v1872 = vpop.f32.mrb[0].mxu0
        %v1873 = vpop.f32.mrb[0].mxu0
        %v1874 = vadd.f32 0.0, %v1873
        %v1875 = vpop.f32.mrb[0].mxu0
        %1876 = vdwg.mxu0
        %v1877 = vadd.f32 %v1649, %v1871
        %v1878 = vadd.f32 %v1650, %v1874
        %v1879 = vld [vmem:[%s3 + $0x33] ss:$0 sm:$0xff]
        %v1880 = vadd.f32 %v1877, %v1879
        %v1881 = vadd.f32 %v1878, %v1879
        %v1882 = vld [vmem:[%s3 + $0x34] ss:$0 sm:$0xff]
        %v1883 = vld [vmem:[%s3 + $0x35] ss:$0 sm:$0xff]
        %v1884 = vsel %vm909, %v1880, 0.0
        %1885 = vadd.xlane.f32.xlu0 %v1884
        %v1886 = vpop.xlane.xlu0 %1885
        %v1887 = vsel %vm913, %v1881, 0.0
        %1888 = vadd.xlane.f32.xlu0 %v1887
        %v1889 = vpop.xlane.xlu0 %1888
        %v1890 = vmul.f32 %v1886, %v917
        %v1891 = vmul.f32 %v1889, %v917
        %v1892 = vsub.f32 %v1880, %v1890
        %v1893 = vsub.f32 %v1881, %v1891
        %v1894 = vmul.f32 %v1892, %v1892
        %v1895 = vmul.f32 %v1893, %v1893
        %v1896 = vsel %vm909, %v1894, 0.0
        %1897 = vadd.xlane.f32.xlu0 %v1896
        %v1898 = vpop.xlane.xlu0 %1897
        %v1899 = vsel %vm913, %v1895, 0.0
        %1900 = vadd.xlane.f32.xlu0 %v1899
        %v1901 = vpop.xlane.xlu0 %1900
        %v1902 = vmul.f32 %v1898, %v917
        %v1903 = vmul.f32 %v1901, %v917
        %v1904 = vadd.f32 %v1902, 1e-05
        %v1905 = vadd.f32 %v1903, 1e-05
        %v1906 = vrsqrt.pop %v1904
        %v1907 = vrsqrt.pop %v1905
        %v1908 = vmul.f32 %v1892, %v1906
        %v1909 = vmul.f32 %v1893, %v1907
        %v1910 = vmul.f32 %v1908, %v1882
        %v1911 = vmul.f32 %v1909, %v1882
        %v1912 = vadd.f32 %v1910, %v1883
        %v1913 = vadd.f32 %v1911, %v1883
        %v1914 = vld [vmem:[%s2 + $0x1d0] sm:$0xf]
        %v1915 = vld [vmem:[%s2 + $0x1d4] sm:$0xf]
        %v1916 = vld [vmem:[%s2 + $0x1d8] sm:$0xf]
        %v1917 = vld [vmem:[%s2 + $0x1dc] sm:$0xf]
        %v1918 = vpack.c.bf16 %v1913, %v1912
        %v1923 = vunpack.c.l.b16 %v1914
        %v1924 = vunpack.c.l.b16 %v1915
        %v1925 = vunpack.c.l.b16 %v1916
        %v1926 = vunpack.c.l.b16 %v1917
        %v1927 = vpack.c.b16 %v1924, %v1923
        %v1928 = vpack.c.b16 %v1926, %v1925
        %v1932 = vsel %vm909, %v1918, 0
        %1934 = vmatprep.subr.bf16.mxu0 0
        %1935 = vmatpush1.bf16.msra.mxu0 %v1927
        %1936 = vmatprep.subr.bf16.mxu0 0
        %1937 = vmatpush1.bf16.msra.mxu0 %v1928
        %1938 = vmatprep.subr.bf16.mxu0 0
        %1939 = vmatpush1.bf16.msra.mxu0 0
        %1940 = vmatprep.subr.bf16.mxu0 0
        %1941 = vmatpush1.bf16.msra.mxu0 0
        %1942 = vmatprep.subr.bf16.mxu0 0
        %1943 = vmatpush1.bf16.msra.mxu0 0
        %1944 = vmatprep.subr.bf16.mxu0 0
        %1945 = vmatpush1.bf16.msra.mxu0 0
        %1946 = vmatprep.subr.bf16.mxu0 0
        %1947 = vmatpush1.bf16.msra.mxu0 0
        %1948 = vmatprep.subr.bf16.mxu0 0
        %1949 = vmatpush1.bf16.msra.mxu0 0
        %1950 = vmatprep.subr.bf16.mxu0 0
        %1951 = vmatpush1.bf16.msra.mxu0 0
        %1952 = vmatprep.subr.bf16.mxu0 0
        %1953 = vmatpush1.bf16.msra.mxu0 0
        %1954 = vmatprep.subr.bf16.mxu0 0
        %1955 = vmatpush1.bf16.msra.mxu0 0
        %1956 = vmatprep.subr.bf16.mxu0 0
        %1957 = vmatpush1.bf16.msra.mxu0 0
        %1958 = vmatprep.subr.bf16.mxu0 0
        %1959 = vmatpush1.bf16.msra.mxu0 0
        %1960 = vmatprep.subr.bf16.mxu0 0
        %1961 = vmatpush1.bf16.msra.mxu0 0
        %1962 = vmatprep.subr.bf16.mxu0 0
        %1963 = vmatpush1.bf16.msra.mxu0 0
        %1964 = vmatprep.subr.bf16.mxu0 0
        %1965 = vmatpush1.bf16.msra.mxu0 0
        %1966 = vmatprep.mubr.bf16.mxu0 0
        %1967 = vmatmul.mubr.bf16.gmra.mrb[0].mxu0 %v1932
        %v1968 = vpop.f32.mrb[0].mxu0
        %v1969 = vadd.f32 0.0, %v1968
        %v1970 = vpop.f32.mrb[0].mxu0
        %v1971 = vpop.f32.mrb[0].mxu0
        %v1972 = vadd.f32 0.0, %v1971
        %v1973 = vpop.f32.mrb[0].mxu0
        %1974 = vdwg.mxu0
        %v1975 = vpack.c.bf16 %v1972, %v1969
        %1977 = vrot.lane.b32.xlu0 %v1975, 96
        %v1978 = vpop.permute.xlu0 %1977
        %v1980 = vsel %vm1050, %v1975, 0
        %v1983 = vsel %vm1050, %v1978, 0
        %1985 = vmatprep.subr.bf16.mxu0 0
        %1986 = vmatpush1.bf16.xpose.msra.mxu0 %v1983
        %1987 = vmatprep.subr.bf16.mxu0 0
        %1988 = vmatpush1.bf16.xpose.msra.mxu0 0
        %1989 = vmatprep.subr.bf16.mxu0 0
        %1990 = vmatpush1.bf16.xpose.msra.mxu0 0
        %1991 = vmatprep.subr.bf16.mxu0 0
        %1992 = vmatpush1.bf16.xpose.msra.mxu0 0
        %1993 = vmatprep.subr.bf16.mxu0 0
        %1994 = vmatpush1.bf16.xpose.msra.mxu0 0
        %1995 = vmatprep.subr.bf16.mxu0 0
        %1996 = vmatpush1.bf16.xpose.msra.mxu0 0
        %1997 = vmatprep.subr.bf16.mxu0 0
        %1998 = vmatpush1.bf16.xpose.msra.mxu0 0
        %1999 = vmatprep.subr.bf16.mxu0 0
        %2000 = vmatpush1.bf16.xpose.msra.mxu0 0
        %2001 = vmatprep.subr.bf16.mxu0 0
        %2002 = vmatpush1.bf16.xpose.msra.mxu0 0
        %2003 = vmatprep.subr.bf16.mxu0 0
        %2004 = vmatpush1.bf16.xpose.msra.mxu0 0
        %2005 = vmatprep.subr.bf16.mxu0 0
        %2006 = vmatpush1.bf16.xpose.msra.mxu0 0
        %2007 = vmatprep.subr.bf16.mxu0 0
        %2008 = vmatpush1.bf16.xpose.msra.mxu0 0
        %2009 = vmatprep.subr.bf16.mxu0 0
        %2010 = vmatpush1.bf16.xpose.msra.mxu0 0
        %2011 = vmatprep.subr.bf16.mxu0 0
        %2012 = vmatpush1.bf16.xpose.msra.mxu0 0
        %2013 = vmatprep.subr.bf16.mxu0 0
        %2014 = vmatpush1.bf16.xpose.msra.mxu0 0
        %2015 = vmatprep.subr.bf16.mxu0 0
        %2016 = vmatpush1.bf16.xpose.msra.mxu0 0
        %2017 = vmatprep.mubr.bf16.mxu0 0
        %2018 = vmatmul.mubr.bf16.gmra.mrb[0].mxu0 %v1980
        %v2019 = vpop.f32.mrb[0].mxu0
        %v2020 = vadd.f32 0.0, %v2019
        %v2021 = vpop.f32.mrb[0].mxu0
        %v2022 = vpop.f32.mrb[0].mxu0
        %v2023 = vadd.f32 0.0, %v2022
        %v2024 = vpop.f32.mrb[0].mxu0
        %2025 = vdwg.mxu0
        %v2026 = vmul.f32 %v2020, 0.35355338
        %v2027 = vmul.f32 %v2023, 0.35355338
        %v2028 = vsel %vm1100, %v2026, -inf
        %2029 = vmax.xlane.f32.xlu0 %v2028
        %v2030 = vpop.xlane.xlu0 %2029
        %v2031 = vsel %vm1104, %v2027, -inf
        %2032 = vmax.xlane.f32.xlu0 %v2031
        %v2033 = vpop.xlane.xlu0 %2032
        %v2034 = vsub.f32 %v2026, %v2030
        %v2035 = vsub.f32 %v2027, %v2033
        %v2036 = vmul.f32 %v2034, 1.442695
        %v2037 = vpow.pop %v2036
        %v2038 = vmul.f32 %v2035, 1.442695
        %v2039 = vpow.pop %v2038
        %v2040 = vsel %vm1100, %v2037, 0.0
        %2041 = vadd.xlane.f32.xlu0 %v2040
        %v2042 = vpop.xlane.xlu0 %2041
        %v2043 = vsel %vm1104, %v2039, 0.0
        %2044 = vadd.xlane.f32.xlu0 %v2043
        %v2045 = vpop.xlane.xlu0 %2044
        %v2046 = vrcp.pop %v2042
        %v2047 = vrcp.pop %v2045
        %v2048 = vmul.f32 %v2037, %v2046
        %v2049 = vmul.f32 %v2039, %v2047
        %v2050 = vpack.c.bf16 %v2049, %v2048
        %2051 = vrot.lane.b32.xlu0 %v1975, 64
        %v2052 = vpop.permute.xlu0 %2051
        %v2054 = vsel %vm1100, %v2050, 0
        %v2057 = vand.u32 %v2052, %v1133
        %2059 = vmatprep.subr.bf16.mxu0 0
        %2060 = vmatpush1.bf16.msra.mxu0 %v2057
        %2061 = vmatprep.subr.bf16.mxu0 0
        %2062 = vmatpush1.bf16.msra.mxu0 0
        %2063 = vmatprep.subr.bf16.mxu0 0
        %2064 = vmatpush1.bf16.msra.mxu0 0
        %2065 = vmatprep.subr.bf16.mxu0 0
        %2066 = vmatpush1.bf16.msra.mxu0 0
        %2067 = vmatprep.subr.bf16.mxu0 0
        %2068 = vmatpush1.bf16.msra.mxu0 0
        %2069 = vmatprep.subr.bf16.mxu0 0
        %2070 = vmatpush1.bf16.msra.mxu0 0
        %2071 = vmatprep.subr.bf16.mxu0 0
        %2072 = vmatpush1.bf16.msra.mxu0 0
        %2073 = vmatprep.subr.bf16.mxu0 0
        %2074 = vmatpush1.bf16.msra.mxu0 0
        %2075 = vmatprep.subr.bf16.mxu0 0
        %2076 = vmatpush1.bf16.msra.mxu0 0
        %2077 = vmatprep.subr.bf16.mxu0 0
        %2078 = vmatpush1.bf16.msra.mxu0 0
        %2079 = vmatprep.subr.bf16.mxu0 0
        %2080 = vmatpush1.bf16.msra.mxu0 0
        %2081 = vmatprep.subr.bf16.mxu0 0
        %2082 = vmatpush1.bf16.msra.mxu0 0
        %2083 = vmatprep.subr.bf16.mxu0 0
        %2084 = vmatpush1.bf16.msra.mxu0 0
        %2085 = vmatprep.subr.bf16.mxu0 0
        %2086 = vmatpush1.bf16.msra.mxu0 0
        %2087 = vmatprep.subr.bf16.mxu0 0
        %2088 = vmatpush1.bf16.msra.mxu0 0
        %2089 = vmatprep.subr.bf16.mxu0 0
        %2090 = vmatpush1.bf16.msra.mxu0 0
        %2091 = vmatprep.mubr.bf16.mxu0 0
        %2092 = vmatmul.mubr.bf16.gmra.mrb[0].mxu0 %v2054
        %v2093 = vpop.f32.mrb[0].mxu0
        %v2094 = vadd.f32 0.0, %v2093
        %v2095 = vpop.f32.mrb[0].mxu0
        %v2096 = vpop.f32.mrb[0].mxu0
        %v2097 = vadd.f32 0.0, %v2096
        %v2098 = vpop.f32.mrb[0].mxu0
        %2099 = vdwg.mxu0
        %2100 = vrot.lane.b32.xlu0 %v1975, 120
        %v2101 = vpop.permute.xlu0 %2100
        %2102 = vrot.lane.b32.xlu0 %v1975, 88
        %v2103 = vpop.permute.xlu0 %2102
        %v2105 = vsel %vm1050, %v2101, 0
        %v2108 = vsel %vm1050, %v2103, 0
        %2110 = vmatprep.subr.bf16.mxu0 0
        %2111 = vmatpush1.bf16.xpose.msra.mxu0 %v2108
        %2112 = vmatprep.subr.bf16.mxu0 0
        %2113 = vmatpush1.bf16.xpose.msra.mxu0 0
        %2114 = vmatprep.subr.bf16.mxu0 0
        %2115 = vmatpush1.bf16.xpose.msra.mxu0 0
        %2116 = vmatprep.subr.bf16.mxu0 0
        %2117 = vmatpush1.bf16.xpose.msra.mxu0 0
        %2118 = vmatprep.subr.bf16.mxu0 0
        %2119 = vmatpush1.bf16.xpose.msra.mxu0 0
        %2120 = vmatprep.subr.bf16.mxu0 0
        %2121 = vmatpush1.bf16.xpose.msra.mxu0 0
        %2122 = vmatprep.subr.bf16.mxu0 0
        %2123 = vmatpush1.bf16.xpose.msra.mxu0 0
        %2124 = vmatprep.subr.bf16.mxu0 0
        %2125 = vmatpush1.bf16.xpose.msra.mxu0 0
        %2126 = vmatprep.subr.bf16.mxu0 0
        %2127 = vmatpush1.bf16.xpose.msra.mxu0 0
        %2128 = vmatprep.subr.bf16.mxu0 0
        %2129 = vmatpush1.bf16.xpose.msra.mxu0 0
        %2130 = vmatprep.subr.bf16.mxu0 0
        %2131 = vmatpush1.bf16.xpose.msra.mxu0 0
        %2132 = vmatprep.subr.bf16.mxu0 0
        %2133 = vmatpush1.bf16.xpose.msra.mxu0 0
        %2134 = vmatprep.subr.bf16.mxu0 0
        %2135 = vmatpush1.bf16.xpose.msra.mxu0 0
        %2136 = vmatprep.subr.bf16.mxu0 0
        %2137 = vmatpush1.bf16.xpose.msra.mxu0 0
        %2138 = vmatprep.subr.bf16.mxu0 0
        %2139 = vmatpush1.bf16.xpose.msra.mxu0 0
        %2140 = vmatprep.subr.bf16.mxu0 0
        %2141 = vmatpush1.bf16.xpose.msra.mxu0 0
        %2142 = vmatprep.mubr.bf16.mxu0 0
        %2143 = vmatmul.mubr.bf16.gmra.mrb[0].mxu0 %v2105
        %v2144 = vpop.f32.mrb[0].mxu0
        %v2145 = vadd.f32 0.0, %v2144
        %v2146 = vpop.f32.mrb[0].mxu0
        %v2147 = vpop.f32.mrb[0].mxu0
        %v2148 = vadd.f32 0.0, %v2147
        %v2149 = vpop.f32.mrb[0].mxu0
        %2150 = vdwg.mxu0
        %v2151 = vmul.f32 %v2145, 0.35355338
        %v2152 = vmul.f32 %v2148, 0.35355338
        %v2153 = vsel %vm1100, %v2151, -inf
        %2154 = vmax.xlane.f32.xlu0 %v2153
        %v2155 = vpop.xlane.xlu0 %2154
        %v2156 = vsel %vm1104, %v2152, -inf
        %2157 = vmax.xlane.f32.xlu0 %v2156
        %v2158 = vpop.xlane.xlu0 %2157
        %v2159 = vsub.f32 %v2151, %v2155
        %v2160 = vsub.f32 %v2152, %v2158
        %v2161 = vmul.f32 %v2159, 1.442695
        %v2162 = vpow.pop %v2161
        %v2163 = vmul.f32 %v2160, 1.442695
        %v2164 = vpow.pop %v2163
        %v2165 = vsel %vm1100, %v2162, 0.0
        %2166 = vadd.xlane.f32.xlu0 %v2165
        %v2167 = vpop.xlane.xlu0 %2166
        %v2168 = vsel %vm1104, %v2164, 0.0
        %2169 = vadd.xlane.f32.xlu0 %v2168
        %v2170 = vpop.xlane.xlu0 %2169
        %v2171 = vrcp.pop %v2167
        %v2172 = vrcp.pop %v2170
        %v2173 = vmul.f32 %v2162, %v2171
        %v2174 = vmul.f32 %v2164, %v2172
        %v2175 = vpack.c.bf16 %v2174, %v2173
        %2176 = vrot.lane.b32.xlu0 %v1975, 56
        %v2177 = vpop.permute.xlu0 %2176
        %v2179 = vsel %vm1100, %v2175, 0
        %v2182 = vand.u32 %v2177, %v1133
        %2184 = vmatprep.subr.bf16.mxu0 0
        %2185 = vmatpush1.bf16.msra.mxu0 %v2182
        %2186 = vmatprep.subr.bf16.mxu0 0
        %2187 = vmatpush1.bf16.msra.mxu0 0
        %2188 = vmatprep.subr.bf16.mxu0 0
        %2189 = vmatpush1.bf16.msra.mxu0 0
        %2190 = vmatprep.subr.bf16.mxu0 0
        %2191 = vmatpush1.bf16.msra.mxu0 0
        %2192 = vmatprep.subr.bf16.mxu0 0
        %2193 = vmatpush1.bf16.msra.mxu0 0
        %2194 = vmatprep.subr.bf16.mxu0 0
        %2195 = vmatpush1.bf16.msra.mxu0 0
        %2196 = vmatprep.subr.bf16.mxu0 0
        %2197 = vmatpush1.bf16.msra.mxu0 0
        %2198 = vmatprep.subr.bf16.mxu0 0
        %2199 = vmatpush1.bf16.msra.mxu0 0
        %2200 = vmatprep.subr.bf16.mxu0 0
        %2201 = vmatpush1.bf16.msra.mxu0 0
        %2202 = vmatprep.subr.bf16.mxu0 0
        %2203 = vmatpush1.bf16.msra.mxu0 0
        %2204 = vmatprep.subr.bf16.mxu0 0
        %2205 = vmatpush1.bf16.msra.mxu0 0
        %2206 = vmatprep.subr.bf16.mxu0 0
        %2207 = vmatpush1.bf16.msra.mxu0 0
        %2208 = vmatprep.subr.bf16.mxu0 0
        %2209 = vmatpush1.bf16.msra.mxu0 0
        %2210 = vmatprep.subr.bf16.mxu0 0
        %2211 = vmatpush1.bf16.msra.mxu0 0
        %2212 = vmatprep.subr.bf16.mxu0 0
        %2213 = vmatpush1.bf16.msra.mxu0 0
        %2214 = vmatprep.subr.bf16.mxu0 0
        %2215 = vmatpush1.bf16.msra.mxu0 0
        %2216 = vmatprep.mubr.bf16.mxu0 0
        %2217 = vmatmul.mubr.bf16.gmra.mrb[0].mxu0 %v2179
        %v2218 = vpop.f32.mrb[0].mxu0
        %v2219 = vadd.f32 0.0, %v2218
        %v2220 = vpop.f32.mrb[0].mxu0
        %v2221 = vpop.f32.mrb[0].mxu0
        %v2222 = vadd.f32 0.0, %v2221
        %v2223 = vpop.f32.mrb[0].mxu0
        %2224 = vdwg.mxu0
        %2225 = vrot.lane.b32.xlu0 %v1975, 112
        %v2226 = vpop.permute.xlu0 %2225
        %2227 = vrot.lane.b32.xlu0 %v1975, 80
        %v2228 = vpop.permute.xlu0 %2227
        %v2230 = vsel %vm1050, %v2226, 0
        %v2233 = vsel %vm1050, %v2228, 0
        %2235 = vmatprep.subr.bf16.mxu0 0
        %2236 = vmatpush1.bf16.xpose.msra.mxu0 %v2233
        %2237 = vmatprep.subr.bf16.mxu0 0
        %2238 = vmatpush1.bf16.xpose.msra.mxu0 0
        %2239 = vmatprep.subr.bf16.mxu0 0
        %2240 = vmatpush1.bf16.xpose.msra.mxu0 0
        %2241 = vmatprep.subr.bf16.mxu0 0
        %2242 = vmatpush1.bf16.xpose.msra.mxu0 0
        %2243 = vmatprep.subr.bf16.mxu0 0
        %2244 = vmatpush1.bf16.xpose.msra.mxu0 0
        %2245 = vmatprep.subr.bf16.mxu0 0
        %2246 = vmatpush1.bf16.xpose.msra.mxu0 0
        %2247 = vmatprep.subr.bf16.mxu0 0
        %2248 = vmatpush1.bf16.xpose.msra.mxu0 0
        %2249 = vmatprep.subr.bf16.mxu0 0
        %2250 = vmatpush1.bf16.xpose.msra.mxu0 0
        %2251 = vmatprep.subr.bf16.mxu0 0
        %2252 = vmatpush1.bf16.xpose.msra.mxu0 0
        %2253 = vmatprep.subr.bf16.mxu0 0
        %2254 = vmatpush1.bf16.xpose.msra.mxu0 0
        %2255 = vmatprep.subr.bf16.mxu0 0
        %2256 = vmatpush1.bf16.xpose.msra.mxu0 0
        %2257 = vmatprep.subr.bf16.mxu0 0
        %2258 = vmatpush1.bf16.xpose.msra.mxu0 0
        %2259 = vmatprep.subr.bf16.mxu0 0
        %2260 = vmatpush1.bf16.xpose.msra.mxu0 0
        %2261 = vmatprep.subr.bf16.mxu0 0
        %2262 = vmatpush1.bf16.xpose.msra.mxu0 0
        %2263 = vmatprep.subr.bf16.mxu0 0
        %2264 = vmatpush1.bf16.xpose.msra.mxu0 0
        %2265 = vmatprep.subr.bf16.mxu0 0
        %2266 = vmatpush1.bf16.xpose.msra.mxu0 0
        %2267 = vmatprep.mubr.bf16.mxu0 0
        %2268 = vmatmul.mubr.bf16.gmra.mrb[0].mxu0 %v2230
        %v2269 = vpop.f32.mrb[0].mxu0
        %v2270 = vadd.f32 0.0, %v2269
        %v2271 = vpop.f32.mrb[0].mxu0
        %v2272 = vpop.f32.mrb[0].mxu0
        %v2273 = vadd.f32 0.0, %v2272
        %v2274 = vpop.f32.mrb[0].mxu0
        %2275 = vdwg.mxu0
        %v2276 = vmul.f32 %v2270, 0.35355338
        %v2277 = vmul.f32 %v2273, 0.35355338
        %v2278 = vsel %vm1100, %v2276, -inf
        %2279 = vmax.xlane.f32.xlu0 %v2278
        %v2280 = vpop.xlane.xlu0 %2279
        %v2281 = vsel %vm1104, %v2277, -inf
        %2282 = vmax.xlane.f32.xlu0 %v2281
        %v2283 = vpop.xlane.xlu0 %2282
        %v2284 = vsub.f32 %v2276, %v2280
        %v2285 = vsub.f32 %v2277, %v2283
        %v2286 = vmul.f32 %v2284, 1.442695
        %v2287 = vpow.pop %v2286
        %v2288 = vmul.f32 %v2285, 1.442695
        %v2289 = vpow.pop %v2288
        %v2290 = vsel %vm1100, %v2287, 0.0
        %2291 = vadd.xlane.f32.xlu0 %v2290
        %v2292 = vpop.xlane.xlu0 %2291
        %v2293 = vsel %vm1104, %v2289, 0.0
        %2294 = vadd.xlane.f32.xlu0 %v2293
        %v2295 = vpop.xlane.xlu0 %2294
        %v2296 = vrcp.pop %v2292
        %v2297 = vrcp.pop %v2295
        %v2298 = vmul.f32 %v2287, %v2296
        %v2299 = vmul.f32 %v2289, %v2297
        %v2300 = vpack.c.bf16 %v2299, %v2298
        %2301 = vrot.lane.b32.xlu0 %v1975, 48
        %v2302 = vpop.permute.xlu0 %2301
        %v2304 = vsel %vm1100, %v2300, 0
        %v2307 = vand.u32 %v2302, %v1133
        %2309 = vmatprep.subr.bf16.mxu0 0
        %2310 = vmatpush1.bf16.msra.mxu0 %v2307
        %2311 = vmatprep.subr.bf16.mxu0 0
        %2312 = vmatpush1.bf16.msra.mxu0 0
        %2313 = vmatprep.subr.bf16.mxu0 0
        %2314 = vmatpush1.bf16.msra.mxu0 0
        %2315 = vmatprep.subr.bf16.mxu0 0
        %2316 = vmatpush1.bf16.msra.mxu0 0
        %2317 = vmatprep.subr.bf16.mxu0 0
        %2318 = vmatpush1.bf16.msra.mxu0 0
        %2319 = vmatprep.subr.bf16.mxu0 0
        %2320 = vmatpush1.bf16.msra.mxu0 0
        %2321 = vmatprep.subr.bf16.mxu0 0
        %2322 = vmatpush1.bf16.msra.mxu0 0
        %2323 = vmatprep.subr.bf16.mxu0 0
        %2324 = vmatpush1.bf16.msra.mxu0 0
        %2325 = vmatprep.subr.bf16.mxu0 0
        %2326 = vmatpush1.bf16.msra.mxu0 0
        %2327 = vmatprep.subr.bf16.mxu0 0
        %2328 = vmatpush1.bf16.msra.mxu0 0
        %2329 = vmatprep.subr.bf16.mxu0 0
        %2330 = vmatpush1.bf16.msra.mxu0 0
        %2331 = vmatprep.subr.bf16.mxu0 0
        %2332 = vmatpush1.bf16.msra.mxu0 0
        %2333 = vmatprep.subr.bf16.mxu0 0
        %2334 = vmatpush1.bf16.msra.mxu0 0
        %2335 = vmatprep.subr.bf16.mxu0 0
        %2336 = vmatpush1.bf16.msra.mxu0 0
        %2337 = vmatprep.subr.bf16.mxu0 0
        %2338 = vmatpush1.bf16.msra.mxu0 0
        %2339 = vmatprep.subr.bf16.mxu0 0
        %2340 = vmatpush1.bf16.msra.mxu0 0
        %2341 = vmatprep.mubr.bf16.mxu0 0
        %2342 = vmatmul.mubr.bf16.gmra.mrb[0].mxu0 %v2304
        %v2343 = vpop.f32.mrb[0].mxu0
        %v2344 = vadd.f32 0.0, %v2343
        %v2345 = vpop.f32.mrb[0].mxu0
        %v2346 = vpop.f32.mrb[0].mxu0
        %v2347 = vadd.f32 0.0, %v2346
        %v2348 = vpop.f32.mrb[0].mxu0
        %2349 = vdwg.mxu0
        %2350 = vrot.lane.b32.xlu0 %v1975, 104
        %v2351 = vpop.permute.xlu0 %2350
        %2352 = vrot.lane.b32.xlu0 %v1975, 72
        %v2353 = vpop.permute.xlu0 %2352
        %v2355 = vsel %vm1050, %v2351, 0
        %v2358 = vsel %vm1050, %v2353, 0
        %2360 = vmatprep.subr.bf16.mxu0 0
        %2361 = vmatpush1.bf16.xpose.msra.mxu0 %v2358
        %2362 = vmatprep.subr.bf16.mxu0 0
        %2363 = vmatpush1.bf16.xpose.msra.mxu0 0
        %2364 = vmatprep.subr.bf16.mxu0 0
        %2365 = vmatpush1.bf16.xpose.msra.mxu0 0
        %2366 = vmatprep.subr.bf16.mxu0 0
        %2367 = vmatpush1.bf16.xpose.msra.mxu0 0
        %2368 = vmatprep.subr.bf16.mxu0 0
        %2369 = vmatpush1.bf16.xpose.msra.mxu0 0
        %2370 = vmatprep.subr.bf16.mxu0 0
        %2371 = vmatpush1.bf16.xpose.msra.mxu0 0
        %2372 = vmatprep.subr.bf16.mxu0 0
        %2373 = vmatpush1.bf16.xpose.msra.mxu0 0
        %2374 = vmatprep.subr.bf16.mxu0 0
        %2375 = vmatpush1.bf16.xpose.msra.mxu0 0
        %2376 = vmatprep.subr.bf16.mxu0 0
        %2377 = vmatpush1.bf16.xpose.msra.mxu0 0
        %2378 = vmatprep.subr.bf16.mxu0 0
        %2379 = vmatpush1.bf16.xpose.msra.mxu0 0
        %2380 = vmatprep.subr.bf16.mxu0 0
        %2381 = vmatpush1.bf16.xpose.msra.mxu0 0
        %2382 = vmatprep.subr.bf16.mxu0 0
        %2383 = vmatpush1.bf16.xpose.msra.mxu0 0
        %2384 = vmatprep.subr.bf16.mxu0 0
        %2385 = vmatpush1.bf16.xpose.msra.mxu0 0
        %2386 = vmatprep.subr.bf16.mxu0 0
        %2387 = vmatpush1.bf16.xpose.msra.mxu0 0
        %2388 = vmatprep.subr.bf16.mxu0 0
        %2389 = vmatpush1.bf16.xpose.msra.mxu0 0
        %2390 = vmatprep.subr.bf16.mxu0 0
        %2391 = vmatpush1.bf16.xpose.msra.mxu0 0
        %2392 = vmatprep.mubr.bf16.mxu0 0
        %2393 = vmatmul.mubr.bf16.gmra.mrb[0].mxu0 %v2355
        %v2394 = vpop.f32.mrb[0].mxu0
        %v2395 = vadd.f32 0.0, %v2394
        %v2396 = vpop.f32.mrb[0].mxu0
        %v2397 = vpop.f32.mrb[0].mxu0
        %v2398 = vadd.f32 0.0, %v2397
        %v2399 = vpop.f32.mrb[0].mxu0
        %2400 = vdwg.mxu0
        %v2401 = vmul.f32 %v2395, 0.35355338
        %v2402 = vmul.f32 %v2398, 0.35355338
        %v2403 = vsel %vm1100, %v2401, -inf
        %2404 = vmax.xlane.f32.xlu0 %v2403
        %v2405 = vpop.xlane.xlu0 %2404
        %v2406 = vsel %vm1104, %v2402, -inf
        %2407 = vmax.xlane.f32.xlu0 %v2406
        %v2408 = vpop.xlane.xlu0 %2407
        %v2409 = vsub.f32 %v2401, %v2405
        %v2410 = vsub.f32 %v2402, %v2408
        %v2411 = vmul.f32 %v2409, 1.442695
        %v2412 = vpow.pop %v2411
        %v2413 = vmul.f32 %v2410, 1.442695
        %v2414 = vpow.pop %v2413
        %v2415 = vsel %vm1100, %v2412, 0.0
        %2416 = vadd.xlane.f32.xlu0 %v2415
        %v2417 = vpop.xlane.xlu0 %2416
        %v2418 = vsel %vm1104, %v2414, 0.0
        %2419 = vadd.xlane.f32.xlu0 %v2418
        %v2420 = vpop.xlane.xlu0 %2419
        %v2421 = vrcp.pop %v2417
        %v2422 = vrcp.pop %v2420
        %v2423 = vmul.f32 %v2412, %v2421
        %v2424 = vmul.f32 %v2414, %v2422
        %v2425 = vpack.c.bf16 %v2424, %v2423
        %2426 = vrot.lane.b32.xlu0 %v1975, 40
        %v2427 = vpop.permute.xlu0 %2426
        %v2429 = vsel %vm1100, %v2425, 0
        %v2432 = vand.u32 %v2427, %v1133
        %2434 = vmatprep.subr.bf16.mxu0 0
        %2435 = vmatpush1.bf16.msra.mxu0 %v2432
        %2436 = vmatprep.subr.bf16.mxu0 0
        %2437 = vmatpush1.bf16.msra.mxu0 0
        %2438 = vmatprep.subr.bf16.mxu0 0
        %2439 = vmatpush1.bf16.msra.mxu0 0
        %2440 = vmatprep.subr.bf16.mxu0 0
        %2441 = vmatpush1.bf16.msra.mxu0 0
        %2442 = vmatprep.subr.bf16.mxu0 0
        %2443 = vmatpush1.bf16.msra.mxu0 0
        %2444 = vmatprep.subr.bf16.mxu0 0
        %2445 = vmatpush1.bf16.msra.mxu0 0
        %2446 = vmatprep.subr.bf16.mxu0 0
        %2447 = vmatpush1.bf16.msra.mxu0 0
        %2448 = vmatprep.subr.bf16.mxu0 0
        %2449 = vmatpush1.bf16.msra.mxu0 0
        %2450 = vmatprep.subr.bf16.mxu0 0
        %2451 = vmatpush1.bf16.msra.mxu0 0
        %2452 = vmatprep.subr.bf16.mxu0 0
        %2453 = vmatpush1.bf16.msra.mxu0 0
        %2454 = vmatprep.subr.bf16.mxu0 0
        %2455 = vmatpush1.bf16.msra.mxu0 0
        %2456 = vmatprep.subr.bf16.mxu0 0
        %2457 = vmatpush1.bf16.msra.mxu0 0
        %2458 = vmatprep.subr.bf16.mxu0 0
        %2459 = vmatpush1.bf16.msra.mxu0 0
        %2460 = vmatprep.subr.bf16.mxu0 0
        %2461 = vmatpush1.bf16.msra.mxu0 0
        %2462 = vmatprep.subr.bf16.mxu0 0
        %2463 = vmatpush1.bf16.msra.mxu0 0
        %2464 = vmatprep.subr.bf16.mxu0 0
        %2465 = vmatpush1.bf16.msra.mxu0 0
        %2466 = vmatprep.mubr.bf16.mxu0 0
        %2467 = vmatmul.mubr.bf16.gmra.mrb[0].mxu0 %v2429
        %v2468 = vpop.f32.mrb[0].mxu0
        %v2469 = vadd.f32 0.0, %v2468
        %v2470 = vpop.f32.mrb[0].mxu0
        %v2471 = vpop.f32.mrb[0].mxu0
        %v2472 = vadd.f32 0.0, %v2471
        %v2473 = vpop.f32.mrb[0].mxu0
        %2474 = vdwg.mxu0
        %2477 = vrot.lane.b32.xlu0 %v2219, 8
        %v2478 = vpop.permute.xlu0 %2477
        %2479 = vrot.lane.b32.xlu0 %v2222, 8
        %v2480 = vpop.permute.xlu0 %2479
        %2485 = vrot.lane.b32.xlu0 %v2344, 16
        %v2486 = vpop.permute.xlu0 %2485
        %2487 = vrot.lane.b32.xlu0 %v2347, 16
        %v2488 = vpop.permute.xlu0 %2487
        %2493 = vrot.lane.b32.xlu0 %v2469, 24
        %v2494 = vpop.permute.xlu0 %2493
        %2495 = vrot.lane.b32.xlu0 %v2472, 24
        %v2496 = vpop.permute.xlu0 %2495
        %v2499 = vsel %vm1050, %v2094, %v2478
        %v2500 = vsel %vm1050, %v2097, %v2480
        %v2501 = vsel %vm1579, %v2499, %v2486
        %v2502 = vsel %vm1579, %v2500, %v2488
        %v2503 = vsel %vm1582, %v2501, %v2494
        %v2504 = vsel %vm1582, %v2502, %v2496
        %v2505 = vld [vmem:[%s2 + $0x1e0] sm:$0xf]
        %v2506 = vld [vmem:[%s2 + $0x1e4] sm:$0xf]
        %v2507 = vld [vmem:[%s2 + $0x1e8] sm:$0xf]
        %v2508 = vld [vmem:[%s2 + $0x1ec] sm:$0xf]
        %v2509 = vpack.c.bf16 %v2504, %v2503
        %v2514 = vunpack.c.l.b16 %v2505
        %v2515 = vunpack.c.l.b16 %v2506
        %v2516 = vunpack.c.l.b16 %v2507
        %v2517 = vunpack.c.l.b16 %v2508
        %v2518 = vpack.c.b16 %v2515, %v2514
        %v2519 = vpack.c.b16 %v2517, %v2516
        %v2523 = vsel %vm909, %v2509, 0
        %2525 = vmatprep.subr.bf16.mxu0 0
        %2526 = vmatpush1.bf16.msra.mxu0 %v2518
        %2527 = vmatprep.subr.bf16.mxu0 0
        %2528 = vmatpush1.bf16.msra.mxu0 %v2519
        %2529 = vmatprep.subr.bf16.mxu0 0
        %2530 = vmatpush1.bf16.msra.mxu0 0
        %2531 = vmatprep.subr.bf16.mxu0 0
        %2532 = vmatpush1.bf16.msra.mxu0 0
        %2533 = vmatprep.subr.bf16.mxu0 0
        %2534 = vmatpush1.bf16.msra.mxu0 0
        %2535 = vmatprep.subr.bf16.mxu0 0
        %2536 = vmatpush1.bf16.msra.mxu0 0
        %2537 = vmatprep.subr.bf16.mxu0 0
        %2538 = vmatpush1.bf16.msra.mxu0 0
        %2539 = vmatprep.subr.bf16.mxu0 0
        %2540 = vmatpush1.bf16.msra.mxu0 0
        %2541 = vmatprep.subr.bf16.mxu0 0
        %2542 = vmatpush1.bf16.msra.mxu0 0
        %2543 = vmatprep.subr.bf16.mxu0 0
        %2544 = vmatpush1.bf16.msra.mxu0 0
        %2545 = vmatprep.subr.bf16.mxu0 0
        %2546 = vmatpush1.bf16.msra.mxu0 0
        %2547 = vmatprep.subr.bf16.mxu0 0
        %2548 = vmatpush1.bf16.msra.mxu0 0
        %2549 = vmatprep.subr.bf16.mxu0 0
        %2550 = vmatpush1.bf16.msra.mxu0 0
        %2551 = vmatprep.subr.bf16.mxu0 0
        %2552 = vmatpush1.bf16.msra.mxu0 0
        %2553 = vmatprep.subr.bf16.mxu0 0
        %2554 = vmatpush1.bf16.msra.mxu0 0
        %2555 = vmatprep.subr.bf16.mxu0 0
        %2556 = vmatpush1.bf16.msra.mxu0 0
        %2557 = vmatprep.mubr.bf16.mxu0 0
        %2558 = vmatmul.mubr.bf16.gmra.mrb[0].mxu0 %v2523
        %v2559 = vpop.f32.mrb[0].mxu0
        %v2560 = vadd.f32 0.0, %v2559
        %v2561 = vpop.f32.mrb[0].mxu0
        %v2562 = vpop.f32.mrb[0].mxu0
        %v2563 = vadd.f32 0.0, %v2562
        %v2564 = vpop.f32.mrb[0].mxu0
        %2565 = vdwg.mxu0
        %v2566 = vadd.f32 %v1880, %v2560
        %v2567 = vadd.f32 %v1881, %v2563
        %v2568 = vld [vmem:[%s3 + $0x36] ss:$0 sm:$0xff]
        %v2569 = vadd.f32 %v2566, %v2568
        %v2570 = vadd.f32 %v2567, %v2568
        %v2571 = vld [vmem:[%s3 + $0x37] ss:$0 sm:$0xff]
        %v2572 = vld [vmem:[%s3 + $0x60] ss:$0 sm:$0xff]
        %v2573 = vsel %vm909, %v2569, 0.0
        %2574 = vadd.xlane.f32.xlu0 %v2573
        %v2575 = vpop.xlane.xlu0 %2574
        %v2576 = vsel %vm913, %v2570, 0.0
        %2577 = vadd.xlane.f32.xlu0 %v2576
        %v2578 = vpop.xlane.xlu0 %2577
        %v2579 = vmul.f32 %v2575, %v917
        %v2580 = vmul.f32 %v2578, %v917
        %v2581 = vsub.f32 %v2569, %v2579
        %v2582 = vsub.f32 %v2570, %v2580
        %v2583 = vmul.f32 %v2581, %v2581
        %v2584 = vmul.f32 %v2582, %v2582
        %v2585 = vsel %vm909, %v2583, 0.0
        %2586 = vadd.xlane.f32.xlu0 %v2585
        %v2587 = vpop.xlane.xlu0 %2586
        %v2588 = vsel %vm913, %v2584, 0.0
        %2589 = vadd.xlane.f32.xlu0 %v2588
        %v2590 = vpop.xlane.xlu0 %2589
        %v2591 = vmul.f32 %v2587, %v917
        %v2592 = vmul.f32 %v2590, %v917
        %v2593 = vadd.f32 %v2591, 1e-05
        %v2594 = vadd.f32 %v2592, 1e-05
        %v2595 = vrsqrt.pop %v2593
        %v2596 = vrsqrt.pop %v2594
        %v2597 = vmul.f32 %v2581, %v2595
        %v2598 = vmul.f32 %v2582, %v2596
        %v2599 = vmul.f32 %v2597, %v2571
        %v2600 = vmul.f32 %v2598, %v2571
        %v2601 = vadd.f32 %v2599, %v2572
        %v2602 = vadd.f32 %v2600, %v2572
        %v2603 = vld [vmem:[%s2 + $0x1f0] sm:$0xf]
        %v2604 = vld [vmem:[%s2 + $0x1f4] sm:$0xf]
        %v2605 = vld [vmem:[%s2 + $0x1f8] sm:$0xf]
        %v2606 = vld [vmem:[%s2 + $0x1fc] sm:$0xf]
        %v2607 = vpack.c.bf16 %v2602, %v2601
        %v2608 = vld [vmem:[%s3 + $0x61] ss:$0 sm:$0xff]
        %v2613 = vunpack.c.l.b16 %v2603
        %v2614 = vunpack.c.l.b16 %v2604
        %v2615 = vunpack.c.l.b16 %v2605
        %v2616 = vunpack.c.l.b16 %v2606
        %v2617 = vpack.c.b16 %v2614, %v2613
        %v2618 = vpack.c.b16 %v2616, %v2615
        %v2622 = vsel %vm909, %v2607, 0
        %2624 = vmatprep.subr.bf16.mxu0 0
        %2625 = vmatpush1.bf16.msra.mxu0 %v2617
        %2626 = vmatprep.subr.bf16.mxu0 0
        %2627 = vmatpush1.bf16.msra.mxu0 %v2618
        %2628 = vmatprep.subr.bf16.mxu0 0
        %2629 = vmatpush1.bf16.msra.mxu0 0
        %2630 = vmatprep.subr.bf16.mxu0 0
        %2631 = vmatpush1.bf16.msra.mxu0 0
        %2632 = vmatprep.subr.bf16.mxu0 0
        %2633 = vmatpush1.bf16.msra.mxu0 0
        %2634 = vmatprep.subr.bf16.mxu0 0
        %2635 = vmatpush1.bf16.msra.mxu0 0
        %2636 = vmatprep.subr.bf16.mxu0 0
        %2637 = vmatpush1.bf16.msra.mxu0 0
        %2638 = vmatprep.subr.bf16.mxu0 0
        %2639 = vmatpush1.bf16.msra.mxu0 0
        %2640 = vmatprep.subr.bf16.mxu0 0
        %2641 = vmatpush1.bf16.msra.mxu0 0
        %2642 = vmatprep.subr.bf16.mxu0 0
        %2643 = vmatpush1.bf16.msra.mxu0 0
        %2644 = vmatprep.subr.bf16.mxu0 0
        %2645 = vmatpush1.bf16.msra.mxu0 0
        %2646 = vmatprep.subr.bf16.mxu0 0
        %2647 = vmatpush1.bf16.msra.mxu0 0
        %2648 = vmatprep.subr.bf16.mxu0 0
        %2649 = vmatpush1.bf16.msra.mxu0 0
        %2650 = vmatprep.subr.bf16.mxu0 0
        %2651 = vmatpush1.bf16.msra.mxu0 0
        %2652 = vmatprep.subr.bf16.mxu0 0
        %2653 = vmatpush1.bf16.msra.mxu0 0
        %2654 = vmatprep.subr.bf16.mxu0 0
        %2655 = vmatpush1.bf16.msra.mxu0 0
        %2656 = vmatprep.mubr.bf16.mxu0 0
        %2657 = vmatmul.mubr.bf16.gmra.mrb[0].mxu0 %v2622
        %v2658 = vpop.f32.mrb[0].mxu0
        %v2659 = vadd.f32 %v2608, %v2658
        %v2660 = vpop.f32.mrb[0].mxu0
        %v2661 = vpop.f32.mrb[0].mxu0
        %v2662 = vadd.f32 %v2608, %v2661
        %v2663 = vpop.f32.mrb[0].mxu0
        %2664 = vdwg.mxu0
        %v2665 = vmul.f32 %v2659, 0.5
        %v2666 = vmul.f32 %v2662, 0.5
        %v2667 = vmul.f32 %v2659, 0.70710677
        %v2668 = vmul.f32 %v2662, 0.70710677
        %v2669 = vand.u32 2147483647, %v2667
        %v2670 = vand.u32 2147483647, %v2668
        %v2671 = vmul.f32 %v2669, 0.3275911
        %v2672 = vmul.f32 %v2670, 0.3275911
        %v2673 = vadd.f32 %v2671, 1.0
        %v2674 = vadd.f32 %v2672, 1.0
        %v2675 = vrcp.pop %v2673
        %v2676 = vmul.f32 1.0, %v2675
        %v2677 = vrcp.pop %v2674
        %v2678 = vmul.f32 1.0, %v2677
        %v2679 = vmul.f32 %v2676, 1.0614054
        %v2680 = vmul.f32 %v2678, 1.0614054
        %v2681 = vadd.f32 %v2679, -1.4531521
        %v2682 = vadd.f32 %v2680, -1.4531521
        %v2683 = vmul.f32 %v2681, %v2676
        %v2684 = vmul.f32 %v2682, %v2678
        %v2685 = vadd.f32 %v2683, 1.4214138
        %v2686 = vadd.f32 %v2684, 1.4214138
        %v2687 = vmul.f32 %v2685, %v2676
        %v2688 = vmul.f32 %v2686, %v2678
        %v2689 = vadd.f32 %v2687, -0.28449672
        %v2690 = vadd.f32 %v2688, -0.28449672
        %v2691 = vmul.f32 %v2689, %v2676
        %v2692 = vmul.f32 %v2690, %v2678
        %v2693 = vadd.f32 %v2691, 0.2548296
        %v2694 = vadd.f32 %v2692, 0.2548296
        %v2695 = vmul.f32 %v2693, %v2676
        %v2696 = vmul.f32 %v2694, %v2678
        %v2697 = vsub.f32 0.0, %v2669
        %v2698 = vsub.f32 0.0, %v2670
        %v2699 = vmul.f32 %v2697, %v2669
        %v2700 = vmul.f32 %v2698, %v2670
        %v2701 = vmul.f32 %v2699, 1.442695
        %v2702 = vpow.pop %v2701
        %v2703 = vmul.f32 %v2700, 1.442695
        %v2704 = vpow.pop %v2703
        %v2705 = vmul.f32 %v2695, %v2702
        %v2706 = vmul.f32 %v2696, %v2704
        %v2707 = vsub.f32 1.0, %v2705
        %v2708 = vsub.f32 1.0, %v2706
        %vm2709 = vcmp.ge.f32.partialorder %v2667, 0.0
        %vm2710 = vcmp.ge.f32.partialorder %v2668, 0.0
        %v2711 = vsub.f32 0.0, %v2707
        %v2712 = vsub.f32 0.0, %v2708
        %v2713 = vsel %vm2709, %v2707, %v2711
        %v2714 = vsel %vm2710, %v2708, %v2712
        %v2715 = vadd.f32 %v2713, 1.0
        %v2716 = vadd.f32 %v2714, 1.0
        %v2717 = vmul.f32 %v2665, %v2715
        %v2718 = vmul.f32 %v2666, %v2716
        %v2719 = vld [vmem:[%s2 + $0x200] sm:$0xf]
        %v2720 = vld [vmem:[%s2 + $0x204] sm:$0xf]
        %v2721 = vld [vmem:[%s2 + $0x208] sm:$0xf]
        %v2722 = vld [vmem:[%s2 + $0x20c] sm:$0xf]
        %v2723 = vld [vmem:[%s2 + $0x210] sm:$0xf]
        %v2724 = vld [vmem:[%s2 + $0x214] sm:$0xf]
        %v2725 = vld [vmem:[%s2 + $0x218] sm:$0xf]
        %v2726 = vld [vmem:[%s2 + $0x21c] sm:$0xf]
        %v2727 = vpack.c.bf16 %v2718, %v2717
        %v2736 = vunpack.c.l.b16 %v2719
        %v2737 = vunpack.c.l.b16 %v2720
        %v2738 = vunpack.c.l.b16 %v2721
        %v2739 = vunpack.c.l.b16 %v2722
        %v2740 = vunpack.c.l.b16 %v2723
        %v2741 = vunpack.c.l.b16 %v2724
        %v2742 = vunpack.c.l.b16 %v2725
        %v2743 = vunpack.c.l.b16 %v2726
        %v2744 = vpack.c.b16 %v2737, %v2736
        %v2745 = vpack.c.b16 %v2739, %v2738
        %v2746 = vpack.c.b16 %v2741, %v2740
        %v2747 = vpack.c.b16 %v2743, %v2742
        %v2753 = vsel %vm1832, %v2727, 0
        %2755 = vmatprep.subr.bf16.mxu0 0
        %2756 = vmatpush1.bf16.msra.mxu0 %v2744
        %2757 = vmatprep.subr.bf16.mxu0 0
        %2758 = vmatpush1.bf16.msra.mxu0 %v2745
        %2759 = vmatprep.subr.bf16.mxu0 0
        %2760 = vmatpush1.bf16.msra.mxu0 %v2746
        %2761 = vmatprep.subr.bf16.mxu0 0
        %2762 = vmatpush1.bf16.msra.mxu0 %v2747
        %2763 = vmatprep.subr.bf16.mxu0 0
        %2764 = vmatpush1.bf16.msra.mxu0 0
        %2765 = vmatprep.subr.bf16.mxu0 0
        %2766 = vmatpush1.bf16.msra.mxu0 0
        %2767 = vmatprep.subr.bf16.mxu0 0
        %2768 = vmatpush1.bf16.msra.mxu0 0
        %2769 = vmatprep.subr.bf16.mxu0 0
        %2770 = vmatpush1.bf16.msra.mxu0 0
        %2771 = vmatprep.subr.bf16.mxu0 0
        %2772 = vmatpush1.bf16.msra.mxu0 0
        %2773 = vmatprep.subr.bf16.mxu0 0
        %2774 = vmatpush1.bf16.msra.mxu0 0
        %2775 = vmatprep.subr.bf16.mxu0 0
        %2776 = vmatpush1.bf16.msra.mxu0 0
        %2777 = vmatprep.subr.bf16.mxu0 0
        %2778 = vmatpush1.bf16.msra.mxu0 0
        %2779 = vmatprep.subr.bf16.mxu0 0
        %2780 = vmatpush1.bf16.msra.mxu0 0
        %2781 = vmatprep.subr.bf16.mxu0 0
        %2782 = vmatpush1.bf16.msra.mxu0 0
        %2783 = vmatprep.subr.bf16.mxu0 0
        %2784 = vmatpush1.bf16.msra.mxu0 0
        %2785 = vmatprep.subr.bf16.mxu0 0
        %2786 = vmatpush1.bf16.msra.mxu0 0
        %2787 = vmatprep.mubr.bf16.mxu0 0
        %2788 = vmatmul.mubr.bf16.gmra.mrb[0].mxu0 %v2753
        %v2789 = vpop.f32.mrb[0].mxu0
        %v2790 = vadd.f32 0.0, %v2789
        %v2791 = vpop.f32.mrb[0].mxu0
        %v2792 = vpop.f32.mrb[0].mxu0
        %v2793 = vpop.f32.mrb[0].mxu0
        %2794 = vdwg.mxu0
        %v2795 = vadd.f32 %v2569, %v2790
        %v2796 = vld [vmem:[%s3 + $0x62] ss:$0 sm:$0xff]
        %v2797 = vadd.f32 %v2795, %v2796
        %v2798 = vld [vmem:[%s2 + $0x220] sm:$0xf]
        %v2799 = vld [vmem:[%s2 + $0x224] sm:$0xf]
        %v2800 = vld [vmem:[%s2 + $0x228] sm:$0xf]
        %v2801 = vld [vmem:[%s2 + $0x22c] sm:$0xf]
        %v2802 = vpack.c.bf16 %v2797, %v2797
        %v2807 = vunpack.c.l.b16 %v2798
        %v2808 = vunpack.c.l.b16 %v2799
        %v2809 = vunpack.c.l.b16 %v2800
        %v2810 = vunpack.c.l.b16 %v2801
        %v2811 = vpack.c.b16 %v2808, %v2807
        %v2812 = vpack.c.b16 %v2810, %v2809
        %v2816 = vsel %vm909, %v2802, 0
        %2818 = vmatprep.subr.bf16.mxu0 0
        %2819 = vmatpush1.bf16.msra.mxu0 %v2811
        %2820 = vmatprep.subr.bf16.mxu0 0
        %2821 = vmatpush1.bf16.msra.mxu0 %v2812
        %2822 = vmatprep.subr.bf16.mxu0 0
        %2823 = vmatpush1.bf16.msra.mxu0 0
        %2824 = vmatprep.subr.bf16.mxu0 0
        %2825 = vmatpush1.bf16.msra.mxu0 0
        %2826 = vmatprep.subr.bf16.mxu0 0
        %2827 = vmatpush1.bf16.msra.mxu0 0
        %2828 = vmatprep.subr.bf16.mxu0 0
        %2829 = vmatpush1.bf16.msra.mxu0 0
        %2830 = vmatprep.subr.bf16.mxu0 0
        %2831 = vmatpush1.bf16.msra.mxu0 0
        %2832 = vmatprep.subr.bf16.mxu0 0
        %2833 = vmatpush1.bf16.msra.mxu0 0
        %2834 = vmatprep.subr.bf16.mxu0 0
        %2835 = vmatpush1.bf16.msra.mxu0 0
        %2836 = vmatprep.subr.bf16.mxu0 0
        %2837 = vmatpush1.bf16.msra.mxu0 0
        %2838 = vmatprep.subr.bf16.mxu0 0
        %2839 = vmatpush1.bf16.msra.mxu0 0
        %2840 = vmatprep.subr.bf16.mxu0 0
        %2841 = vmatpush1.bf16.msra.mxu0 0
        %2842 = vmatprep.subr.bf16.mxu0 0
        %2843 = vmatpush1.bf16.msra.mxu0 0
        %2844 = vmatprep.subr.bf16.mxu0 0
        %2845 = vmatpush1.bf16.msra.mxu0 0
        %2846 = vmatprep.subr.bf16.mxu0 0
        %2847 = vmatpush1.bf16.msra.mxu0 0
        %2848 = vmatprep.subr.bf16.mxu0 0
        %2849 = vmatpush1.bf16.msra.mxu0 0
        %2850 = vmatprep.mubr.bf16.mxu0 0
        %2851 = vmatmul.mubr.bf16.gmra.mrb[0].mxu0 %v2816
        %v2852 = vpop.f32.mrb[0].mxu0
        %v2853 = vadd.f32 0.0, %v2852
        %v2854 = vpop.f32.mrb[0].mxu0
        %v2855 = vpop.f32.mrb[0].mxu0
        %v2856 = vpop.f32.mrb[0].mxu0
        %2857 = vdwg.mxu0
        %v2858 = vld [vmem:[%s3 + $0x63] ss:$0 sm:$0xff]
        %v2859 = vld [vmem:[%s3 + $0x64] ss:$0 sm:$0xff]
        %v2860 = vsel %vm913, %v2853, 0.0
        %2861 = vadd.xlane.f32.xlu0 %v2860
        %v2862 = vpop.xlane.xlu0 %2861
        %v2863 = vmul.f32 %v2862, %v917
        %v2864 = vsub.f32 %v2853, %v2863
        %v2865 = vmul.f32 %v2864, %v2864
        %v2866 = vsel %vm913, %v2865, 0.0
        %2867 = vadd.xlane.f32.xlu0 %v2866
        %v2868 = vpop.xlane.xlu0 %2867
        %v2869 = vmul.f32 %v2868, %v917
        %v2870 = vadd.f32 %v2869, 1e-05
        %v2871 = vrsqrt.pop %v2870
        %v2872 = vmul.f32 %v2864, %v2871
        %v2873 = vmul.f32 %v2872, %v2858
        %v2874 = vadd.f32 %v2873, %v2859
        %v2875 = vld [vmem:[%s2 + $0x230] sm:$0xf]
        %v2876 = vld [vmem:[%s2 + $0x234] sm:$0xf]
        %v2877 = vld [vmem:[%s2 + $0x238] sm:$0xf]
        %v2878 = vld [vmem:[%s2 + $0x23c] sm:$0xf]
        %v2879 = vpack.c.bf16 %v2874, %v2874
        %v2880 = vld [vmem:[%s3 + $0x65] ss:$0 sm:$0xff]
        %v2885 = vunpack.c.l.b16 %v2875
        %v2886 = vunpack.c.l.b16 %v2876
        %v2887 = vunpack.c.l.b16 %v2877
        %v2888 = vunpack.c.l.b16 %v2878
        %v2889 = vpack.c.b16 %v2886, %v2885
        %v2890 = vpack.c.b16 %v2888, %v2887
        %v2894 = vsel %vm909, %v2879, 0
        %2896 = vmatprep.subr.bf16.mxu0 0
        %2897 = vmatpush1.bf16.msra.mxu0 %v2889
        %2898 = vmatprep.subr.bf16.mxu0 0
        %2899 = vmatpush1.bf16.msra.mxu0 %v2890
        %2900 = vmatprep.subr.bf16.mxu0 0
        %2901 = vmatpush1.bf16.msra.mxu0 0
        %2902 = vmatprep.subr.bf16.mxu0 0
        %2903 = vmatpush1.bf16.msra.mxu0 0
        %2904 = vmatprep.subr.bf16.mxu0 0
        %2905 = vmatpush1.bf16.msra.mxu0 0
        %2906 = vmatprep.subr.bf16.mxu0 0
        %2907 = vmatpush1.bf16.msra.mxu0 0
        %2908 = vmatprep.subr.bf16.mxu0 0
        %2909 = vmatpush1.bf16.msra.mxu0 0
        %2910 = vmatprep.subr.bf16.mxu0 0
        %2911 = vmatpush1.bf16.msra.mxu0 0
        %2912 = vmatprep.subr.bf16.mxu0 0
        %2913 = vmatpush1.bf16.msra.mxu0 0
        %2914 = vmatprep.subr.bf16.mxu0 0
        %2915 = vmatpush1.bf16.msra.mxu0 0
        %2916 = vmatprep.subr.bf16.mxu0 0
        %2917 = vmatpush1.bf16.msra.mxu0 0
        %2918 = vmatprep.subr.bf16.mxu0 0
        %2919 = vmatpush1.bf16.msra.mxu0 0
        %2920 = vmatprep.subr.bf16.mxu0 0
        %2921 = vmatpush1.bf16.msra.mxu0 0
        %2922 = vmatprep.subr.bf16.mxu0 0
        %2923 = vmatpush1.bf16.msra.mxu0 0
        %2924 = vmatprep.subr.bf16.mxu0 0
        %2925 = vmatpush1.bf16.msra.mxu0 0
        %2926 = vmatprep.subr.bf16.mxu0 0
        %2927 = vmatpush1.bf16.msra.mxu0 0
        %2928 = vmatprep.mubr.bf16.mxu0 0
        %2929 = vmatmul.mubr.bf16.gmra.mrb[0].mxu0 %v2894
        %v2930 = vpop.f32.mrb[0].mxu0
        %v2931 = vadd.f32 %v2880, %v2930
        %v2932 = vpop.f32.mrb[0].mxu0
        %v2933 = vpop.f32.mrb[0].mxu0
        %v2934 = vpop.f32.mrb[0].mxu0
        %2935 = vdwg.mxu0
        %2936 = vst [vmem:[%s189] sm:$0x1] %v2931
        %s2937 = sand.u32 %s115, 1
        %s2938 = scalar_lea.sflag [#allocation3], %s2937
        %s2939 = sand.u32 %s115, 1
        %s2940 = scalar_lea.vmem [#allocation2], %s2939
        // Predicated region
        $region37: #{_lambda_.1} parent=35 // pred_check
          %p2941 = pneg %p125
        $region38: #{_lambda_.1} parent=35 // pred_check_branch
          %2943 = sbr.rel (%p2941) target = $region40
        $region39: #{_lambda_.1} parent=35 // pred_region
          %s2945 = ssub.s32 16, 16
          %2946 = vsyncadd %s2938, %s2945
          %s2947 = smul.addr %s18, 16
          %s2948 = scalar_lea.hbm %s4, %s2947
          %s2950 = sshll.u32 %s2940, 4
          %s2951 = int_to_ptr.vmem [resolvable:$true] %s2950
          %2953 = dma.vmem_to_hbm [thread:$0]  %s2951, 16, %s2948, %s2938
        $region40: #{_lambda_.1} parent=35 // pred_fallthru
          _
      $region36: #{_lambda_.1} parent=5 // pred_fallthru
        _
      %p2954 = scmp.le.s32.totalorder 2, %s13
      // Predicated region
      $region41: #{_lambda_.1} parent=5 // pred_check
        %p2955 = pneg %p2954
      $region42: #{_lambda_.1} parent=5 // pred_check_branch
        %2957 = sbr.rel (%p2955) target = $region44
      $region43: #{_lambda_.1} parent=5 // pred_region
        %s2958 = ssub.s32 %s13, 2
        // Predicated region
        $region45: #{_lambda_.1} parent=43 // pred_check
          %p2959 = pneg %p131
        $region46: #{_lambda_.1} parent=43 // pred_check_branch
          %2961 = sbr.rel (%p2959) target = $region48
        $region47: #{_lambda_.1} parent=43 // pred_region
          %s2962 = sand.u32 %s116, 1
          %s2963 = scalar_lea.sflag [#allocation3], %s2962
          %s2964 = sand.u32 %s116, 1
          %s2965 = scalar_lea.vmem [#allocation2], %s2964
          %2966 = dma.done %s2963, 16
        $region48: #{_lambda_.1} parent=43 // pred_fallthru
          _
      $region44: #{_lambda_.1} parent=5 // pred_fallthru
        _
    $region6: #{_lambda_.1} parent=1 // loop_footer
      %s17 = sadd.s32 1, %s13
    $region7: #{_lambda_.1} parent=1 // loop_footer_branch
      %12 = sbr.rel target = $region3
    $region8: #{_lambda_.1} parent=1 // loop_exit
      _
    %2967 = vsyncpa [#allocation3], 1
    %s2968 = scalar_lea.sflag [#allocation3], 1
    %2969 = vsyncpa %s2968, 1

</llo_original>
